<compile_context>
chip_gen: v7x
topology: tpu7x:2x2x1
jax: 0.10.0
libtpu: 0.0.40
codegen_flags: <defaults>
</compile_context>

<pallas_src>
import numpy as np
import jax
import jax.numpy as jnp
from jax.experimental import pallas as pl
from jax.experimental.pallas import tpu as pltpu

# ----- constants matching the module's hardcoded librosa args -----
N_FFT = 2048
HOP = 160
N_MELS = 40
N_BINS = N_FFT // 2 + 1                     # 1025 rfft bins
KB = 256                                    # freq-bin block (fills 256-wide MXU on v6e/v7x)
N_BINS_PAD = ((N_BINS + KB - 1) // KB) * KB # 1280 (zero-padded bins contribute nothing)
NK = N_BINS_PAD // KB                       # 5 freq blocks
N_MELS_PAD = 128                            # lane-dense mel output (cols 40..127 are zero)
AMIN = 1e-10
TOP_DB = 80.0
NORM_EPS = 1e-7                             # HF Wav2Vec2-style normalization eps
LOG10_INV = float(1.0 / np.log(10.0))


# ----------------- librosa slaney mel filterbank (host-side, deterministic) -----------------
def _hz_to_mel(f):
    f = np.asarray(f, dtype=np.float64)
    f_sp = 200.0 / 3
    mels = f / f_sp
    min_log_hz = 1000.0
    min_log_mel = min_log_hz / f_sp
    logstep = np.log(6.4) / 27.0
    return np.where(f >= min_log_hz,
                    min_log_mel + np.log(np.maximum(f, 1e-12) / min_log_hz) / logstep,
                    mels)


def _mel_to_hz(m):
    m = np.asarray(m, dtype=np.float64)
    f_sp = 200.0 / 3
    freqs = f_sp * m
    min_log_hz = 1000.0
    min_log_mel = min_log_hz / f_sp
    logstep = np.log(6.4) / 27.0
    return np.where(m >= min_log_mel,
                    min_log_hz * np.exp(logstep * (m - min_log_mel)),
                    freqs)


def mel_filterbank(sr, n_fft, n_mels, fmin=0.0, fmax=None):
    if fmax is None:
        fmax = sr / 2.0
    n_bins = 1 + n_fft // 2
    fftfreqs = np.linspace(0.0, sr / 2.0, n_bins)
    mel_f = _mel_to_hz(np.linspace(_hz_to_mel(fmin), _hz_to_mel(fmax), n_mels + 2))
    fdiff = np.diff(mel_f)
    ramps = mel_f[:, None] - fftfreqs[None, :]
    weights = np.zeros((n_mels, n_bins), dtype=np.float64)
    for i in range(n_mels):
        lower = -ramps[i] / fdiff[i]
        upper = ramps[i + 2] / fdiff[i + 1]
        weights[i] = np.maximum(0.0, np.minimum(lower, upper))
    enorm = 2.0 / (mel_f[2:n_mels + 2] - mel_f[:n_mels])   # slaney norm (librosa default)
    weights *= enorm[:, None]
    return weights.astype(np.float32)


# ----------------- kernel 1: DFT power spectrum + mel projection (MXU) -----------------
def dft_mel_kernel(w_ref, cos_ref, sin_ref, mel_ref, o_ref, acc_ref):
    # grid = (M tiles of B*F frames, freq-bin blocks); acc accumulates (TM, N_MELS_PAD)
    k = pl.program_id(1)

    @pl.when(k == 0)
    def _():
        acc_ref[...] = jnp.zeros_like(acc_ref)

    w = w_ref[...]                                                      # (TM, NFFT) bf16
    re = jnp.dot(w, cos_ref[...], preferred_element_type=jnp.float32)   # (TM, KB) f32
    im = jnp.dot(w, sin_ref[...], preferred_element_type=jnp.float32)   # (TM, KB) f32
    power = re * re + im * im                                           # |rFFT|^2 block
    acc_ref[...] += jnp.dot(power, mel_ref[...],
                            preferred_element_type=jnp.float32)         # (TM, N_MELS_PAD)

    @pl.when(k == pl.num_programs(1) - 1)
    def _():
        o_ref[...] = acc_ref[...]


# ----------------- kernel 2: power_to_db + per-band normalization (per sample) -----------------
def logmel_norm_kernel(mel_ref, o_ref):
    mel = mel_ref[0]                                                    # (F, N_MELS_PAD) f32
    # librosa.power_to_db: ref=1.0, amin=1e-10, top_db=80
    log_spec = (10.0 * LOG10_INV) * jnp.log(jnp.maximum(mel, AMIN))
    # exclude the zero-padded mel columns (40..127) from the top_db reference max
    lane = jax.lax.broadcasted_iota(jnp.int32, log_spec.shape, 1)
    ref_max = jnp.max(jnp.where(lane < N_MELS, log_spec, -jnp.inf))
    log_spec = jnp.maximum(log_spec, ref_max - TOP_DB)
    # feature_extractor: assumed HF-style zero-mean / unit-variance per mel band over time
    # TODO(synk): feature_extractor is an external callable in the module; assumed
    #             zero_mean_unit_var_norm per mel band with eps=1e-7.
    mean = jnp.mean(log_spec, axis=0, keepdims=True)
    var = jnp.mean((log_spec - mean) ** 2, axis=0, keepdims=True)
    o_ref[0] = ((log_spec - mean) * jax.lax.rsqrt(var + NORM_EPS)).astype(o_ref.dtype)


# ----------------- wrapper -----------------
def audio_model_forward(batch_audio, batch_sr):
    """batch_audio: (B, L) float32; batch_sr: (B,) int. Returns (B, N_MELS, n_frames)."""
    B, L = batch_audio.shape
    sr = int(np.asarray(batch_sr)[0])
    # TODO(synk): the torch module allows per-sample sr; here all samples share one sr.

    # --- framing glue (librosa STFT, center=True, hann window) ---
    # TODO(synk): librosa >= 0.10 defaults stft pad_mode to 'constant'; 'reflect' matches
    #             older librosa versions implied by the positional-arg call in the module.
    pad = N_FFT // 2
    padded = jnp.pad(batch_audio.astype(jnp.float32), ((0, 0), (pad, pad)), mode="reflect")
    F = 1 + (padded.shape[1] - N_FFT) // HOP
    idx = np.arange(F)[:, None] * HOP + np.arange(N_FFT)[None, :]
    hann = (0.5 - 0.5 * np.cos(2.0 * np.pi * np.arange(N_FFT) / N_FFT)).astype(np.float32)
    frames = padded[:, idx] * jnp.asarray(hann)[None, None, :]           # (B, F, NFFT) f32
    # TODO(synk): for long audio, frame in-kernel via manual DMA from HBM (memory_space=pl.ANY)
    #             to avoid the ~12.8x HBM blowup of this gather; negligible for short clips.

    # --- fold batch and frames into one MXU M axis, tile and pad ---
    M = B * F
    TM = 256 if M >= 256 else ((M + 15) // 16) * 16     # 16-aligned tile for bf16 packing
    M_PAD = ((M + TM - 1) // TM) * TM
    NM = M_PAD // TM

    frames_flat = frames.reshape(M, N_FFT)
    if M_PAD > M:
        frames_flat = jnp.pad(frames_flat, ((0, M_PAD - M), (0, 0)))
    frames_bf16 = frames_flat.astype(jnp.bfloat16)

    # --- constant DFT bases (bf16) / mel filterbank (f32), zero-padded to lane multiples ---
    n = np.arange(N_FFT)[:, None].astype(np.float64)
    kk = np.arange(N_BINS)[None, :].astype(np.float64)
    ang = 2.0 * np.pi * n * kk / N_FFT
    cosm = np.zeros((N_FFT, N_BINS_PAD), np.float32)
    sinm = np.zeros((N_FFT, N_BINS_PAD), np.float32)
    cosm[:, :N_BINS] = np.cos(ang)
    sinm[:, :N_BINS] = -np.sin(ang)
    melT = np.zeros((N_BINS_PAD, N_MELS_PAD), np.float32)
    melT[:N_BINS, :N_MELS] = mel_filterbank(sr, N_FFT, N_MELS).T

    cos_b = jnp.asarray(cosm, jnp.bfloat16)
    sin_b = jnp.asarray(sinm, jnp.bfloat16)
    mel_b = jnp.asarray(melT)

    # --- kernel 1: (M_PAD, NFFT) bf16 frames -> (M_PAD, N_MELS_PAD) f32 mel power ---
    mel_power = pl.pallas_call(
        dft_mel_kernel,
        out_shape=jax.ShapeDtypeStruct((M_PAD, N_MELS_PAD), jnp.float32),
        grid_spec=pltpu.PrefetchScalarGridSpec(
            num_scalar_prefetch=0,
            grid=(NM, NK),
            in_specs=[
                pl.BlockSpec((TM, N_FFT), lambda m, k: (m, 0)),         # frame tile (bf16)
                pl.BlockSpec((N_FFT, KB), lambda m, k: (0, k)),         # cos basis block (bf16)
                pl.BlockSpec((N_FFT, KB), lambda m, k: (0, k)),         # sin basis block (bf16)
                pl.BlockSpec((KB, N_MELS_PAD), lambda m, k: (k, 0)),    # mel fb block (f32)
            ],
            out_specs=pl.BlockSpec((TM, N_MELS_PAD), lambda m, k: (m, 0)),
            scratch_shapes=[pltpu.VMEM((TM, N_MELS_PAD), jnp.float32)],
        ),
        compiler_params=pltpu.CompilerParams(
            dimension_semantics=("parallel", "arbitrary"),
            vmem_limit_bytes=32 * 1024 * 1024),
    )(frames_bf16, cos_b, sin_b, mel_b)

    # drop M padding, restore per-sample layout for the per-sample epilogue
    mel_bfm = mel_power[:M].reshape(B, F, N_MELS_PAD)

    # --- kernel 2: power_to_db + per-band normalization, one sample per grid step ---
    feat = pl.pallas_call(
        logmel_norm_kernel,
        out_shape=jax.ShapeDtypeStruct((B, F, N_MELS_PAD), jnp.float32),
        grid_spec=pltpu.PrefetchScalarGridSpec(
            num_scalar_prefetch=0,
            grid=(B,),
            in_specs=[pl.BlockSpec((1, F, N_MELS_PAD), lambda b: (b, 0, 0))],
            out_specs=pl.BlockSpec((1, F, N_MELS_PAD), lambda b: (b, 0, 0)),
        ),
        compiler_params=pltpu.CompilerParams(
            dimension_semantics=("parallel",)),
    )(mel_bfm)

    # drop padded mel columns, back to librosa layout (n_mels, n_frames) -> (B, N_MELS, F)
    return jnp.transpose(feat[:, :, :N_MELS], (0, 2, 1))


if __name__ == "__main__":
    key = jax.random.PRNGKey(0)
    B, L = 2, 1600                                      # 0.1 s of 16 kHz audio per sample
    batch_audio = jax.random.normal(key, (B, L), dtype=jnp.float32) * 0.1
    batch_sr = jnp.full((B,), 16000, dtype=jnp.int32)

    out = audio_model_forward(batch_audio, batch_sr)
    out = jax.block_until_ready(out)

    expected_frames = 1 + L // HOP                      # librosa center=True frame count
    assert out.shape == (B, N_MELS, expected_frames), out.shape
    assert bool(jnp.all(jnp.isfinite(out)))
    print("KERNEL_OK")
</pallas_src>

<mosaic_0001>
module attributes {stable_mosaic.version = 11 : i64} {
  func.func @dft_mel_kernel(%arg0: i32, %arg1: i32, %arg2: memref<32x2048xbf16, #tpu.memory_space<vmem>>, %arg3: memref<2048x256xbf16, #tpu.memory_space<vmem>>, %arg4: memref<2048x256xbf16, #tpu.memory_space<vmem>>, %arg5: memref<256x128xf32, #tpu.memory_space<vmem>>, %arg6: memref<32x128xf32, #tpu.memory_space<vmem>>, %arg7: memref<32x128xf32, #tpu.memory_space<vmem>>) attributes {dimension_semantics = [#tpu.dimension_semantics<parallel>, #tpu.dimension_semantics<arbitrary>], iteration_bounds = array<i64: 1, 5>, scalar_prefetch = 0 : i64, scratch_operands = 1 : i64, tpu.core_type = #tpu.core_type<tc>, window_params = [{transform_indices = @transform_0, window_bounds = array<i64: 32, 2048>}, {transform_indices = @transform_1, window_bounds = array<i64: 2048, 256>}, {transform_indices = @transform_2, window_bounds = array<i64: 2048, 256>}, {transform_indices = @transform_3, window_bounds = array<i64: 256, 128>}, {transform_indices = @transform_4, window_bounds = array<i64: 32, 128>}]} {
    %c0_i32 = arith.constant 0 : i32
    %0 = arith.cmpi eq, %arg1, %c0_i32 : i32
    %1 = arith.extui %0 : i1 to i32
    %c0_i32_0 = arith.constant 0 : i32
    %2 = arith.cmpi ne, %1, %c0_i32_0 : i32
    scf.if %2 {
      %cst_15 = arith.constant 0.000000e+00 : f32
      %19 = vector.broadcast %cst_15 : f32 to vector<32x128xf32>
      %c0_16 = arith.constant 0 : index
      %c0_17 = arith.constant 0 : index
      %20 = vector.load %arg7[%c0_16, %c0_17] : memref<32x128xf32, #tpu.memory_space<vmem>>, vector<32x128xf32>
      tpu.vector_store %arg7[%c0_16, %c0_17], %19 {strides = array<i32>} : memref<32x128xf32, #tpu.memory_space<vmem>>, vector<32x128xf32>,
    } else {
    }
    %c0 = arith.constant 0 : index
    %c0_1 = arith.constant 0 : index
    %3 = vector.load %arg2[%c0, %c0_1] : memref<32x2048xbf16, #tpu.memory_space<vmem>>, vector<32x2048xbf16>
    %c0_2 = arith.constant 0 : index
    %c0_3 = arith.constant 0 : index
    %4 = vector.load %arg3[%c0_2, %c0_3] : memref<2048x256xbf16, #tpu.memory_space<vmem>>, vector<2048x256xbf16>
    %cst = arith.constant dense<0.000000e+00> : vector<32x256xf32>
    %5 = tpu.matmul %3, %4, %cst {dimension_numbers = #tpu.dot_dimension_numbers<[1], [0], [0], [1], [0, 0, 1, 1], [], []>} : vector<32x2048xbf16>, vector<2048x256xbf16>, vector<32x256xf32> -> vector<32x256xf32>
    %c0_4 = arith.constant 0 : index
    %c0_5 = arith.constant 0 : index
    %6 = vector.load %arg4[%c0_4, %c0_5] : memref<2048x256xbf16, #tpu.memory_space<vmem>>, vector<2048x256xbf16>
    %cst_6 = arith.constant dense<0.000000e+00> : vector<32x256xf32>
    %7 = tpu.matmul %3, %6, %cst_6 {dimension_numbers = #tpu.dot_dimension_numbers<[1], [0], [0], [1], [0, 0, 1, 1], [], []>} : vector<32x2048xbf16>, vector<2048x256xbf16>, vector<32x256xf32> -> vector<32x256xf32>
    %8 = arith.mulf %5, %5 : vector<32x256xf32>
    %9 = arith.mulf %7, %7 : vector<32x256xf32>
    %10 = arith.addf %8, %9 : vector<32x256xf32>
    %c0_7 = arith.constant 0 : index
    %c0_8 = arith.constant 0 : index
    %11 = vector.load %arg7[%c0_7, %c0_8] : memref<32x128xf32, #tpu.memory_space<vmem>>, vector<32x128xf32>
    %c0_9 = arith.constant 0 : index
    %c0_10 = arith.constant 0 : index
    %12 = vector.load %arg5[%c0_9, %c0_10] : memref<256x128xf32, #tpu.memory_space<vmem>>, vector<256x128xf32>
    %cst_11 = arith.constant dense<0.000000e+00> : vector<32x128xf32>
    %13 = tpu.matmul %10, %12, %cst_11 {dimension_numbers = #tpu.dot_dimension_numbers<[1], [0], [0], [1], [0, 0, 1, 1], [], []>} : vector<32x256xf32>, vector<256x128xf32>, vector<32x128xf32> -> vector<32x128xf32>
    %14 = arith.addf %11, %13 : vector<32x128xf32>
    %c0_12 = arith.constant 0 : index
    %c0_13 = arith.constant 0 : index
    %15 = vector.load %arg7[%c0_12, %c0_13] : memref<32x128xf32, #tpu.memory_space<vmem>>, vector<32x128xf32>
    tpu.vector_store %arg7[%c0_12, %c0_13], %14 {strides = array<i32>} : memref<32x128xf32, #tpu.memory_space<vmem>>, vector<32x128xf32>,
    %c4_i32 = arith.constant 4 : i32
    %16 = arith.cmpi eq, %arg1, %c4_i32 : i32
    %17 = arith.extui %16 : i1 to i32
    %c0_i32_14 = arith.constant 0 : i32
    %18 = arith.cmpi ne, %17, %c0_i32_14 : i32
    scf.if %18 {
      %c0_15 = arith.constant 0 : index
      %c0_16 = arith.constant 0 : index
      %19 = vector.load %arg7[%c0_15, %c0_16] : memref<32x128xf32, #tpu.memory_space<vmem>>, vector<32x128xf32>
      %c0_17 = arith.constant 0 : index
      %c0_18 = arith.constant 0 : index
      %20 = vector.load %arg6[%c0_17, %c0_18] : memref<32x128xf32, #tpu.memory_space<vmem>>, vector<32x128xf32>
      tpu.vector_store %arg6[%c0_17, %c0_18], %19 {strides = array<i32>} : memref<32x128xf32, #tpu.memory_space<vmem>>, vector<32x128xf32>,
    } else {
    }
    return
  }
  func.func @transform_0(%arg0: i32, %arg1: i32) -> (i32, i32) {
    %c0_i32 = arith.constant 0 : i32
    %c0_i32_0 = arith.constant 0 : i32
    return %arg0, %c0_i32 : i32, i32
  }
  func.func @transform_1(%arg0: i32, %arg1: i32) -> (i32, i32) {
    %c0_i32 = arith.constant 0 : i32
    %c0_i32_0 = arith.constant 0 : i32
    return %c0_i32, %arg1 : i32, i32
  }
  func.func @transform_2(%arg0: i32, %arg1: i32) -> (i32, i32) {
    %c0_i32 = arith.constant 0 : i32
    %c0_i32_0 = arith.constant 0 : i32
    return %c0_i32, %arg1 : i32, i32
  }
  func.func @transform_3(%arg0: i32, %arg1: i32) -> (i32, i32) {
    %c0_i32 = arith.constant 0 : i32
    %c0_i32_0 = arith.constant 0 : i32
    return %arg1, %c0_i32 : i32, i32
  }
  func.func @transform_4(%arg0: i32, %arg1: i32) -> (i32, i32) {
    %c0_i32 = arith.constant 0 : i32
    %c0_i32_0 = arith.constant 0 : i32
    return %arg0, %c0_i32 : i32, i32
  }
}

</mosaic_0001>

<llo_original>
// kernel: tpu_custom_call.1
$region0: #{tpu_custom_call.1}
  #allocation0 [shape = 'u32[]', space=smem, size = 0x4, offset = 0x4, fixed_abs, tag = 'smem constant byte address 0x4 - core index']
  #allocation1 [shape = 'u32[144,128]{1,0:T(1,128)}', space=vmem, size = 0x12000, scoped, tag = 'internal scratch']
  #allocation2 [shape = 'f32[32,128]{1,0:T(8,128)}', space=vmem, size = 0x4000, scoped, tag = 'scratch operand']
  %s0 = inlined_call_operand.hbm [shape: bf16[32,2048], index: 0, kind: input, shape index: {}]
  %s1 = inlined_call_operand.hbm [shape: bf16[2048,1280], index: 1, kind: input, shape index: {}]
  %s2 = inlined_call_operand.hbm [shape: bf16[2048,1280], index: 2, kind: input, shape index: {}]
  %s3 = inlined_call_operand.hbm [shape: f32[1280,128], index: 3, kind: input, shape index: {}]
  %s4 = inlined_call_operand.hbm [shape: f32[32,128], index: 4, kind: output, shape index: {}]
  %s5 = sld [smem:[#allocation0]]
  $region73: #{tpu_custom_call.1} parent=0
    _
  %s7 = ssub.s32 1, %s5
  %s8 = scalar_select 0, %s7, %s5
  $region1: #{tpu_custom_call.1} parent=0
    #allocation3 [shape = 'u8[131072]{0}', space=vmem, size = 0x20000, scoped, tag = 'input window, operand 0, single buffered']
    #allocation4 [shape = 's32[2]{0}', space=sflag, size = 0x8, scoped, tag = 'scoped memory for tpu_custom_call.1']
    #allocation5 [shape = 's32[2]{0}', space=sflag, size = 0x8, scoped, tag = 'scoped memory for tpu_custom_call.1']
    #allocation6 [shape = 'u8[2097152]{0}', space=vmem, size = 0x200000, scoped, tag = 'input window, operand 1']
    #allocation7 [shape = 's32[2]{0}', space=sflag, size = 0x8, scoped, tag = 'scoped memory for tpu_custom_call.1']
    #allocation8 [shape = 'u8[2097152]{0}', space=vmem, size = 0x200000, scoped, tag = 'input window, operand 2']
    #allocation9 [shape = 'u8[262144]{0}', space=vmem, size = 0x40000, scoped, tag = 'input window, operand 3']
    #allocation10 [shape = 's32[2]{0}', space=sflag, size = 0x8, scoped, tag = 'scoped memory for tpu_custom_call.1']
    #allocation11 [shape = 'u8[16384]{0}', space=vmem, size = 0x4000, scoped, tag = 'output window, operand 0, single buffered']
    %9 = vsyncpa [#allocation4], 0
    %10 = vsyncpa [#allocation7], 0
    %s11 = scalar_lea.sflag [#allocation7], 1
    %12 = vsyncpa %s11, 0
    %13 = vsyncpa [#allocation10], 0
    %s14 = scalar_lea.sflag [#allocation10], 1
    %15 = vsyncpa %s14, 0
    %16 = vsyncpa [#allocation5], 0
    loop: start=0, step=1, limit=7
    $region2: #{tpu_custom_call.1} parent=1 // loop_pre_header
      _
    $region3: #{tpu_custom_call.1} parent=1 // loop_header
      %s18 = sphi 0, %s22
      %p19 = scmp.ge.s32.totalorder %s18, 7
      %s25 = sphi 0, %s37
      %s26 = sphi 0, %s33
      %s27 = sphi 0, %s25
      %s28 = sphi 0, %s26
      %s29 = sphi 0, %s27
      %s30 = sphi 0, %s28
      %s40 = sphi 0, %s42
      %s43 = sphi 0, %s40
      %s44 = sphi 0, %s43
      %s60 = sphi 0, %s44
      %s66 = sphi 0, %s68
      %s69 = sphi 0, %s66
      %s70 = sphi 0, %s69
      %s86 = sphi 0, %s70
      %s92 = sphi 0, %s94
      %s95 = sphi 0, %s92
      %s96 = sphi 0, %s95
      %s112 = sphi 0, %s96
      %s118 = sphi 0, %s120
      %s121 = sphi 0, %s118
      %s122 = sphi 0, %s121
      %s138 = sphi 0, %s122
      %s144 = sphi 0, %s146
      %s147 = sphi 0, %s144
      %s148 = sphi 0, %s147
      %s164 = sphi 0, %s148
    $region4: #{tpu_custom_call.1} parent=1 // loop_header_branch
      %21 = sbr.rel (%p19) target = $region8
    $region5: #{tpu_custom_call.1} parent=1 // loop_body
      %s23 = ssub.s32 %s18, 1
      %s24 = ssub.s32 %s18, 2
      %s31 = sadd.s32 1, %s26
      %p32 = scmp.ge.s32.totalorder %s31, 5
      %s33 = scalar_select %p32, 0, %s31
      %s34 = sadd.s32 1, %s25
      %s35 = scalar_select %p32, %s34, %s25
      %p36 = scmp.ge.s32.totalorder %s35, 1
      %s37 = scalar_select %p36, 0, %s35
      %s38 = ssub.s32 %s25, %s37
      %p39 = scmp.eq.s32.totalorder %s38, 0
      %s41 = sadd.s32 %s40, 1
      %s42 = scalar_select %p39, %s40, %s41
      %p45 = pneg %p39
      %p46 = scmp.eq.s32.totalorder %s18, 4
      %p47 = por %p45, %p46
      %p48 = scmp.ne.s32.totalorder %s40, %s43
      %p49 = scmp.eq.s32.totalorder %s18, 0
      %p50 = por %p48, %p49
      %p51 = scmp.ne.s32.totalorder %s40, %s43
      %p52 = scmp.eq.s32.totalorder %s23, 4
      %p53 = por %p51, %p52
      %p54 = scmp.ne.s32.totalorder %s43, %s44
      %p55 = scmp.eq.s32.totalorder %s23, 0
      %p56 = por %p54, %p55
      %p57 = scmp.ne.s32.totalorder %s43, %s44
      %p58 = scmp.eq.s32.totalorder %s24, 4
      %p59 = por %p57, %p58
      %p61 = scmp.ne.s32.totalorder %s44, %s60
      %p62 = scmp.eq.s32.totalorder %s24, 0
      %p63 = por %p61, %p62
      %s64 = ssub.s32 %s26, %s33
      %p65 = scmp.eq.s32.totalorder %s64, 0
      %s67 = sadd.s32 %s66, 1
      %s68 = scalar_select %p65, %s66, %s67
      %p71 = pneg %p65
      %p72 = scmp.eq.s32.totalorder %s18, 4
      %p73 = por %p71, %p72
      %p74 = scmp.ne.s32.totalorder %s66, %s69
      %p75 = scmp.eq.s32.totalorder %s18, 0
      %p76 = por %p74, %p75
      %p77 = scmp.ne.s32.totalorder %s66, %s69
      %p78 = scmp.eq.s32.totalorder %s23, 4
      %p79 = por %p77, %p78
      %p80 = scmp.ne.s32.totalorder %s69, %s70
      %p81 = scmp.eq.s32.totalorder %s23, 0
      %p82 = por %p80, %p81
      %p83 = scmp.ne.s32.totalorder %s69, %s70
      %p84 = scmp.eq.s32.totalorder %s24, 4
      %p85 = por %p83, %p84
      %p87 = scmp.ne.s32.totalorder %s70, %s86
      %p88 = scmp.eq.s32.totalorder %s24, 0
      %p89 = por %p87, %p88
      %s90 = ssub.s32 %s26, %s33
      %p91 = scmp.eq.s32.totalorder %s90, 0
      %s93 = sadd.s32 %s92, 1
      %s94 = scalar_select %p91, %s92, %s93
      %p97 = pneg %p91
      %p98 = scmp.eq.s32.totalorder %s18, 4
      %p99 = por %p97, %p98
      %p100 = scmp.ne.s32.totalorder %s92, %s95
      %p101 = scmp.eq.s32.totalorder %s18, 0
      %p102 = por %p100, %p101
      %p103 = scmp.ne.s32.totalorder %s92, %s95
      %p104 = scmp.eq.s32.totalorder %s23, 4
      %p105 = por %p103, %p104
      %p106 = scmp.ne.s32.totalorder %s95, %s96
      %p107 = scmp.eq.s32.totalorder %s23, 0
      %p108 = por %p106, %p107
      %p109 = scmp.ne.s32.totalorder %s95, %s96
      %p110 = scmp.eq.s32.totalorder %s24, 4
      %p111 = por %p109, %p110
      %p113 = scmp.ne.s32.totalorder %s96, %s112
      %p114 = scmp.eq.s32.totalorder %s24, 0
      %p115 = por %p113, %p114
      %s116 = ssub.s32 %s26, %s33
      %p117 = scmp.eq.s32.totalorder %s116, 0
      %s119 = sadd.s32 %s118, 1
      %s120 = scalar_select %p117, %s118, %s119
      %p123 = pneg %p117
      %p124 = scmp.eq.s32.totalorder %s18, 4
      %p125 = por %p123, %p124
      %p126 = scmp.ne.s32.totalorder %s118, %s121
      %p127 = scmp.eq.s32.totalorder %s18, 0
      %p128 = por %p126, %p127
      %p129 = scmp.ne.s32.totalorder %s118, %s121
      %p130 = scmp.eq.s32.totalorder %s23, 4
      %p131 = por %p129, %p130
      %p132 = scmp.ne.s32.totalorder %s121, %s122
      %p133 = scmp.eq.s32.totalorder %s23, 0
      %p134 = por %p132, %p133
      %p135 = scmp.ne.s32.totalorder %s121, %s122
      %p136 = scmp.eq.s32.totalorder %s24, 4
      %p137 = por %p135, %p136
      %p139 = scmp.ne.s32.totalorder %s122, %s138
      %p140 = scmp.eq.s32.totalorder %s24, 0
      %p141 = por %p139, %p140
      %s142 = ssub.s32 %s25, %s37
      %p143 = scmp.eq.s32.totalorder %s142, 0
      %s145 = sadd.s32 %s144, 1
      %s146 = scalar_select %p143, %s144, %s145
      %p149 = pneg %p143
      %p150 = scmp.eq.s32.totalorder %s18, 4
      %p151 = por %p149, %p150
      %p152 = scmp.ne.s32.totalorder %s144, %s147
      %p153 = scmp.eq.s32.totalorder %s18, 0
      %p154 = por %p152, %p153
      %p155 = scmp.ne.s32.totalorder %s144, %s147
      %p156 = scmp.eq.s32.totalorder %s23, 4
      %p157 = por %p155, %p156
      %p158 = scmp.ne.s32.totalorder %s147, %s148
      %p159 = scmp.eq.s32.totalorder %s23, 0
      %p160 = por %p158, %p159
      %p161 = scmp.ne.s32.totalorder %s147, %s148
      %p162 = scmp.eq.s32.totalorder %s24, 4
      %p163 = por %p161, %p162
      %p165 = scmp.ne.s32.totalorder %s148, %s164
      %p166 = scmp.eq.s32.totalorder %s24, 0
      %p167 = por %p165, %p166
      %p168 = scmp.le.s32.totalorder 1, %s18
      %p169 = scmp.lt.s32.totalorder %s18, 6
      %p170 = pnand %p168, %p169
      %p171 = pneg %p170
      // Predicated region
      $region9: #{tpu_custom_call.1} parent=5 // pred_check
        _
      $region10: #{tpu_custom_call.1} parent=5 // pred_check_branch
        %173 = sbr.rel (%p170) target = $region12
      $region11: #{tpu_custom_call.1} parent=5 // pred_region
        %s174 = ssub.s32 %s18, 1
        // Predicated region
        $region13: #{tpu_custom_call.1} parent=11 // pred_check
          %p175 = pneg %p56
        $region14: #{tpu_custom_call.1} parent=11 // pred_check_branch
          %177 = sbr.rel (%p175) target = $region16
        $region15: #{tpu_custom_call.1} parent=11 // pred_region
          %s178 = smul.u32 4, %s27
          %s180 = ssub.s32 4096, 4096
          %181 = vsyncadd [#allocation4], %s180
          %s182 = smul.addr %s178, 16
          %s183 = smul.addr %s182, 64
          %s184 = scalar_lea.hbm %s0, %s183
          %s185 = sshll.u32 [#allocation3], 4
          %s186 = int_to_ptr.vmem [resolvable:$true] %s185
          %191 = dma.hbm_to_vmem [thread:$0]  %s184, 4096, %s186, [#allocation4], 1024, 1024, 64
        $region16: #{tpu_custom_call.1} parent=11 // pred_fallthru
          _
      $region12: #{tpu_custom_call.1} parent=5 // pred_fallthru
        _
      %p192 = scmp.lt.s32.totalorder %s18, 5
      // Predicated region
      $region17: #{tpu_custom_call.1} parent=5 // pred_check
        %p193 = pneg %p192
      $region18: #{tpu_custom_call.1} parent=5 // pred_check_branch
        %195 = sbr.rel (%p193) target = $region20
      $region19: #{tpu_custom_call.1} parent=5 // pred_region
        // Predicated region
        $region21: #{tpu_custom_call.1} parent=19 // pred_check
          %p196 = pneg %p76
        $region22: #{tpu_custom_call.1} parent=19 // pred_check_branch
          %198 = sbr.rel (%p196) target = $region24
        $region23: #{tpu_custom_call.1} parent=19 // pred_region
          %s199 = sand.u32 %s18, 1
          %s200 = scalar_lea.sflag [#allocation7], %s199
          %s201 = sand.u32 %s66, 1
          %s202 = smul.addr %s201, 2048
          %s203 = scalar_lea.vmem [#allocation6], %s202
          %s204 = smul.u32 2, %s26
          %s206 = ssub.s32 32768, 32768
          %207 = vsyncadd %s200, %s206
          %s208 = smul.addr %s204, 64
          %s209 = scalar_lea.hbm %s1, %s208
          %s210 = sshll.u32 %s203, 4
          %s211 = int_to_ptr.vmem [resolvable:$true] %s210
          %216 = dma.hbm_to_vmem [thread:$0]  %s209, 32768, %s211, %s200, 640, 128, 8
        $region24: #{tpu_custom_call.1} parent=19 // pred_fallthru
          _
        // Predicated region
        $region25: #{tpu_custom_call.1} parent=19 // pred_check
          %p217 = pneg %p102
        $region26: #{tpu_custom_call.1} parent=19 // pred_check_branch
          %219 = sbr.rel (%p217) target = $region28
        $region27: #{tpu_custom_call.1} parent=19 // pred_region
          %s220 = sand.u32 %s18, 1
          %s221 = scalar_lea.sflag [#allocation7], %s220
          %s222 = sand.u32 %s92, 1
          %s223 = smul.addr %s222, 2048
          %s224 = scalar_lea.vmem [#allocation8], %s223
          %s225 = smul.u32 2, %s26
          %s227 = ssub.s32 32768, 32768
          %228 = vsyncadd %s221, %s227
          %s229 = smul.addr %s225, 64
          %s230 = scalar_lea.hbm %s2, %s229
          %s231 = sshll.u32 %s224, 4
          %s232 = int_to_ptr.vmem [resolvable:$true] %s231
          %237 = dma.hbm_to_vmem [thread:$0]  %s230, 32768, %s232, %s221, 640, 128, 8
        $region28: #{tpu_custom_call.1} parent=19 // pred_fallthru
          _
        // Predicated region
        $region29: #{tpu_custom_call.1} parent=19 // pred_check
          %p238 = pneg %p128
        $region30: #{tpu_custom_call.1} parent=19 // pred_check_branch
          %240 = sbr.rel (%p238) target = $region32
        $region31: #{tpu_custom_call.1} parent=19 // pred_region
          %s241 = sand.u32 %s118, 1
          %s242 = scalar_lea.sflag [#allocation10], %s241
          %s243 = sand.u32 %s118, 1
          %s244 = smul.addr %s243, 256
          %s245 = scalar_lea.vmem [#allocation9], %s244
          %s246 = smul.u32 32, %s26
          %s248 = ssub.s32 4096, 4096
          %249 = vsyncadd %s242, %s248
          %s250 = smul.addr %s246, 128
          %s251 = scalar_lea.hbm %s3, %s250
          %s252 = sshll.u32 %s245, 4
          %s253 = int_to_ptr.vmem [resolvable:$true] %s252
          %258 = dma.hbm_to_vmem [thread:$0]  %s251, 4096, %s253, %s242, 128, 128, 8
        $region32: #{tpu_custom_call.1} parent=19 // pred_fallthru
          _
      $region20: #{tpu_custom_call.1} parent=5 // pred_fallthru
        _
      %p259 = scmp.le.s32.totalorder 1, %s18
      %p260 = scmp.lt.s32.totalorder %s18, 6
      %p261 = pnand %p259, %p260
      %p262 = pneg %p261
      // Predicated region
      $region33: #{tpu_custom_call.1} parent=5 // pred_check
        _
      $region34: #{tpu_custom_call.1} parent=5 // pred_check_branch
        %264 = sbr.rel (%p261) target = $region36
      $region35: #{tpu_custom_call.1} parent=5 // pred_region
        %s265 = ssub.s32 %s18, 1
        // Predicated region
        $region37: #{tpu_custom_call.1} parent=35 // pred_check
          %p266 = pneg %p56
        $region38: #{tpu_custom_call.1} parent=35 // pred_check_branch
          %268 = sbr.rel (%p266) target = $region40
        $region39: #{tpu_custom_call.1} parent=35 // pred_region
          %269 = dma.done [#allocation4], 4096
        $region40: #{tpu_custom_call.1} parent=35 // pred_fallthru
          _
        %s270 = sand.u32 %s23, 1
        %s271 = scalar_lea.sflag [#allocation7], %s270
        %s272 = sand.u32 %s69, 1
        %s273 = smul.addr %s272, 2048
        %s274 = scalar_lea.vmem [#allocation6], %s273
        // Predicated region
        $region41: #{tpu_custom_call.1} parent=35 // pred_check
          %p275 = pneg %p82
        $region42: #{tpu_custom_call.1} parent=35 // pred_check_branch
          %277 = sbr.rel (%p275) target = $region44
        $region43: #{tpu_custom_call.1} parent=35 // pred_region
          %278 = dma.done %s271, 32768
        $region44: #{tpu_custom_call.1} parent=35 // pred_fallthru
          _
        %s279 = sand.u32 %s23, 1
        %s280 = scalar_lea.sflag [#allocation7], %s279
        %s281 = sand.u32 %s95, 1
        %s282 = smul.addr %s281, 2048
        %s283 = scalar_lea.vmem [#allocation8], %s282
        // Predicated region
        $region45: #{tpu_custom_call.1} parent=35 // pred_check
          %p284 = pneg %p108
        $region46: #{tpu_custom_call.1} parent=35 // pred_check_branch
          %286 = sbr.rel (%p284) target = $region48
        $region47: #{tpu_custom_call.1} parent=35 // pred_region
          %287 = dma.done %s280, 32768
        $region48: #{tpu_custom_call.1} parent=35 // pred_fallthru
          _
        %s288 = sand.u32 %s121, 1
        %s289 = scalar_lea.sflag [#allocation10], %s288
        %s290 = sand.u32 %s121, 1
        %s291 = smul.addr %s290, 256
        %s292 = scalar_lea.vmem [#allocation9], %s291
        // Predicated region
        $region49: #{tpu_custom_call.1} parent=35 // pred_check
          %p293 = pneg %p134
        $region50: #{tpu_custom_call.1} parent=35 // pred_check_branch
          %295 = sbr.rel (%p293) target = $region52
        $region51: #{tpu_custom_call.1} parent=35 // pred_region
          %296 = dma.done %s289, 4096
        $region52: #{tpu_custom_call.1} parent=35 // pred_fallthru
          _
        %p297 = pneg %p56
        %p298 = pneg %p53
        %s299 = sand.u32 %s23, 1
        %s300 = scalar_lea.sflag [#allocation7], %s299
        %s301 = sand.u32 %s69, 1
        %s302 = smul.addr %s301, 2048
        %s303 = scalar_lea.vmem [#allocation6], %s302
        %p304 = pneg %p82
        %p305 = pneg %p79
        %s306 = sand.u32 %s23, 1
        %s307 = scalar_lea.sflag [#allocation7], %s306
        %s308 = sand.u32 %s95, 1
        %s309 = smul.addr %s308, 2048
        %s310 = scalar_lea.vmem [#allocation8], %s309
        %p311 = pneg %p108
        %p312 = pneg %p105
        %s313 = sand.u32 %s121, 1
        %s314 = scalar_lea.sflag [#allocation10], %s313
        %s315 = sand.u32 %s121, 1
        %s316 = smul.addr %s315, 256
        %s317 = scalar_lea.vmem [#allocation9], %s316
        %p318 = pneg %p134
        %p319 = pneg %p131
        %p320 = pneg %p160
        %p321 = pneg %p157
        %s322 = smul.u32 4, %s27
        %s323 = smul.u32 2, %s28
        %s324 = smul.u32 2, %s28
        %s325 = smul.u32 32, %s28
        %s326 = smul.u32 4, %s27
        %p327 = scmp.eq.s32.totalorder %s28, 0
        // Predicated region
        $region53: #{tpu_custom_call.1} parent=35 // pred_check
          %p328 = pneg %p327
        $region54: #{tpu_custom_call.1} parent=35 // pred_check_branch
          %330 = sbr.rel (%p328) target = $region56
        $region55: #{tpu_custom_call.1} parent=35 // pred_region
          %331 = vst [vmem:[#allocation2] sm:$0xff] 0.0
          %332 = vst [vmem:[#allocation2 + $0x8] sm:$0xff] 0.0
          %333 = vst [vmem:[#allocation2 + $0x10] sm:$0xff] 0.0
          %334 = vst [vmem:[#allocation2 + $0x18] sm:$0xff] 0.0
        $region56: #{tpu_custom_call.1} parent=35 // pred_fallthru
          _
        %v335 = vld [vmem:[#allocation3] sm:$0xff]
        %v336 = vld [vmem:[#allocation3 + $0x8] sm:$0xff]
        %v337 = vld [vmem:[#allocation3 + $0x10] sm:$0xff]
        %v338 = vld [vmem:[#allocation3 + $0x18] sm:$0xff]
        %v339 = vld [vmem:[#allocation3 + $0x20] sm:$0xff]
        %v340 = vld [vmem:[#allocation3 + $0x28] sm:$0xff]
        %v341 = vld [vmem:[#allocation3 + $0x30] sm:$0xff]
        %v342 = vld [vmem:[#allocation3 + $0x38] sm:$0xff]
        %v343 = vld [vmem:[#allocation3 + $0x40] sm:$0xff]
        %v344 = vld [vmem:[#allocation3 + $0x48] sm:$0xff]
        %v345 = vld [vmem:[#allocation3 + $0x50] sm:$0xff]
        %v346 = vld [vmem:[#allocation3 + $0x58] sm:$0xff]
        %v347 = vld [vmem:[#allocation3 + $0x60] sm:$0xff]
        %v348 = vld [vmem:[#allocation3 + $0x68] sm:$0xff]
        %v349 = vld [vmem:[#allocation3 + $0x70] sm:$0xff]
        %v350 = vld [vmem:[#allocation3 + $0x78] sm:$0xff]
        %v351 = vld [vmem:[#allocation3 + $0x80] sm:$0xff]
        %v352 = vld [vmem:[#allocation3 + $0x88] sm:$0xff]
        %v353 = vld [vmem:[#allocation3 + $0x90] sm:$0xff]
        %v354 = vld [vmem:[#allocation3 + $0x98] sm:$0xff]
        %v355 = vld [vmem:[#allocation3 + $0xa0] sm:$0xff]
        %v356 = vld [vmem:[#allocation3 + $0xa8] sm:$0xff]
        %v357 = vld [vmem:[#allocation3 + $0xb0] sm:$0xff]
        %v358 = vld [vmem:[#allocation3 + $0xb8] sm:$0xff]
        %v359 = vld [vmem:[#allocation3 + $0xc0] sm:$0xff]
        %v360 = vld [vmem:[#allocation3 + $0xc8] sm:$0xff]
        %v361 = vld [vmem:[#allocation3 + $0xd0] sm:$0xff]
        %v362 = vld [vmem:[#allocation3 + $0xd8] sm:$0xff]
        %v363 = vld [vmem:[#allocation3 + $0xe0] sm:$0xff]
        %v364 = vld [vmem:[#allocation3 + $0xe8] sm:$0xff]
        %v365 = vld [vmem:[#allocation3 + $0xf0] sm:$0xff]
        %v366 = vld [vmem:[#allocation3 + $0xf8] sm:$0xff]
        %v367 = vld [vmem:[%s274] sm:$0xff]
        %v368 = vld [vmem:[%s274 + $0x8] sm:$0xff]
        %v369 = vld [vmem:[%s274 + $0x10] sm:$0xff]
        %v370 = vld [vmem:[%s274 + $0x18] sm:$0xff]
        %v371 = vld [vmem:[%s274 + $0x20] sm:$0xff]
        %v372 = vld [vmem:[%s274 + $0x28] sm:$0xff]
        %v373 = vld [vmem:[%s274 + $0x30] sm:$0xff]
        %v374 = vld [vmem:[%s274 + $0x38] sm:$0xff]
        %v375 = vld [vmem:[%s274 + $0x40] sm:$0xff]
        %v376 = vld [vmem:[%s274 + $0x48] sm:$0xff]
        %v377 = vld [vmem:[%s274 + $0x50] sm:$0xff]
        %v378 = vld [vmem:[%s274 + $0x58] sm:$0xff]
        %v379 = vld [vmem:[%s274 + $0x60] sm:$0xff]
        %v380 = vld [vmem:[%s274 + $0x68] sm:$0xff]
        %v381 = vld [vmem:[%s274 + $0x70] sm:$0xff]
        %v382 = vld [vmem:[%s274 + $0x78] sm:$0xff]
        %v383 = vld [vmem:[%s274 + $0x80] sm:$0xff]
        %v384 = vld [vmem:[%s274 + $0x88] sm:$0xff]
        %v385 = vld [vmem:[%s274 + $0x90] sm:$0xff]
        %v386 = vld [vmem:[%s274 + $0x98] sm:$0xff]
        %v387 = vld [vmem:[%s274 + $0xa0] sm:$0xff]
        %v388 = vld [vmem:[%s274 + $0xa8] sm:$0xff]
        %v389 = vld [vmem:[%s274 + $0xb0] sm:$0xff]
        %v390 = vld [vmem:[%s274 + $0xb8] sm:$0xff]
        %v391 = vld [vmem:[%s274 + $0xc0] sm:$0xff]
        %v392 = vld [vmem:[%s274 + $0xc8] sm:$0xff]
        %v393 = vld [vmem:[%s274 + $0xd0] sm:$0xff]
        %v394 = vld [vmem:[%s274 + $0xd8] sm:$0xff]
        %v395 = vld [vmem:[%s274 + $0xe0] sm:$0xff]
        %v396 = vld [vmem:[%s274 + $0xe8] sm:$0xff]
        %v397 = vld [vmem:[%s274 + $0xf0] sm:$0xff]
        %v398 = vld [vmem:[%s274 + $0xf8] sm:$0xff]
        %v399 = vld [vmem:[%s274 + $0x100] sm:$0xff]
        %v400 = vld [vmem:[%s274 + $0x108] sm:$0xff]
        %v401 = vld [vmem:[%s274 + $0x110] sm:$0xff]
        %v402 = vld [vmem:[%s274 + $0x118] sm:$0xff]
        %v403 = vld [vmem:[%s274 + $0x120] sm:$0xff]
        %v404 = vld [vmem:[%s274 + $0x128] sm:$0xff]
        %v405 = vld [vmem:[%s274 + $0x130] sm:$0xff]
        %v406 = vld [vmem:[%s274 + $0x138] sm:$0xff]
        %v407 = vld [vmem:[%s274 + $0x140] sm:$0xff]
        %v408 = vld [vmem:[%s274 + $0x148] sm:$0xff]
        %v409 = vld [vmem:[%s274 + $0x150] sm:$0xff]
        %v410 = vld [vmem:[%s274 + $0x158] sm:$0xff]
        %v411 = vld [vmem:[%s274 + $0x160] sm:$0xff]
        %v412 = vld [vmem:[%s274 + $0x168] sm:$0xff]
        %v413 = vld [vmem:[%s274 + $0x170] sm:$0xff]
        %v414 = vld [vmem:[%s274 + $0x178] sm:$0xff]
        %v415 = vld [vmem:[%s274 + $0x180] sm:$0xff]
        %v416 = vld [vmem:[%s274 + $0x188] sm:$0xff]
        %v417 = vld [vmem:[%s274 + $0x190] sm:$0xff]
        %v418 = vld [vmem:[%s274 + $0x198] sm:$0xff]
        %v419 = vld [vmem:[%s274 + $0x1a0] sm:$0xff]
        %v420 = vld [vmem:[%s274 + $0x1a8] sm:$0xff]
        %v421 = vld [vmem:[%s274 + $0x1b0] sm:$0xff]
        %v422 = vld [vmem:[%s274 + $0x1b8] sm:$0xff]
        %v423 = vld [vmem:[%s274 + $0x1c0] sm:$0xff]
        %v424 = vld [vmem:[%s274 + $0x1c8] sm:$0xff]
        %v425 = vld [vmem:[%s274 + $0x1d0] sm:$0xff]
        %v426 = vld [vmem:[%s274 + $0x1d8] sm:$0xff]
        %v427 = vld [vmem:[%s274 + $0x1e0] sm:$0xff]
        %v428 = vld [vmem:[%s274 + $0x1e8] sm:$0xff]
        %v429 = vld [vmem:[%s274 + $0x1f0] sm:$0xff]
        %v430 = vld [vmem:[%s274 + $0x1f8] sm:$0xff]
        %v431 = vld [vmem:[%s274 + $0x200] sm:$0xff]
        %v432 = vld [vmem:[%s274 + $0x208] sm:$0xff]
        %v433 = vld [vmem:[%s274 + $0x210] sm:$0xff]
        %v434 = vld [vmem:[%s274 + $0x218] sm:$0xff]
        %v435 = vld [vmem:[%s274 + $0x220] sm:$0xff]
        %v436 = vld [vmem:[%s274 + $0x228] sm:$0xff]
        %v437 = vld [vmem:[%s274 + $0x230] sm:$0xff]
        %v438 = vld [vmem:[%s274 + $0x238] sm:$0xff]
        %v439 = vld [vmem:[%s274 + $0x240] sm:$0xff]
        %v440 = vld [vmem:[%s274 + $0x248] sm:$0xff]
        %v441 = vld [vmem:[%s274 + $0x250] sm:$0xff]
        %v442 = vld [vmem:[%s274 + $0x258] sm:$0xff]
        %v443 = vld [vmem:[%s274 + $0x260] sm:$0xff]
        %v444 = vld [vmem:[%s274 + $0x268] sm:$0xff]
        %v445 = vld [vmem:[%s274 + $0x270] sm:$0xff]
        %v446 = vld [vmem:[%s274 + $0x278] sm:$0xff]
        %v447 = vld [vmem:[%s274 + $0x280] sm:$0xff]
        %v448 = vld [vmem:[%s274 + $0x288] sm:$0xff]
        %v449 = vld [vmem:[%s274 + $0x290] sm:$0xff]
        %v450 = vld [vmem:[%s274 + $0x298] sm:$0xff]
        %v451 = vld [vmem:[%s274 + $0x2a0] sm:$0xff]
        %v452 = vld [vmem:[%s274 + $0x2a8] sm:$0xff]
        %v453 = vld [vmem:[%s274 + $0x2b0] sm:$0xff]
        %v454 = vld [vmem:[%s274 + $0x2b8] sm:$0xff]
        %v455 = vld [vmem:[%s274 + $0x2c0] sm:$0xff]
        %v456 = vld [vmem:[%s274 + $0x2c8] sm:$0xff]
        %v457 = vld [vmem:[%s274 + $0x2d0] sm:$0xff]
        %v458 = vld [vmem:[%s274 + $0x2d8] sm:$0xff]
        %v459 = vld [vmem:[%s274 + $0x2e0] sm:$0xff]
        %v460 = vld [vmem:[%s274 + $0x2e8] sm:$0xff]
        %v461 = vld [vmem:[%s274 + $0x2f0] sm:$0xff]
        %v462 = vld [vmem:[%s274 + $0x2f8] sm:$0xff]
        %v463 = vld [vmem:[%s274 + $0x300] sm:$0xff]
        %v464 = vld [vmem:[%s274 + $0x308] sm:$0xff]
        %v465 = vld [vmem:[%s274 + $0x310] sm:$0xff]
        %v466 = vld [vmem:[%s274 + $0x318] sm:$0xff]
        %v467 = vld [vmem:[%s274 + $0x320] sm:$0xff]
        %v468 = vld [vmem:[%s274 + $0x328] sm:$0xff]
        %v469 = vld [vmem:[%s274 + $0x330] sm:$0xff]
        %v470 = vld [vmem:[%s274 + $0x338] sm:$0xff]
        %v471 = vld [vmem:[%s274 + $0x340] sm:$0xff]
        %v472 = vld [vmem:[%s274 + $0x348] sm:$0xff]
        %v473 = vld [vmem:[%s274 + $0x350] sm:$0xff]
        %v474 = vld [vmem:[%s274 + $0x358] sm:$0xff]
        %v475 = vld [vmem:[%s274 + $0x360] sm:$0xff]
        %v476 = vld [vmem:[%s274 + $0x368] sm:$0xff]
        %v477 = vld [vmem:[%s274 + $0x370] sm:$0xff]
        %v478 = vld [vmem:[%s274 + $0x378] sm:$0xff]
        %v479 = vld [vmem:[%s274 + $0x380] sm:$0xff]
        %v480 = vld [vmem:[%s274 + $0x388] sm:$0xff]
        %v481 = vld [vmem:[%s274 + $0x390] sm:$0xff]
        %v482 = vld [vmem:[%s274 + $0x398] sm:$0xff]
        %v483 = vld [vmem:[%s274 + $0x3a0] sm:$0xff]
        %v484 = vld [vmem:[%s274 + $0x3a8] sm:$0xff]
        %v485 = vld [vmem:[%s274 + $0x3b0] sm:$0xff]
        %v486 = vld [vmem:[%s274 + $0x3b8] sm:$0xff]
        %v487 = vld [vmem:[%s274 + $0x3c0] sm:$0xff]
        %v488 = vld [vmem:[%s274 + $0x3c8] sm:$0xff]
        %v489 = vld [vmem:[%s274 + $0x3d0] sm:$0xff]
        %v490 = vld [vmem:[%s274 + $0x3d8] sm:$0xff]
        %v491 = vld [vmem:[%s274 + $0x3e0] sm:$0xff]
        %v492 = vld [vmem:[%s274 + $0x3e8] sm:$0xff]
        %v493 = vld [vmem:[%s274 + $0x3f0] sm:$0xff]
        %v494 = vld [vmem:[%s274 + $0x3f8] sm:$0xff]
        %v495 = vld [vmem:[%s274 + $0x400] sm:$0xff]
        %v496 = vld [vmem:[%s274 + $0x408] sm:$0xff]
        %v497 = vld [vmem:[%s274 + $0x410] sm:$0xff]
        %v498 = vld [vmem:[%s274 + $0x418] sm:$0xff]
        %v499 = vld [vmem:[%s274 + $0x420] sm:$0xff]
        %v500 = vld [vmem:[%s274 + $0x428] sm:$0xff]
        %v501 = vld [vmem:[%s274 + $0x430] sm:$0xff]
        %v502 = vld [vmem:[%s274 + $0x438] sm:$0xff]
        %v503 = vld [vmem:[%s274 + $0x440] sm:$0xff]
        %v504 = vld [vmem:[%s274 + $0x448] sm:$0xff]
        %v505 = vld [vmem:[%s274 + $0x450] sm:$0xff]
        %v506 = vld [vmem:[%s274 + $0x458] sm:$0xff]
        %v507 = vld [vmem:[%s274 + $0x460] sm:$0xff]
        %v508 = vld [vmem:[%s274 + $0x468] sm:$0xff]
        %v509 = vld [vmem:[%s274 + $0x470] sm:$0xff]
        %v510 = vld [vmem:[%s274 + $0x478] sm:$0xff]
        %v511 = vld [vmem:[%s274 + $0x480] sm:$0xff]
        %v512 = vld [vmem:[%s274 + $0x488] sm:$0xff]
        %v513 = vld [vmem:[%s274 + $0x490] sm:$0xff]
        %v514 = vld [vmem:[%s274 + $0x498] sm:$0xff]
        %v515 = vld [vmem:[%s274 + $0x4a0] sm:$0xff]
        %v516 = vld [vmem:[%s274 + $0x4a8] sm:$0xff]
        %v517 = vld [vmem:[%s274 + $0x4b0] sm:$0xff]
        %v518 = vld [vmem:[%s274 + $0x4b8] sm:$0xff]
        %v519 = vld [vmem:[%s274 + $0x4c0] sm:$0xff]
        %v520 = vld [vmem:[%s274 + $0x4c8] sm:$0xff]
        %v521 = vld [vmem:[%s274 + $0x4d0] sm:$0xff]
        %v522 = vld [vmem:[%s274 + $0x4d8] sm:$0xff]
        %v523 = vld [vmem:[%s274 + $0x4e0] sm:$0xff]
        %v524 = vld [vmem:[%s274 + $0x4e8] sm:$0xff]
        %v525 = vld [vmem:[%s274 + $0x4f0] sm:$0xff]
        %v526 = vld [vmem:[%s274 + $0x4f8] sm:$0xff]
        %v527 = vld [vmem:[%s274 + $0x500] sm:$0xff]
        %v528 = vld [vmem:[%s274 + $0x508] sm:$0xff]
        %v529 = vld [vmem:[%s274 + $0x510] sm:$0xff]
        %v530 = vld [vmem:[%s274 + $0x518] sm:$0xff]
        %v531 = vld [vmem:[%s274 + $0x520] sm:$0xff]
        %v532 = vld [vmem:[%s274 + $0x528] sm:$0xff]
        %v533 = vld [vmem:[%s274 + $0x530] sm:$0xff]
        %v534 = vld [vmem:[%s274 + $0x538] sm:$0xff]
        %v535 = vld [vmem:[%s274 + $0x540] sm:$0xff]
        %v536 = vld [vmem:[%s274 + $0x548] sm:$0xff]
        %v537 = vld [vmem:[%s274 + $0x550] sm:$0xff]
        %v538 = vld [vmem:[%s274 + $0x558] sm:$0xff]
        %v539 = vld [vmem:[%s274 + $0x560] sm:$0xff]
        %v540 = vld [vmem:[%s274 + $0x568] sm:$0xff]
        %v541 = vld [vmem:[%s274 + $0x570] sm:$0xff]
        %v542 = vld [vmem:[%s274 + $0x578] sm:$0xff]
        %v543 = vld [vmem:[%s274 + $0x580] sm:$0xff]
        %v544 = vld [vmem:[%s274 + $0x588] sm:$0xff]
        %v545 = vld [vmem:[%s274 + $0x590] sm:$0xff]
        %v546 = vld [vmem:[%s274 + $0x598] sm:$0xff]
        %v547 = vld [vmem:[%s274 + $0x5a0] sm:$0xff]
        %v548 = vld [vmem:[%s274 + $0x5a8] sm:$0xff]
        %v549 = vld [vmem:[%s274 + $0x5b0] sm:$0xff]
        %v550 = vld [vmem:[%s274 + $0x5b8] sm:$0xff]
        %v551 = vld [vmem:[%s274 + $0x5c0] sm:$0xff]
        %v552 = vld [vmem:[%s274 + $0x5c8] sm:$0xff]
        %v553 = vld [vmem:[%s274 + $0x5d0] sm:$0xff]
        %v554 = vld [vmem:[%s274 + $0x5d8] sm:$0xff]
        %v555 = vld [vmem:[%s274 + $0x5e0] sm:$0xff]
        %v556 = vld [vmem:[%s274 + $0x5e8] sm:$0xff]
        %v557 = vld [vmem:[%s274 + $0x5f0] sm:$0xff]
        %v558 = vld [vmem:[%s274 + $0x5f8] sm:$0xff]
        %v559 = vld [vmem:[%s274 + $0x600] sm:$0xff]
        %v560 = vld [vmem:[%s274 + $0x608] sm:$0xff]
        %v561 = vld [vmem:[%s274 + $0x610] sm:$0xff]
        %v562 = vld [vmem:[%s274 + $0x618] sm:$0xff]
        %v563 = vld [vmem:[%s274 + $0x620] sm:$0xff]
        %v564 = vld [vmem:[%s274 + $0x628] sm:$0xff]
        %v565 = vld [vmem:[%s274 + $0x630] sm:$0xff]
        %v566 = vld [vmem:[%s274 + $0x638] sm:$0xff]
        %v567 = vld [vmem:[%s274 + $0x640] sm:$0xff]
        %v568 = vld [vmem:[%s274 + $0x648] sm:$0xff]
        %v569 = vld [vmem:[%s274 + $0x650] sm:$0xff]
        %v570 = vld [vmem:[%s274 + $0x658] sm:$0xff]
        %v571 = vld [vmem:[%s274 + $0x660] sm:$0xff]
        %v572 = vld [vmem:[%s274 + $0x668] sm:$0xff]
        %v573 = vld [vmem:[%s274 + $0x670] sm:$0xff]
        %v574 = vld [vmem:[%s274 + $0x678] sm:$0xff]
        %v575 = vld [vmem:[%s274 + $0x680] sm:$0xff]
        %v576 = vld [vmem:[%s274 + $0x688] sm:$0xff]
        %v577 = vld [vmem:[%s274 + $0x690] sm:$0xff]
        %v578 = vld [vmem:[%s274 + $0x698] sm:$0xff]
        %v579 = vld [vmem:[%s274 + $0x6a0] sm:$0xff]
        %v580 = vld [vmem:[%s274 + $0x6a8] sm:$0xff]
        %v581 = vld [vmem:[%s274 + $0x6b0] sm:$0xff]
        %v582 = vld [vmem:[%s274 + $0x6b8] sm:$0xff]
        %v583 = vld [vmem:[%s274 + $0x6c0] sm:$0xff]
        %v584 = vld [vmem:[%s274 + $0x6c8] sm:$0xff]
        %v585 = vld [vmem:[%s274 + $0x6d0] sm:$0xff]
        %v586 = vld [vmem:[%s274 + $0x6d8] sm:$0xff]
        %v587 = vld [vmem:[%s274 + $0x6e0] sm:$0xff]
        %v588 = vld [vmem:[%s274 + $0x6e8] sm:$0xff]
        %v589 = vld [vmem:[%s274 + $0x6f0] sm:$0xff]
        %v590 = vld [vmem:[%s274 + $0x6f8] sm:$0xff]
        %v591 = vld [vmem:[%s274 + $0x700] sm:$0xff]
        %v592 = vld [vmem:[%s274 + $0x708] sm:$0xff]
        %v593 = vld [vmem:[%s274 + $0x710] sm:$0xff]
        %v594 = vld [vmem:[%s274 + $0x718] sm:$0xff]
        %v595 = vld [vmem:[%s274 + $0x720] sm:$0xff]
        %v596 = vld [vmem:[%s274 + $0x728] sm:$0xff]
        %v597 = vld [vmem:[%s274 + $0x730] sm:$0xff]
        %v598 = vld [vmem:[%s274 + $0x738] sm:$0xff]
        %v599 = vld [vmem:[%s274 + $0x740] sm:$0xff]
        %v600 = vld [vmem:[%s274 + $0x748] sm:$0xff]
        %v601 = vld [vmem:[%s274 + $0x750] sm:$0xff]
        %v602 = vld [vmem:[%s274 + $0x758] sm:$0xff]
        %v603 = vld [vmem:[%s274 + $0x760] sm:$0xff]
        %v604 = vld [vmem:[%s274 + $0x768] sm:$0xff]
        %v605 = vld [vmem:[%s274 + $0x770] sm:$0xff]
        %v606 = vld [vmem:[%s274 + $0x778] sm:$0xff]
        %v607 = vld [vmem:[%s274 + $0x780] sm:$0xff]
        %v608 = vld [vmem:[%s274 + $0x788] sm:$0xff]
        %v609 = vld [vmem:[%s274 + $0x790] sm:$0xff]
        %v610 = vld [vmem:[%s274 + $0x798] sm:$0xff]
        %v611 = vld [vmem:[%s274 + $0x7a0] sm:$0xff]
        %v612 = vld [vmem:[%s274 + $0x7a8] sm:$0xff]
        %v613 = vld [vmem:[%s274 + $0x7b0] sm:$0xff]
        %v614 = vld [vmem:[%s274 + $0x7b8] sm:$0xff]
        %v615 = vld [vmem:[%s274 + $0x7c0] sm:$0xff]
        %v616 = vld [vmem:[%s274 + $0x7c8] sm:$0xff]
        %v617 = vld [vmem:[%s274 + $0x7d0] sm:$0xff]
        %v618 = vld [vmem:[%s274 + $0x7d8] sm:$0xff]
        %v619 = vld [vmem:[%s274 + $0x7e0] sm:$0xff]
        %v620 = vld [vmem:[%s274 + $0x7e8] sm:$0xff]
        %v621 = vld [vmem:[%s274 + $0x7f0] sm:$0xff]
        %v622 = vld [vmem:[%s274 + $0x7f8] sm:$0xff]
        %v655 = vunpack.c.l.b16 %v335
        %v656 = vunpack.c.h.b16 %v335
        %v657 = vunpack.c.l.b16 %v336
        %v658 = vunpack.c.h.b16 %v336
        %v659 = vunpack.c.l.b16 %v337
        %v660 = vunpack.c.h.b16 %v337
        %v661 = vunpack.c.l.b16 %v338
        %v662 = vunpack.c.h.b16 %v338
        %v663 = vunpack.c.l.b16 %v339
        %v664 = vunpack.c.h.b16 %v339
        %v665 = vunpack.c.l.b16 %v340
        %v666 = vunpack.c.h.b16 %v340
        %v667 = vunpack.c.l.b16 %v341
        %v668 = vunpack.c.h.b16 %v341
        %v669 = vunpack.c.l.b16 %v342
        %v670 = vunpack.c.h.b16 %v342
        %v671 = vunpack.c.l.b16 %v343
        %v672 = vunpack.c.h.b16 %v343
        %v673 = vunpack.c.l.b16 %v344
        %v674 = vunpack.c.h.b16 %v344
        %v675 = vunpack.c.l.b16 %v345
        %v676 = vunpack.c.h.b16 %v345
        %v677 = vunpack.c.l.b16 %v346
        %v678 = vunpack.c.h.b16 %v346
        %v679 = vunpack.c.l.b16 %v347
        %v680 = vunpack.c.h.b16 %v347
        %v681 = vunpack.c.l.b16 %v348
        %v682 = vunpack.c.h.b16 %v348
        %v683 = vunpack.c.l.b16 %v349
        %v684 = vunpack.c.h.b16 %v349
        %v685 = vunpack.c.l.b16 %v350
        %v686 = vunpack.c.h.b16 %v350
        %v687 = vunpack.c.l.b16 %v351
        %v688 = vunpack.c.h.b16 %v351
        %v689 = vunpack.c.l.b16 %v352
        %v690 = vunpack.c.h.b16 %v352
        %v691 = vunpack.c.l.b16 %v353
        %v692 = vunpack.c.h.b16 %v353
        %v693 = vunpack.c.l.b16 %v354
        %v694 = vunpack.c.h.b16 %v354
        %v695 = vunpack.c.l.b16 %v355
        %v696 = vunpack.c.h.b16 %v355
        %v697 = vunpack.c.l.b16 %v356
        %v698 = vunpack.c.h.b16 %v356
        %v699 = vunpack.c.l.b16 %v357
        %v700 = vunpack.c.h.b16 %v357
        %v701 = vunpack.c.l.b16 %v358
        %v702 = vunpack.c.h.b16 %v358
        %v703 = vunpack.c.l.b16 %v359
        %v704 = vunpack.c.h.b16 %v359
        %v705 = vunpack.c.l.b16 %v360
        %v706 = vunpack.c.h.b16 %v360
        %v707 = vunpack.c.l.b16 %v361
        %v708 = vunpack.c.h.b16 %v361
        %v709 = vunpack.c.l.b16 %v362
        %v710 = vunpack.c.h.b16 %v362
        %v711 = vunpack.c.l.b16 %v363
        %v712 = vunpack.c.h.b16 %v363
        %v713 = vunpack.c.l.b16 %v364
        %v714 = vunpack.c.h.b16 %v364
        %v715 = vunpack.c.l.b16 %v365
        %v716 = vunpack.c.h.b16 %v365
        %v717 = vunpack.c.l.b16 %v366
        %v718 = vunpack.c.h.b16 %v366
        %v719 = vpack.c.b16 %v671, %v655
        %v720 = vpack.c.b16 %v672, %v656
        %v721 = vpack.c.b16 %v673, %v657
        %v722 = vpack.c.b16 %v674, %v658
        %v723 = vpack.c.b16 %v675, %v659
        %v724 = vpack.c.b16 %v676, %v660
        %v725 = vpack.c.b16 %v677, %v661
        %v726 = vpack.c.b16 %v678, %v662
        %v727 = vpack.c.b16 %v679, %v663
        %v728 = vpack.c.b16 %v680, %v664
        %v729 = vpack.c.b16 %v681, %v665
        %v730 = vpack.c.b16 %v682, %v666
        %v731 = vpack.c.b16 %v683, %v667
        %v732 = vpack.c.b16 %v684, %v668
        %v733 = vpack.c.b16 %v685, %v669
        %v734 = vpack.c.b16 %v686, %v670
        %v735 = vpack.c.b16 %v703, %v687
        %v736 = vpack.c.b16 %v704, %v688
        %v737 = vpack.c.b16 %v705, %v689
        %v738 = vpack.c.b16 %v706, %v690
        %v739 = vpack.c.b16 %v707, %v691
        %v740 = vpack.c.b16 %v708, %v692
        %v741 = vpack.c.b16 %v709, %v693
        %v742 = vpack.c.b16 %v710, %v694
        %v743 = vpack.c.b16 %v711, %v695
        %v744 = vpack.c.b16 %v712, %v696
        %v745 = vpack.c.b16 %v713, %v697
        %v746 = vpack.c.b16 %v714, %v698
        %v747 = vpack.c.b16 %v715, %v699
        %v748 = vpack.c.b16 %v716, %v700
        %v749 = vpack.c.b16 %v717, %v701
        %v750 = vpack.c.b16 %v718, %v702
        %v1039 = vunpack.c.l.b16 %v367
        %v1040 = vunpack.c.h.b16 %v367
        %v1041 = vunpack.c.l.b16 %v368
        %v1042 = vunpack.c.h.b16 %v368
        %v1043 = vunpack.c.l.b16 %v369
        %v1044 = vunpack.c.h.b16 %v369
        %v1045 = vunpack.c.l.b16 %v370
        %v1046 = vunpack.c.h.b16 %v370
        %v1047 = vunpack.c.l.b16 %v371
        %v1048 = vunpack.c.h.b16 %v371
        %v1049 = vunpack.c.l.b16 %v372
        %v1050 = vunpack.c.h.b16 %v372
        %v1051 = vunpack.c.l.b16 %v373
        %v1052 = vunpack.c.h.b16 %v373
        %v1053 = vunpack.c.l.b16 %v374
        %v1054 = vunpack.c.h.b16 %v374
        %v1055 = vunpack.c.l.b16 %v375
        %v1056 = vunpack.c.h.b16 %v375
        %v1057 = vunpack.c.l.b16 %v376
        %v1058 = vunpack.c.h.b16 %v376
        %v1059 = vunpack.c.l.b16 %v377
        %v1060 = vunpack.c.h.b16 %v377
        %v1061 = vunpack.c.l.b16 %v378
        %v1062 = vunpack.c.h.b16 %v378
        %v1063 = vunpack.c.l.b16 %v379
        %v1064 = vunpack.c.h.b16 %v379
        %v1065 = vunpack.c.l.b16 %v380
        %v1066 = vunpack.c.h.b16 %v380
        %v1067 = vunpack.c.l.b16 %v381
        %v1068 = vunpack.c.h.b16 %v381
        %v1069 = vunpack.c.l.b16 %v382
        %v1070 = vunpack.c.h.b16 %v382
        %v1071 = vunpack.c.l.b16 %v383
        %v1072 = vunpack.c.h.b16 %v383
        %v1073 = vunpack.c.l.b16 %v384
        %v1074 = vunpack.c.h.b16 %v384
        %v1075 = vunpack.c.l.b16 %v385
        %v1076 = vunpack.c.h.b16 %v385
        %v1077 = vunpack.c.l.b16 %v386
        %v1078 = vunpack.c.h.b16 %v386
        %v1079 = vunpack.c.l.b16 %v387
        %v1080 = vunpack.c.h.b16 %v387
        %v1081 = vunpack.c.l.b16 %v388
        %v1082 = vunpack.c.h.b16 %v388
        %v1083 = vunpack.c.l.b16 %v389
        %v1084 = vunpack.c.h.b16 %v389
        %v1085 = vunpack.c.l.b16 %v390
        %v1086 = vunpack.c.h.b16 %v390
        %v1087 = vunpack.c.l.b16 %v391
        %v1088 = vunpack.c.h.b16 %v391
        %v1089 = vunpack.c.l.b16 %v392
        %v1090 = vunpack.c.h.b16 %v392
        %v1091 = vunpack.c.l.b16 %v393
        %v1092 = vunpack.c.h.b16 %v393
        %v1093 = vunpack.c.l.b16 %v394
        %v1094 = vunpack.c.h.b16 %v394
        %v1095 = vunpack.c.l.b16 %v395
        %v1096 = vunpack.c.h.b16 %v395
        %v1097 = vunpack.c.l.b16 %v396
        %v1098 = vunpack.c.h.b16 %v396
        %v1099 = vunpack.c.l.b16 %v397
        %v1100 = vunpack.c.h.b16 %v397
        %v1101 = vunpack.c.l.b16 %v398
        %v1102 = vunpack.c.h.b16 %v398
        %v1103 = vunpack.c.l.b16 %v399
        %v1104 = vunpack.c.h.b16 %v399
        %v1105 = vunpack.c.l.b16 %v400
        %v1106 = vunpack.c.h.b16 %v400
        %v1107 = vunpack.c.l.b16 %v401
        %v1108 = vunpack.c.h.b16 %v401
        %v1109 = vunpack.c.l.b16 %v402
        %v1110 = vunpack.c.h.b16 %v402
        %v1111 = vunpack.c.l.b16 %v403
        %v1112 = vunpack.c.h.b16 %v403
        %v1113 = vunpack.c.l.b16 %v404
        %v1114 = vunpack.c.h.b16 %v404
        %v1115 = vunpack.c.l.b16 %v405
        %v1116 = vunpack.c.h.b16 %v405
        %v1117 = vunpack.c.l.b16 %v406
        %v1118 = vunpack.c.h.b16 %v406
        %v1119 = vunpack.c.l.b16 %v407
        %v1120 = vunpack.c.h.b16 %v407
        %v1121 = vunpack.c.l.b16 %v408
        %v1122 = vunpack.c.h.b16 %v408
        %v1123 = vunpack.c.l.b16 %v409
        %v1124 = vunpack.c.h.b16 %v409
        %v1125 = vunpack.c.l.b16 %v410
        %v1126 = vunpack.c.h.b16 %v410
        %v1127 = vunpack.c.l.b16 %v411
        %v1128 = vunpack.c.h.b16 %v411
        %v1129 = vunpack.c.l.b16 %v412
        %v1130 = vunpack.c.h.b16 %v412
        %v1131 = vunpack.c.l.b16 %v413
        %v1132 = vunpack.c.h.b16 %v413
        %v1133 = vunpack.c.l.b16 %v414
        %v1134 = vunpack.c.h.b16 %v414
        %v1135 = vunpack.c.l.b16 %v415
        %v1136 = vunpack.c.h.b16 %v415
        %v1137 = vunpack.c.l.b16 %v416
        %v1138 = vunpack.c.h.b16 %v416
        %v1139 = vunpack.c.l.b16 %v417
        %v1140 = vunpack.c.h.b16 %v417
        %v1141 = vunpack.c.l.b16 %v418
        %v1142 = vunpack.c.h.b16 %v418
        %v1143 = vunpack.c.l.b16 %v419
        %v1144 = vunpack.c.h.b16 %v419
        %v1145 = vunpack.c.l.b16 %v420
        %v1146 = vunpack.c.h.b16 %v420
        %v1147 = vunpack.c.l.b16 %v421
        %v1148 = vunpack.c.h.b16 %v421
        %v1149 = vunpack.c.l.b16 %v422
        %v1150 = vunpack.c.h.b16 %v422
        %v1151 = vunpack.c.l.b16 %v423
        %v1152 = vunpack.c.h.b16 %v423
        %v1153 = vunpack.c.l.b16 %v424
        %v1154 = vunpack.c.h.b16 %v424
        %v1155 = vunpack.c.l.b16 %v425
        %v1156 = vunpack.c.h.b16 %v425
        %v1157 = vunpack.c.l.b16 %v426
        %v1158 = vunpack.c.h.b16 %v426
        %v1159 = vunpack.c.l.b16 %v427
        %v1160 = vunpack.c.h.b16 %v427
        %v1161 = vunpack.c.l.b16 %v428
        %v1162 = vunpack.c.h.b16 %v428
        %v1163 = vunpack.c.l.b16 %v429
        %v1164 = vunpack.c.h.b16 %v429
        %v1165 = vunpack.c.l.b16 %v430
        %v1166 = vunpack.c.h.b16 %v430
        %v1167 = vunpack.c.l.b16 %v431
        %v1168 = vunpack.c.h.b16 %v431
        %v1169 = vunpack.c.l.b16 %v432
        %v1170 = vunpack.c.h.b16 %v432
        %v1171 = vunpack.c.l.b16 %v433
        %v1172 = vunpack.c.h.b16 %v433
        %v1173 = vunpack.c.l.b16 %v434
        %v1174 = vunpack.c.h.b16 %v434
        %v1175 = vunpack.c.l.b16 %v435
        %v1176 = vunpack.c.h.b16 %v435
        %v1177 = vunpack.c.l.b16 %v436
        %v1178 = vunpack.c.h.b16 %v436
        %v1179 = vunpack.c.l.b16 %v437
        %v1180 = vunpack.c.h.b16 %v437
        %v1181 = vunpack.c.l.b16 %v438
        %v1182 = vunpack.c.h.b16 %v438
        %v1183 = vunpack.c.l.b16 %v439
        %v1184 = vunpack.c.h.b16 %v439
        %v1185 = vunpack.c.l.b16 %v440
        %v1186 = vunpack.c.h.b16 %v440
        %v1187 = vunpack.c.l.b16 %v441
        %v1188 = vunpack.c.h.b16 %v441
        %v1189 = vunpack.c.l.b16 %v442
        %v1190 = vunpack.c.h.b16 %v442
        %v1191 = vunpack.c.l.b16 %v443
        %v1192 = vunpack.c.h.b16 %v443
        %v1193 = vunpack.c.l.b16 %v444
        %v1194 = vunpack.c.h.b16 %v444
        %v1195 = vunpack.c.l.b16 %v445
        %v1196 = vunpack.c.h.b16 %v445
        %v1197 = vunpack.c.l.b16 %v446
        %v1198 = vunpack.c.h.b16 %v446
        %v1199 = vunpack.c.l.b16 %v447
        %v1200 = vunpack.c.h.b16 %v447
        %v1201 = vunpack.c.l.b16 %v448
        %v1202 = vunpack.c.h.b16 %v448
        %v1203 = vunpack.c.l.b16 %v449
        %v1204 = vunpack.c.h.b16 %v449
        %v1205 = vunpack.c.l.b16 %v450
        %v1206 = vunpack.c.h.b16 %v450
        %v1207 = vunpack.c.l.b16 %v451
        %v1208 = vunpack.c.h.b16 %v451
        %v1209 = vunpack.c.l.b16 %v452
        %v1210 = vunpack.c.h.b16 %v452
        %v1211 = vunpack.c.l.b16 %v453
        %v1212 = vunpack.c.h.b16 %v453
        %v1213 = vunpack.c.l.b16 %v454
        %v1214 = vunpack.c.h.b16 %v454
        %v1215 = vunpack.c.l.b16 %v455
        %v1216 = vunpack.c.h.b16 %v455
        %v1217 = vunpack.c.l.b16 %v456
        %v1218 = vunpack.c.h.b16 %v456
        %v1219 = vunpack.c.l.b16 %v457
        %v1220 = vunpack.c.h.b16 %v457
        %v1221 = vunpack.c.l.b16 %v458
        %v1222 = vunpack.c.h.b16 %v458
        %v1223 = vunpack.c.l.b16 %v459
        %v1224 = vunpack.c.h.b16 %v459
        %v1225 = vunpack.c.l.b16 %v460
        %v1226 = vunpack.c.h.b16 %v460
        %v1227 = vunpack.c.l.b16 %v461
        %v1228 = vunpack.c.h.b16 %v461
        %v1229 = vunpack.c.l.b16 %v462
        %v1230 = vunpack.c.h.b16 %v462
        %v1231 = vunpack.c.l.b16 %v463
        %v1232 = vunpack.c.h.b16 %v463
        %v1233 = vunpack.c.l.b16 %v464
        %v1234 = vunpack.c.h.b16 %v464
        %v1235 = vunpack.c.l.b16 %v465
        %v1236 = vunpack.c.h.b16 %v465
        %v1237 = vunpack.c.l.b16 %v466
        %v1238 = vunpack.c.h.b16 %v466
        %v1239 = vunpack.c.l.b16 %v467
        %v1240 = vunpack.c.h.b16 %v467
        %v1241 = vunpack.c.l.b16 %v468
        %v1242 = vunpack.c.h.b16 %v468
        %v1243 = vunpack.c.l.b16 %v469
        %v1244 = vunpack.c.h.b16 %v469
        %v1245 = vunpack.c.l.b16 %v470
        %v1246 = vunpack.c.h.b16 %v470
        %v1247 = vunpack.c.l.b16 %v471
        %v1248 = vunpack.c.h.b16 %v471
        %v1249 = vunpack.c.l.b16 %v472
        %v1250 = vunpack.c.h.b16 %v472
        %v1251 = vunpack.c.l.b16 %v473
        %v1252 = vunpack.c.h.b16 %v473
        %v1253 = vunpack.c.l.b16 %v474
        %v1254 = vunpack.c.h.b16 %v474
        %v1255 = vunpack.c.l.b16 %v475
        %v1256 = vunpack.c.h.b16 %v475
        %v1257 = vunpack.c.l.b16 %v476
        %v1258 = vunpack.c.h.b16 %v476
        %v1259 = vunpack.c.l.b16 %v477
        %v1260 = vunpack.c.h.b16 %v477
        %v1261 = vunpack.c.l.b16 %v478
        %v1262 = vunpack.c.h.b16 %v478
        %v1263 = vunpack.c.l.b16 %v479
        %v1264 = vunpack.c.h.b16 %v479
        %v1265 = vunpack.c.l.b16 %v480
        %v1266 = vunpack.c.h.b16 %v480
        %v1267 = vunpack.c.l.b16 %v481
        %v1268 = vunpack.c.h.b16 %v481
        %v1269 = vunpack.c.l.b16 %v482
        %v1270 = vunpack.c.h.b16 %v482
        %v1271 = vunpack.c.l.b16 %v483
        %v1272 = vunpack.c.h.b16 %v483
        %v1273 = vunpack.c.l.b16 %v484
        %v1274 = vunpack.c.h.b16 %v484
        %v1275 = vunpack.c.l.b16 %v485
        %v1276 = vunpack.c.h.b16 %v485
        %v1277 = vunpack.c.l.b16 %v486
        %v1278 = vunpack.c.h.b16 %v486
        %v1279 = vunpack.c.l.b16 %v487
        %v1280 = vunpack.c.h.b16 %v487
        %v1281 = vunpack.c.l.b16 %v488
        %v1282 = vunpack.c.h.b16 %v488
        %v1283 = vunpack.c.l.b16 %v489
        %v1284 = vunpack.c.h.b16 %v489
        %v1285 = vunpack.c.l.b16 %v490
        %v1286 = vunpack.c.h.b16 %v490
        %v1287 = vunpack.c.l.b16 %v491
        %v1288 = vunpack.c.h.b16 %v491
        %v1289 = vunpack.c.l.b16 %v492
        %v1290 = vunpack.c.h.b16 %v492
        %v1291 = vunpack.c.l.b16 %v493
        %v1292 = vunpack.c.h.b16 %v493
        %v1293 = vunpack.c.l.b16 %v494
        %v1294 = vunpack.c.h.b16 %v494
        %v1295 = vunpack.c.l.b16 %v495
        %v1296 = vunpack.c.h.b16 %v495
        %v1297 = vunpack.c.l.b16 %v496
        %v1298 = vunpack.c.h.b16 %v496
        %v1299 = vunpack.c.l.b16 %v497
        %v1300 = vunpack.c.h.b16 %v497
        %v1301 = vunpack.c.l.b16 %v498
        %v1302 = vunpack.c.h.b16 %v498
        %v1303 = vunpack.c.l.b16 %v499
        %v1304 = vunpack.c.h.b16 %v499
        %v1305 = vunpack.c.l.b16 %v500
        %v1306 = vunpack.c.h.b16 %v500
        %v1307 = vunpack.c.l.b16 %v501
        %v1308 = vunpack.c.h.b16 %v501
        %v1309 = vunpack.c.l.b16 %v502
        %v1310 = vunpack.c.h.b16 %v502
        %v1311 = vunpack.c.l.b16 %v503
        %v1312 = vunpack.c.h.b16 %v503
        %v1313 = vunpack.c.l.b16 %v504
        %v1314 = vunpack.c.h.b16 %v504
        %v1315 = vunpack.c.l.b16 %v505
        %v1316 = vunpack.c.h.b16 %v505
        %v1317 = vunpack.c.l.b16 %v506
        %v1318 = vunpack.c.h.b16 %v506
        %v1319 = vunpack.c.l.b16 %v507
        %v1320 = vunpack.c.h.b16 %v507
        %v1321 = vunpack.c.l.b16 %v508
        %v1322 = vunpack.c.h.b16 %v508
        %v1323 = vunpack.c.l.b16 %v509
        %v1324 = vunpack.c.h.b16 %v509
        %v1325 = vunpack.c.l.b16 %v510
        %v1326 = vunpack.c.h.b16 %v510
        %v1327 = vunpack.c.l.b16 %v511
        %v1328 = vunpack.c.h.b16 %v511
        %v1329 = vunpack.c.l.b16 %v512
        %v1330 = vunpack.c.h.b16 %v512
        %v1331 = vunpack.c.l.b16 %v513
        %v1332 = vunpack.c.h.b16 %v513
        %v1333 = vunpack.c.l.b16 %v514
        %v1334 = vunpack.c.h.b16 %v514
        %v1335 = vunpack.c.l.b16 %v515
        %v1336 = vunpack.c.h.b16 %v515
        %v1337 = vunpack.c.l.b16 %v516
        %v1338 = vunpack.c.h.b16 %v516
        %v1339 = vunpack.c.l.b16 %v517
        %v1340 = vunpack.c.h.b16 %v517
        %v1341 = vunpack.c.l.b16 %v518
        %v1342 = vunpack.c.h.b16 %v518
        %v1343 = vunpack.c.l.b16 %v519
        %v1344 = vunpack.c.h.b16 %v519
        %v1345 = vunpack.c.l.b16 %v520
        %v1346 = vunpack.c.h.b16 %v520
        %v1347 = vunpack.c.l.b16 %v521
        %v1348 = vunpack.c.h.b16 %v521
        %v1349 = vunpack.c.l.b16 %v522
        %v1350 = vunpack.c.h.b16 %v522
        %v1351 = vunpack.c.l.b16 %v523
        %v1352 = vunpack.c.h.b16 %v523
        %v1353 = vunpack.c.l.b16 %v524
        %v1354 = vunpack.c.h.b16 %v524
        %v1355 = vunpack.c.l.b16 %v525
        %v1356 = vunpack.c.h.b16 %v525
        %v1357 = vunpack.c.l.b16 %v526
        %v1358 = vunpack.c.h.b16 %v526
        %v1359 = vunpack.c.l.b16 %v527
        %v1360 = vunpack.c.h.b16 %v527
        %v1361 = vunpack.c.l.b16 %v528
        %v1362 = vunpack.c.h.b16 %v528
        %v1363 = vunpack.c.l.b16 %v529
        %v1364 = vunpack.c.h.b16 %v529
        %v1365 = vunpack.c.l.b16 %v530
        %v1366 = vunpack.c.h.b16 %v530
        %v1367 = vunpack.c.l.b16 %v531
        %v1368 = vunpack.c.h.b16 %v531
        %v1369 = vunpack.c.l.b16 %v532
        %v1370 = vunpack.c.h.b16 %v532
        %v1371 = vunpack.c.l.b16 %v533
        %v1372 = vunpack.c.h.b16 %v533
        %v1373 = vunpack.c.l.b16 %v534
        %v1374 = vunpack.c.h.b16 %v534
        %v1375 = vunpack.c.l.b16 %v535
        %v1376 = vunpack.c.h.b16 %v535
        %v1377 = vunpack.c.l.b16 %v536
        %v1378 = vunpack.c.h.b16 %v536
        %v1379 = vunpack.c.l.b16 %v537
        %v1380 = vunpack.c.h.b16 %v537
        %v1381 = vunpack.c.l.b16 %v538
        %v1382 = vunpack.c.h.b16 %v538
        %v1383 = vunpack.c.l.b16 %v539
        %v1384 = vunpack.c.h.b16 %v539
        %v1385 = vunpack.c.l.b16 %v540
        %v1386 = vunpack.c.h.b16 %v540
        %v1387 = vunpack.c.l.b16 %v541
        %v1388 = vunpack.c.h.b16 %v541
        %v1389 = vunpack.c.l.b16 %v542
        %v1390 = vunpack.c.h.b16 %v542
        %v1391 = vunpack.c.l.b16 %v543
        %v1392 = vunpack.c.h.b16 %v543
        %v1393 = vunpack.c.l.b16 %v544
        %v1394 = vunpack.c.h.b16 %v544
        %v1395 = vunpack.c.l.b16 %v545
        %v1396 = vunpack.c.h.b16 %v545
        %v1397 = vunpack.c.l.b16 %v546
        %v1398 = vunpack.c.h.b16 %v546
        %v1399 = vunpack.c.l.b16 %v547
        %v1400 = vunpack.c.h.b16 %v547
        %v1401 = vunpack.c.l.b16 %v548
        %v1402 = vunpack.c.h.b16 %v548
        %v1403 = vunpack.c.l.b16 %v549
        %v1404 = vunpack.c.h.b16 %v549
        %v1405 = vunpack.c.l.b16 %v550
        %v1406 = vunpack.c.h.b16 %v550
        %v1407 = vunpack.c.l.b16 %v551
        %v1408 = vunpack.c.h.b16 %v551
        %v1409 = vunpack.c.l.b16 %v552
        %v1410 = vunpack.c.h.b16 %v552
        %v1411 = vunpack.c.l.b16 %v553
        %v1412 = vunpack.c.h.b16 %v553
        %v1413 = vunpack.c.l.b16 %v554
        %v1414 = vunpack.c.h.b16 %v554
        %v1415 = vunpack.c.l.b16 %v555
        %v1416 = vunpack.c.h.b16 %v555
        %v1417 = vunpack.c.l.b16 %v556
        %v1418 = vunpack.c.h.b16 %v556
        %v1419 = vunpack.c.l.b16 %v557
        %v1420 = vunpack.c.h.b16 %v557
        %v1421 = vunpack.c.l.b16 %v558
        %v1422 = vunpack.c.h.b16 %v558
        %v1423 = vunpack.c.l.b16 %v559
        %v1424 = vunpack.c.h.b16 %v559
        %v1425 = vunpack.c.l.b16 %v560
        %v1426 = vunpack.c.h.b16 %v560
        %v1427 = vunpack.c.l.b16 %v561
        %v1428 = vunpack.c.h.b16 %v561
        %v1429 = vunpack.c.l.b16 %v562
        %v1430 = vunpack.c.h.b16 %v562
        %v1431 = vunpack.c.l.b16 %v563
        %v1432 = vunpack.c.h.b16 %v563
        %v1433 = vunpack.c.l.b16 %v564
        %v1434 = vunpack.c.h.b16 %v564
        %v1435 = vunpack.c.l.b16 %v565
        %v1436 = vunpack.c.h.b16 %v565
        %v1437 = vunpack.c.l.b16 %v566
        %v1438 = vunpack.c.h.b16 %v566
        %v1439 = vunpack.c.l.b16 %v567
        %v1440 = vunpack.c.h.b16 %v567
        %v1441 = vunpack.c.l.b16 %v568
        %v1442 = vunpack.c.h.b16 %v568
        %v1443 = vunpack.c.l.b16 %v569
        %v1444 = vunpack.c.h.b16 %v569
        %v1445 = vunpack.c.l.b16 %v570
        %v1446 = vunpack.c.h.b16 %v570
        %v1447 = vunpack.c.l.b16 %v571
        %v1448 = vunpack.c.h.b16 %v571
        %v1449 = vunpack.c.l.b16 %v572
        %v1450 = vunpack.c.h.b16 %v572
        %v1451 = vunpack.c.l.b16 %v573
        %v1452 = vunpack.c.h.b16 %v573
        %v1453 = vunpack.c.l.b16 %v574
        %v1454 = vunpack.c.h.b16 %v574
        %v1455 = vunpack.c.l.b16 %v575
        %v1456 = vunpack.c.h.b16 %v575
        %v1457 = vunpack.c.l.b16 %v576
        %v1458 = vunpack.c.h.b16 %v576
        %v1459 = vunpack.c.l.b16 %v577
        %v1460 = vunpack.c.h.b16 %v577
        %v1461 = vunpack.c.l.b16 %v578
        %v1462 = vunpack.c.h.b16 %v578
        %v1463 = vunpack.c.l.b16 %v579
        %v1464 = vunpack.c.h.b16 %v579
        %v1465 = vunpack.c.l.b16 %v580
        %v1466 = vunpack.c.h.b16 %v580
        %v1467 = vunpack.c.l.b16 %v581
        %v1468 = vunpack.c.h.b16 %v581
        %v1469 = vunpack.c.l.b16 %v582
        %v1470 = vunpack.c.h.b16 %v582
        %v1471 = vunpack.c.l.b16 %v583
        %v1472 = vunpack.c.h.b16 %v583
        %v1473 = vunpack.c.l.b16 %v584
        %v1474 = vunpack.c.h.b16 %v584
        %v1475 = vunpack.c.l.b16 %v585
        %v1476 = vunpack.c.h.b16 %v585
        %v1477 = vunpack.c.l.b16 %v586
        %v1478 = vunpack.c.h.b16 %v586
        %v1479 = vunpack.c.l.b16 %v587
        %v1480 = vunpack.c.h.b16 %v587
        %v1481 = vunpack.c.l.b16 %v588
        %v1482 = vunpack.c.h.b16 %v588
        %v1483 = vunpack.c.l.b16 %v589
        %v1484 = vunpack.c.h.b16 %v589
        %v1485 = vunpack.c.l.b16 %v590
        %v1486 = vunpack.c.h.b16 %v590
        %v1487 = vunpack.c.l.b16 %v591
        %v1488 = vunpack.c.h.b16 %v591
        %v1489 = vunpack.c.l.b16 %v592
        %v1490 = vunpack.c.h.b16 %v592
        %v1491 = vunpack.c.l.b16 %v593
        %v1492 = vunpack.c.h.b16 %v593
        %v1493 = vunpack.c.l.b16 %v594
        %v1494 = vunpack.c.h.b16 %v594
        %v1495 = vunpack.c.l.b16 %v595
        %v1496 = vunpack.c.h.b16 %v595
        %v1497 = vunpack.c.l.b16 %v596
        %v1498 = vunpack.c.h.b16 %v596
        %v1499 = vunpack.c.l.b16 %v597
        %v1500 = vunpack.c.h.b16 %v597
        %v1501 = vunpack.c.l.b16 %v598
        %v1502 = vunpack.c.h.b16 %v598
        %v1503 = vunpack.c.l.b16 %v599
        %v1504 = vunpack.c.h.b16 %v599
        %v1505 = vunpack.c.l.b16 %v600
        %v1506 = vunpack.c.h.b16 %v600
        %v1507 = vunpack.c.l.b16 %v601
        %v1508 = vunpack.c.h.b16 %v601
        %v1509 = vunpack.c.l.b16 %v602
        %v1510 = vunpack.c.h.b16 %v602
        %v1511 = vunpack.c.l.b16 %v603
        %v1512 = vunpack.c.h.b16 %v603
        %v1513 = vunpack.c.l.b16 %v604
        %v1514 = vunpack.c.h.b16 %v604
        %v1515 = vunpack.c.l.b16 %v605
        %v1516 = vunpack.c.h.b16 %v605
        %v1517 = vunpack.c.l.b16 %v606
        %v1518 = vunpack.c.h.b16 %v606
        %v1519 = vunpack.c.l.b16 %v607
        %v1520 = vunpack.c.h.b16 %v607
        %v1521 = vunpack.c.l.b16 %v608
        %v1522 = vunpack.c.h.b16 %v608
        %v1523 = vunpack.c.l.b16 %v609
        %v1524 = vunpack.c.h.b16 %v609
        %v1525 = vunpack.c.l.b16 %v610
        %v1526 = vunpack.c.h.b16 %v610
        %v1527 = vunpack.c.l.b16 %v611
        %v1528 = vunpack.c.h.b16 %v611
        %v1529 = vunpack.c.l.b16 %v612
        %v1530 = vunpack.c.h.b16 %v612
        %v1531 = vunpack.c.l.b16 %v613
        %v1532 = vunpack.c.h.b16 %v613
        %v1533 = vunpack.c.l.b16 %v614
        %v1534 = vunpack.c.h.b16 %v614
        %v1535 = vunpack.c.l.b16 %v615
        %v1536 = vunpack.c.h.b16 %v615
        %v1537 = vunpack.c.l.b16 %v616
        %v1538 = vunpack.c.h.b16 %v616
        %v1539 = vunpack.c.l.b16 %v617
        %v1540 = vunpack.c.h.b16 %v617
        %v1541 = vunpack.c.l.b16 %v618
        %v1542 = vunpack.c.h.b16 %v618
        %v1543 = vunpack.c.l.b16 %v619
        %v1544 = vunpack.c.h.b16 %v619
        %v1545 = vunpack.c.l.b16 %v620
        %v1546 = vunpack.c.h.b16 %v620
        %v1547 = vunpack.c.l.b16 %v621
        %v1548 = vunpack.c.h.b16 %v621
        %v1549 = vunpack.c.l.b16 %v622
        %v1550 = vunpack.c.h.b16 %v622
        %v1551 = vpack.c.b16 %v1041, %v1039
        %v1552 = vpack.c.b16 %v1042, %v1040
        %v1553 = vpack.c.b16 %v1045, %v1043
        %v1554 = vpack.c.b16 %v1046, %v1044
        %v1555 = vpack.c.b16 %v1049, %v1047
        %v1556 = vpack.c.b16 %v1050, %v1048
        %v1557 = vpack.c.b16 %v1053, %v1051
        %v1558 = vpack.c.b16 %v1054, %v1052
        %v1559 = vpack.c.b16 %v1057, %v1055
        %v1560 = vpack.c.b16 %v1058, %v1056
        %v1561 = vpack.c.b16 %v1061, %v1059
        %v1562 = vpack.c.b16 %v1062, %v1060
        %v1563 = vpack.c.b16 %v1065, %v1063
        %v1564 = vpack.c.b16 %v1066, %v1064
        %v1565 = vpack.c.b16 %v1069, %v1067
        %v1566 = vpack.c.b16 %v1070, %v1068
        %v1567 = vpack.c.b16 %v1073, %v1071
        %v1568 = vpack.c.b16 %v1074, %v1072
        %v1569 = vpack.c.b16 %v1077, %v1075
        %v1570 = vpack.c.b16 %v1078, %v1076
        %v1571 = vpack.c.b16 %v1081, %v1079
        %v1572 = vpack.c.b16 %v1082, %v1080
        %v1573 = vpack.c.b16 %v1085, %v1083
        %v1574 = vpack.c.b16 %v1086, %v1084
        %v1575 = vpack.c.b16 %v1089, %v1087
        %v1576 = vpack.c.b16 %v1090, %v1088
        %v1577 = vpack.c.b16 %v1093, %v1091
        %v1578 = vpack.c.b16 %v1094, %v1092
        %v1579 = vpack.c.b16 %v1097, %v1095
        %v1580 = vpack.c.b16 %v1098, %v1096
        %v1581 = vpack.c.b16 %v1101, %v1099
        %v1582 = vpack.c.b16 %v1102, %v1100
        %v1583 = vpack.c.b16 %v1105, %v1103
        %v1584 = vpack.c.b16 %v1106, %v1104
        %v1585 = vpack.c.b16 %v1109, %v1107
        %v1586 = vpack.c.b16 %v1110, %v1108
        %v1587 = vpack.c.b16 %v1113, %v1111
        %v1588 = vpack.c.b16 %v1114, %v1112
        %v1589 = vpack.c.b16 %v1117, %v1115
        %v1590 = vpack.c.b16 %v1118, %v1116
        %v1591 = vpack.c.b16 %v1121, %v1119
        %v1592 = vpack.c.b16 %v1122, %v1120
        %v1593 = vpack.c.b16 %v1125, %v1123
        %v1594 = vpack.c.b16 %v1126, %v1124
        %v1595 = vpack.c.b16 %v1129, %v1127
        %v1596 = vpack.c.b16 %v1130, %v1128
        %v1597 = vpack.c.b16 %v1133, %v1131
        %v1598 = vpack.c.b16 %v1134, %v1132
        %v1599 = vpack.c.b16 %v1137, %v1135
        %v1600 = vpack.c.b16 %v1138, %v1136
        %v1601 = vpack.c.b16 %v1141, %v1139
        %v1602 = vpack.c.b16 %v1142, %v1140
        %v1603 = vpack.c.b16 %v1145, %v1143
        %v1604 = vpack.c.b16 %v1146, %v1144
        %v1605 = vpack.c.b16 %v1149, %v1147
        %v1606 = vpack.c.b16 %v1150, %v1148
        %v1607 = vpack.c.b16 %v1153, %v1151
        %v1608 = vpack.c.b16 %v1154, %v1152
        %v1609 = vpack.c.b16 %v1157, %v1155
        %v1610 = vpack.c.b16 %v1158, %v1156
        %v1611 = vpack.c.b16 %v1161, %v1159
        %v1612 = vpack.c.b16 %v1162, %v1160
        %v1613 = vpack.c.b16 %v1165, %v1163
        %v1614 = vpack.c.b16 %v1166, %v1164
        %v1615 = vpack.c.b16 %v1169, %v1167
        %v1616 = vpack.c.b16 %v1170, %v1168
        %v1617 = vpack.c.b16 %v1173, %v1171
        %v1618 = vpack.c.b16 %v1174, %v1172
        %v1619 = vpack.c.b16 %v1177, %v1175
        %v1620 = vpack.c.b16 %v1178, %v1176
        %v1621 = vpack.c.b16 %v1181, %v1179
        %v1622 = vpack.c.b16 %v1182, %v1180
        %v1623 = vpack.c.b16 %v1185, %v1183
        %v1624 = vpack.c.b16 %v1186, %v1184
        %v1625 = vpack.c.b16 %v1189, %v1187
        %v1626 = vpack.c.b16 %v1190, %v1188
        %v1627 = vpack.c.b16 %v1193, %v1191
        %v1628 = vpack.c.b16 %v1194, %v1192
        %v1629 = vpack.c.b16 %v1197, %v1195
        %v1630 = vpack.c.b16 %v1198, %v1196
        %v1631 = vpack.c.b16 %v1201, %v1199
        %v1632 = vpack.c.b16 %v1202, %v1200
        %v1633 = vpack.c.b16 %v1205, %v1203
        %v1634 = vpack.c.b16 %v1206, %v1204
        %v1635 = vpack.c.b16 %v1209, %v1207
        %v1636 = vpack.c.b16 %v1210, %v1208
        %v1637 = vpack.c.b16 %v1213, %v1211
        %v1638 = vpack.c.b16 %v1214, %v1212
        %v1639 = vpack.c.b16 %v1217, %v1215
        %v1640 = vpack.c.b16 %v1218, %v1216
        %v1641 = vpack.c.b16 %v1221, %v1219
        %v1642 = vpack.c.b16 %v1222, %v1220
        %v1643 = vpack.c.b16 %v1225, %v1223
        %v1644 = vpack.c.b16 %v1226, %v1224
        %v1645 = vpack.c.b16 %v1229, %v1227
        %v1646 = vpack.c.b16 %v1230, %v1228
        %v1647 = vpack.c.b16 %v1233, %v1231
        %v1648 = vpack.c.b16 %v1234, %v1232
        %v1649 = vpack.c.b16 %v1237, %v1235
        %v1650 = vpack.c.b16 %v1238, %v1236
        %v1651 = vpack.c.b16 %v1241, %v1239
        %v1652 = vpack.c.b16 %v1242, %v1240
        %v1653 = vpack.c.b16 %v1245, %v1243
        %v1654 = vpack.c.b16 %v1246, %v1244
        %v1655 = vpack.c.b16 %v1249, %v1247
        %v1656 = vpack.c.b16 %v1250, %v1248
        %v1657 = vpack.c.b16 %v1253, %v1251
        %v1658 = vpack.c.b16 %v1254, %v1252
        %v1659 = vpack.c.b16 %v1257, %v1255
        %v1660 = vpack.c.b16 %v1258, %v1256
        %v1661 = vpack.c.b16 %v1261, %v1259
        %v1662 = vpack.c.b16 %v1262, %v1260
        %v1663 = vpack.c.b16 %v1265, %v1263
        %v1664 = vpack.c.b16 %v1266, %v1264
        %v1665 = vpack.c.b16 %v1269, %v1267
        %v1666 = vpack.c.b16 %v1270, %v1268
        %v1667 = vpack.c.b16 %v1273, %v1271
        %v1668 = vpack.c.b16 %v1274, %v1272
        %v1669 = vpack.c.b16 %v1277, %v1275
        %v1670 = vpack.c.b16 %v1278, %v1276
        %v1671 = vpack.c.b16 %v1281, %v1279
        %v1672 = vpack.c.b16 %v1282, %v1280
        %v1673 = vpack.c.b16 %v1285, %v1283
        %v1674 = vpack.c.b16 %v1286, %v1284
        %v1675 = vpack.c.b16 %v1289, %v1287
        %v1676 = vpack.c.b16 %v1290, %v1288
        %v1677 = vpack.c.b16 %v1293, %v1291
        %v1678 = vpack.c.b16 %v1294, %v1292
        %v1679 = vpack.c.b16 %v1297, %v1295
        %v1680 = vpack.c.b16 %v1298, %v1296
        %v1681 = vpack.c.b16 %v1301, %v1299
        %v1682 = vpack.c.b16 %v1302, %v1300
        %v1683 = vpack.c.b16 %v1305, %v1303
        %v1684 = vpack.c.b16 %v1306, %v1304
        %v1685 = vpack.c.b16 %v1309, %v1307
        %v1686 = vpack.c.b16 %v1310, %v1308
        %v1687 = vpack.c.b16 %v1313, %v1311
        %v1688 = vpack.c.b16 %v1314, %v1312
        %v1689 = vpack.c.b16 %v1317, %v1315
        %v1690 = vpack.c.b16 %v1318, %v1316
        %v1691 = vpack.c.b16 %v1321, %v1319
        %v1692 = vpack.c.b16 %v1322, %v1320
        %v1693 = vpack.c.b16 %v1325, %v1323
        %v1694 = vpack.c.b16 %v1326, %v1324
        %v1695 = vpack.c.b16 %v1329, %v1327
        %v1696 = vpack.c.b16 %v1330, %v1328
        %v1697 = vpack.c.b16 %v1333, %v1331
        %v1698 = vpack.c.b16 %v1334, %v1332
        %v1699 = vpack.c.b16 %v1337, %v1335
        %v1700 = vpack.c.b16 %v1338, %v1336
        %v1701 = vpack.c.b16 %v1341, %v1339
        %v1702 = vpack.c.b16 %v1342, %v1340
        %v1703 = vpack.c.b16 %v1345, %v1343
        %v1704 = vpack.c.b16 %v1346, %v1344
        %v1705 = vpack.c.b16 %v1349, %v1347
        %v1706 = vpack.c.b16 %v1350, %v1348
        %v1707 = vpack.c.b16 %v1353, %v1351
        %v1708 = vpack.c.b16 %v1354, %v1352
        %v1709 = vpack.c.b16 %v1357, %v1355
        %v1710 = vpack.c.b16 %v1358, %v1356
        %v1711 = vpack.c.b16 %v1361, %v1359
        %v1712 = vpack.c.b16 %v1362, %v1360
        %v1713 = vpack.c.b16 %v1365, %v1363
        %v1714 = vpack.c.b16 %v1366, %v1364
        %v1715 = vpack.c.b16 %v1369, %v1367
        %v1716 = vpack.c.b16 %v1370, %v1368
        %v1717 = vpack.c.b16 %v1373, %v1371
        %v1718 = vpack.c.b16 %v1374, %v1372
        %v1719 = vpack.c.b16 %v1377, %v1375
        %v1720 = vpack.c.b16 %v1378, %v1376
        %v1721 = vpack.c.b16 %v1381, %v1379
        %v1722 = vpack.c.b16 %v1382, %v1380
        %v1723 = vpack.c.b16 %v1385, %v1383
        %v1724 = vpack.c.b16 %v1386, %v1384
        %v1725 = vpack.c.b16 %v1389, %v1387
        %v1726 = vpack.c.b16 %v1390, %v1388
        %v1727 = vpack.c.b16 %v1393, %v1391
        %v1728 = vpack.c.b16 %v1394, %v1392
        %v1729 = vpack.c.b16 %v1397, %v1395
        %v1730 = vpack.c.b16 %v1398, %v1396
        %v1731 = vpack.c.b16 %v1401, %v1399
        %v1732 = vpack.c.b16 %v1402, %v1400
        %v1733 = vpack.c.b16 %v1405, %v1403
        %v1734 = vpack.c.b16 %v1406, %v1404
        %v1735 = vpack.c.b16 %v1409, %v1407
        %v1736 = vpack.c.b16 %v1410, %v1408
        %v1737 = vpack.c.b16 %v1413, %v1411
        %v1738 = vpack.c.b16 %v1414, %v1412
        %v1739 = vpack.c.b16 %v1417, %v1415
        %v1740 = vpack.c.b16 %v1418, %v1416
        %v1741 = vpack.c.b16 %v1421, %v1419
        %v1742 = vpack.c.b16 %v1422, %v1420
        %v1743 = vpack.c.b16 %v1425, %v1423
        %v1744 = vpack.c.b16 %v1426, %v1424
        %v1745 = vpack.c.b16 %v1429, %v1427
        %v1746 = vpack.c.b16 %v1430, %v1428
        %v1747 = vpack.c.b16 %v1433, %v1431
        %v1748 = vpack.c.b16 %v1434, %v1432
        %v1749 = vpack.c.b16 %v1437, %v1435
        %v1750 = vpack.c.b16 %v1438, %v1436
        %v1751 = vpack.c.b16 %v1441, %v1439
        %v1752 = vpack.c.b16 %v1442, %v1440
        %v1753 = vpack.c.b16 %v1445, %v1443
        %v1754 = vpack.c.b16 %v1446, %v1444
        %v1755 = vpack.c.b16 %v1449, %v1447
        %v1756 = vpack.c.b16 %v1450, %v1448
        %v1757 = vpack.c.b16 %v1453, %v1451
        %v1758 = vpack.c.b16 %v1454, %v1452
        %v1759 = vpack.c.b16 %v1457, %v1455
        %v1760 = vpack.c.b16 %v1458, %v1456
        %v1761 = vpack.c.b16 %v1461, %v1459
        %v1762 = vpack.c.b16 %v1462, %v1460
        %v1763 = vpack.c.b16 %v1465, %v1463
        %v1764 = vpack.c.b16 %v1466, %v1464
        %v1765 = vpack.c.b16 %v1469, %v1467
        %v1766 = vpack.c.b16 %v1470, %v1468
        %v1767 = vpack.c.b16 %v1473, %v1471
        %v1768 = vpack.c.b16 %v1474, %v1472
        %v1769 = vpack.c.b16 %v1477, %v1475
        %v1770 = vpack.c.b16 %v1478, %v1476
        %v1771 = vpack.c.b16 %v1481, %v1479
        %v1772 = vpack.c.b16 %v1482, %v1480
        %v1773 = vpack.c.b16 %v1485, %v1483
        %v1774 = vpack.c.b16 %v1486, %v1484
        %v1775 = vpack.c.b16 %v1489, %v1487
        %v1776 = vpack.c.b16 %v1490, %v1488
        %v1777 = vpack.c.b16 %v1493, %v1491
        %v1778 = vpack.c.b16 %v1494, %v1492
        %v1779 = vpack.c.b16 %v1497, %v1495
        %v1780 = vpack.c.b16 %v1498, %v1496
        %v1781 = vpack.c.b16 %v1501, %v1499
        %v1782 = vpack.c.b16 %v1502, %v1500
        %v1783 = vpack.c.b16 %v1505, %v1503
        %v1784 = vpack.c.b16 %v1506, %v1504
        %v1785 = vpack.c.b16 %v1509, %v1507
        %v1786 = vpack.c.b16 %v1510, %v1508
        %v1787 = vpack.c.b16 %v1513, %v1511
        %v1788 = vpack.c.b16 %v1514, %v1512
        %v1789 = vpack.c.b16 %v1517, %v1515
        %v1790 = vpack.c.b16 %v1518, %v1516
        %v1791 = vpack.c.b16 %v1521, %v1519
        %v1792 = vpack.c.b16 %v1522, %v1520
        %v1793 = vpack.c.b16 %v1525, %v1523
        %v1794 = vpack.c.b16 %v1526, %v1524
        %v1795 = vpack.c.b16 %v1529, %v1527
        %v1796 = vpack.c.b16 %v1530, %v1528
        %v1797 = vpack.c.b16 %v1533, %v1531
        %v1798 = vpack.c.b16 %v1534, %v1532
        %v1799 = vpack.c.b16 %v1537, %v1535
        %v1800 = vpack.c.b16 %v1538, %v1536
        %v1801 = vpack.c.b16 %v1541, %v1539
        %v1802 = vpack.c.b16 %v1542, %v1540
        %v1803 = vpack.c.b16 %v1545, %v1543
        %v1804 = vpack.c.b16 %v1546, %v1544
        %v1805 = vpack.c.b16 %v1549, %v1547
        %v1806 = vpack.c.b16 %v1550, %v1548
        %2063 = vmatprep.subr.bf16.mxu0 %v1552
        %2064 = vmatpush1.bf16.msra.mxu0 %v1551
        %2065 = vmatprep.subr.bf16.mxu0 %v1554
        %2066 = vmatpush1.bf16.msra.mxu0 %v1553
        %2067 = vmatprep.subr.bf16.mxu0 %v1556
        %2068 = vmatpush1.bf16.msra.mxu0 %v1555
        %2069 = vmatprep.subr.bf16.mxu0 %v1558
        %2070 = vmatpush1.bf16.msra.mxu0 %v1557
        %2071 = vmatprep.subr.bf16.mxu0 %v1560
        %2072 = vmatpush1.bf16.msra.mxu0 %v1559
        %2073 = vmatprep.subr.bf16.mxu0 %v1562
        %2074 = vmatpush1.bf16.msra.mxu0 %v1561
        %2075 = vmatprep.subr.bf16.mxu0 %v1564
        %2076 = vmatpush1.bf16.msra.mxu0 %v1563
        %2077 = vmatprep.subr.bf16.mxu0 %v1566
        %2078 = vmatpush1.bf16.msra.mxu0 %v1565
        %2079 = vmatprep.subr.bf16.mxu0 %v1568
        %2080 = vmatpush1.bf16.msra.mxu0 %v1567
        %2081 = vmatprep.subr.bf16.mxu0 %v1570
        %2082 = vmatpush1.bf16.msra.mxu0 %v1569
        %2083 = vmatprep.subr.bf16.mxu0 %v1572
        %2084 = vmatpush1.bf16.msra.mxu0 %v1571
        %2085 = vmatprep.subr.bf16.mxu0 %v1574
        %2086 = vmatpush1.bf16.msra.mxu0 %v1573
        %2087 = vmatprep.subr.bf16.mxu0 %v1576
        %2088 = vmatpush1.bf16.msra.mxu0 %v1575
        %2089 = vmatprep.subr.bf16.mxu0 %v1578
        %2090 = vmatpush1.bf16.msra.mxu0 %v1577
        %2091 = vmatprep.subr.bf16.mxu0 %v1580
        %2092 = vmatpush1.bf16.msra.mxu0 %v1579
        %2093 = vmatprep.subr.bf16.mxu0 %v1582
        %2094 = vmatpush1.bf16.msra.mxu0 %v1581
        %2095 = vmatprep.mubr.bf16.mxu0 %v720
        %2096 = vmatmul.mubr.bf16.gmra.mrb[0].mxu0 %v719
        %v2097 = vpop.f32.mrb[0].mxu0
        %v2098 = vadd.f32 0.0, %v2097
        %v2099 = vpop.f32.mrb[0].mxu0
        %v2100 = vadd.f32 0.0, %v2099
        %v2101 = vpop.f32.mrb[0].mxu0
        %v2102 = vadd.f32 0.0, %v2101
        %v2103 = vpop.f32.mrb[0].mxu0
        %v2104 = vadd.f32 0.0, %v2103
        %2105 = vmatprep.mubr.bf16.mxu0 %v736
        %2106 = vmatmul.mubr.bf16.gmra.mrb[0].mxu0 %v735
        %v2107 = vpop.f32.mrb[0].mxu0
        %v2108 = vadd.f32 0.0, %v2107
        %v2109 = vpop.f32.mrb[0].mxu0
        %v2110 = vadd.f32 0.0, %v2109
        %v2111 = vpop.f32.mrb[0].mxu0
        %v2112 = vadd.f32 0.0, %v2111
        %v2113 = vpop.f32.mrb[0].mxu0
        %v2114 = vadd.f32 0.0, %v2113
        %2115 = vdwg.mxu0
        %2116 = vmatprep.subr.bf16.mxu0 %v1584
        %2117 = vmatpush1.bf16.msra.mxu0 %v1583
        %2118 = vmatprep.subr.bf16.mxu0 %v1586
        %2119 = vmatpush1.bf16.msra.mxu0 %v1585
        %2120 = vmatprep.subr.bf16.mxu0 %v1588
        %2121 = vmatpush1.bf16.msra.mxu0 %v1587
        %2122 = vmatprep.subr.bf16.mxu0 %v1590
        %2123 = vmatpush1.bf16.msra.mxu0 %v1589
        %2124 = vmatprep.subr.bf16.mxu0 %v1592
        %2125 = vmatpush1.bf16.msra.mxu0 %v1591
        %2126 = vmatprep.subr.bf16.mxu0 %v1594
        %2127 = vmatpush1.bf16.msra.mxu0 %v1593
        %2128 = vmatprep.subr.bf16.mxu0 %v1596
        %2129 = vmatpush1.bf16.msra.mxu0 %v1595
        %2130 = vmatprep.subr.bf16.mxu0 %v1598
        %2131 = vmatpush1.bf16.msra.mxu0 %v1597
        %2132 = vmatprep.subr.bf16.mxu0 %v1600
        %2133 = vmatpush1.bf16.msra.mxu0 %v1599
        %2134 = vmatprep.subr.bf16.mxu0 %v1602
        %2135 = vmatpush1.bf16.msra.mxu0 %v1601
        %2136 = vmatprep.subr.bf16.mxu0 %v1604
        %2137 = vmatpush1.bf16.msra.mxu0 %v1603
        %2138 = vmatprep.subr.bf16.mxu0 %v1606
        %2139 = vmatpush1.bf16.msra.mxu0 %v1605
        %2140 = vmatprep.subr.bf16.mxu0 %v1608
        %2141 = vmatpush1.bf16.msra.mxu0 %v1607
        %2142 = vmatprep.subr.bf16.mxu0 %v1610
        %2143 = vmatpush1.bf16.msra.mxu0 %v1609
        %2144 = vmatprep.subr.bf16.mxu0 %v1612
        %2145 = vmatpush1.bf16.msra.mxu0 %v1611
        %2146 = vmatprep.subr.bf16.mxu0 %v1614
        %2147 = vmatpush1.bf16.msra.mxu0 %v1613
        %2148 = vmatprep.mubr.bf16.mxu0 %v722
        %2149 = vmatmul.mubr.bf16.gmra.mrb[0].mxu0 %v721
        %v2150 = vpop.f32.mrb[0].mxu0
        %v2151 = vadd.f32 %v2098, %v2150
        %v2152 = vpop.f32.mrb[0].mxu0
        %v2153 = vadd.f32 %v2100, %v2152
        %v2154 = vpop.f32.mrb[0].mxu0
        %v2155 = vadd.f32 %v2102, %v2154
        %v2156 = vpop.f32.mrb[0].mxu0
        %v2157 = vadd.f32 %v2104, %v2156
        %2158 = vmatprep.mubr.bf16.mxu0 %v738
        %2159 = vmatmul.mubr.bf16.gmra.mrb[0].mxu0 %v737
        %v2160 = vpop.f32.mrb[0].mxu0
        %v2161 = vadd.f32 %v2108, %v2160
        %v2162 = vpop.f32.mrb[0].mxu0
        %v2163 = vadd.f32 %v2110, %v2162
        %v2164 = vpop.f32.mrb[0].mxu0
        %v2165 = vadd.f32 %v2112, %v2164
        %v2166 = vpop.f32.mrb[0].mxu0
        %v2167 = vadd.f32 %v2114, %v2166
        %2168 = vdwg.mxu0
        %2169 = vmatprep.subr.bf16.mxu0 %v1616
        %2170 = vmatpush1.bf16.msra.mxu0 %v1615
        %2171 = vmatprep.subr.bf16.mxu0 %v1618
        %2172 = vmatpush1.bf16.msra.mxu0 %v1617
        %2173 = vmatprep.subr.bf16.mxu0 %v1620
        %2174 = vmatpush1.bf16.msra.mxu0 %v1619
        %2175 = vmatprep.subr.bf16.mxu0 %v1622
        %2176 = vmatpush1.bf16.msra.mxu0 %v1621
        %2177 = vmatprep.subr.bf16.mxu0 %v1624
        %2178 = vmatpush1.bf16.msra.mxu0 %v1623
        %2179 = vmatprep.subr.bf16.mxu0 %v1626
        %2180 = vmatpush1.bf16.msra.mxu0 %v1625
        %2181 = vmatprep.subr.bf16.mxu0 %v1628
        %2182 = vmatpush1.bf16.msra.mxu0 %v1627
        %2183 = vmatprep.subr.bf16.mxu0 %v1630
        %2184 = vmatpush1.bf16.msra.mxu0 %v1629
        %2185 = vmatprep.subr.bf16.mxu0 %v1632
        %2186 = vmatpush1.bf16.msra.mxu0 %v1631
        %2187 = vmatprep.subr.bf16.mxu0 %v1634
        %2188 = vmatpush1.bf16.msra.mxu0 %v1633
        %2189 = vmatprep.subr.bf16.mxu0 %v1636
        %2190 = vmatpush1.bf16.msra.mxu0 %v1635
        %2191 = vmatprep.subr.bf16.mxu0 %v1638
        %2192 = vmatpush1.bf16.msra.mxu0 %v1637
        %2193 = vmatprep.subr.bf16.mxu0 %v1640
        %2194 = vmatpush1.bf16.msra.mxu0 %v1639
        %2195 = vmatprep.subr.bf16.mxu0 %v1642
        %2196 = vmatpush1.bf16.msra.mxu0 %v1641
        %2197 = vmatprep.subr.bf16.mxu0 %v1644
        %2198 = vmatpush1.bf16.msra.mxu0 %v1643
        %2199 = vmatprep.subr.bf16.mxu0 %v1646
        %2200 = vmatpush1.bf16.msra.mxu0 %v1645
        %2201 = vmatprep.mubr.bf16.mxu0 %v724
        %2202 = vmatmul.mubr.bf16.gmra.mrb[0].mxu0 %v723
        %v2203 = vpop.f32.mrb[0].mxu0
        %v2204 = vadd.f32 %v2151, %v2203
        %v2205 = vpop.f32.mrb[0].mxu0
        %v2206 = vadd.f32 %v2153, %v2205
        %v2207 = vpop.f32.mrb[0].mxu0
        %v2208 = vadd.f32 %v2155, %v2207
        %v2209 = vpop.f32.mrb[0].mxu0
        %v2210 = vadd.f32 %v2157, %v2209
        %2211 = vmatprep.mubr.bf16.mxu0 %v740
        %2212 = vmatmul.mubr.bf16.gmra.mrb[0].mxu0 %v739
        %v2213 = vpop.f32.mrb[0].mxu0
        %v2214 = vadd.f32 %v2161, %v2213
        %v2215 = vpop.f32.mrb[0].mxu0
        %v2216 = vadd.f32 %v2163, %v2215
        %v2217 = vpop.f32.mrb[0].mxu0
        %v2218 = vadd.f32 %v2165, %v2217
        %v2219 = vpop.f32.mrb[0].mxu0
        %v2220 = vadd.f32 %v2167, %v2219
        %2221 = vdwg.mxu0
        %2222 = vmatprep.subr.bf16.mxu0 %v1648
        %2223 = vmatpush1.bf16.msra.mxu0 %v1647
        %2224 = vmatprep.subr.bf16.mxu0 %v1650
        %2225 = vmatpush1.bf16.msra.mxu0 %v1649
        %2226 = vmatprep.subr.bf16.mxu0 %v1652
        %2227 = vmatpush1.bf16.msra.mxu0 %v1651
        %2228 = vmatprep.subr.bf16.mxu0 %v1654
        %2229 = vmatpush1.bf16.msra.mxu0 %v1653
        %2230 = vmatprep.subr.bf16.mxu0 %v1656
        %2231 = vmatpush1.bf16.msra.mxu0 %v1655
        %2232 = vmatprep.subr.bf16.mxu0 %v1658
        %2233 = vmatpush1.bf16.msra.mxu0 %v1657
        %2234 = vmatprep.subr.bf16.mxu0 %v1660
        %2235 = vmatpush1.bf16.msra.mxu0 %v1659
        %2236 = vmatprep.subr.bf16.mxu0 %v1662
        %2237 = vmatpush1.bf16.msra.mxu0 %v1661
        %2238 = vmatprep.subr.bf16.mxu0 %v1664
        %2239 = vmatpush1.bf16.msra.mxu0 %v1663
        %2240 = vmatprep.subr.bf16.mxu0 %v1666
        %2241 = vmatpush1.bf16.msra.mxu0 %v1665
        %2242 = vmatprep.subr.bf16.mxu0 %v1668
        %2243 = vmatpush1.bf16.msra.mxu0 %v1667
        %2244 = vmatprep.subr.bf16.mxu0 %v1670
        %2245 = vmatpush1.bf16.msra.mxu0 %v1669
        %2246 = vmatprep.subr.bf16.mxu0 %v1672
        %2247 = vmatpush1.bf16.msra.mxu0 %v1671
        %2248 = vmatprep.subr.bf16.mxu0 %v1674
        %2249 = vmatpush1.bf16.msra.mxu0 %v1673
        %2250 = vmatprep.subr.bf16.mxu0 %v1676
        %2251 = vmatpush1.bf16.msra.mxu0 %v1675
        %2252 = vmatprep.subr.bf16.mxu0 %v1678
        %2253 = vmatpush1.bf16.msra.mxu0 %v1677
        %2254 = vmatprep.mubr.bf16.mxu0 %v726
        %2255 = vmatmul.mubr.bf16.gmra.mrb[0].mxu0 %v725
        %v2256 = vpop.f32.mrb[0].mxu0
        %v2257 = vadd.f32 %v2204, %v2256
        %v2258 = vpop.f32.mrb[0].mxu0
        %v2259 = vadd.f32 %v2206, %v2258
        %v2260 = vpop.f32.mrb[0].mxu0
        %v2261 = vadd.f32 %v2208, %v2260
        %v2262 = vpop.f32.mrb[0].mxu0
        %v2263 = vadd.f32 %v2210, %v2262
        %2264 = vmatprep.mubr.bf16.mxu0 %v742
        %2265 = vmatmul.mubr.bf16.gmra.mrb[0].mxu0 %v741
        %v2266 = vpop.f32.mrb[0].mxu0
        %v2267 = vadd.f32 %v2214, %v2266
        %v2268 = vpop.f32.mrb[0].mxu0
        %v2269 = vadd.f32 %v2216, %v2268
        %v2270 = vpop.f32.mrb[0].mxu0
        %v2271 = vadd.f32 %v2218, %v2270
        %v2272 = vpop.f32.mrb[0].mxu0
        %v2273 = vadd.f32 %v2220, %v2272
        %2274 = vdwg.mxu0
        %2275 = vmatprep.subr.bf16.mxu0 %v1680
        %2276 = vmatpush1.bf16.msra.mxu0 %v1679
        %2277 = vmatprep.subr.bf16.mxu0 %v1682
        %2278 = vmatpush1.bf16.msra.mxu0 %v1681
        %2279 = vmatprep.subr.bf16.mxu0 %v1684
        %2280 = vmatpush1.bf16.msra.mxu0 %v1683
        %2281 = vmatprep.subr.bf16.mxu0 %v1686
        %2282 = vmatpush1.bf16.msra.mxu0 %v1685
        %2283 = vmatprep.subr.bf16.mxu0 %v1688
        %2284 = vmatpush1.bf16.msra.mxu0 %v1687
        %2285 = vmatprep.subr.bf16.mxu0 %v1690
        %2286 = vmatpush1.bf16.msra.mxu0 %v1689
        %2287 = vmatprep.subr.bf16.mxu0 %v1692
        %2288 = vmatpush1.bf16.msra.mxu0 %v1691
        %2289 = vmatprep.subr.bf16.mxu0 %v1694
        %2290 = vmatpush1.bf16.msra.mxu0 %v1693
        %2291 = vmatprep.subr.bf16.mxu0 %v1696
        %2292 = vmatpush1.bf16.msra.mxu0 %v1695
        %2293 = vmatprep.subr.bf16.mxu0 %v1698
        %2294 = vmatpush1.bf16.msra.mxu0 %v1697
        %2295 = vmatprep.subr.bf16.mxu0 %v1700
        %2296 = vmatpush1.bf16.msra.mxu0 %v1699
        %2297 = vmatprep.subr.bf16.mxu0 %v1702
        %2298 = vmatpush1.bf16.msra.mxu0 %v1701
        %2299 = vmatprep.subr.bf16.mxu0 %v1704
        %2300 = vmatpush1.bf16.msra.mxu0 %v1703
        %2301 = vmatprep.subr.bf16.mxu0 %v1706
        %2302 = vmatpush1.bf16.msra.mxu0 %v1705
        %2303 = vmatprep.subr.bf16.mxu0 %v1708
        %2304 = vmatpush1.bf16.msra.mxu0 %v1707
        %2305 = vmatprep.subr.bf16.mxu0 %v1710
        %2306 = vmatpush1.bf16.msra.mxu0 %v1709
        %2307 = vmatprep.mubr.bf16.mxu0 %v728
        %2308 = vmatmul.mubr.bf16.gmra.mrb[0].mxu0 %v727
        %v2309 = vpop.f32.mrb[0].mxu0
        %v2310 = vadd.f32 %v2257, %v2309
        %v2311 = vpop.f32.mrb[0].mxu0
        %v2312 = vadd.f32 %v2259, %v2311
        %v2313 = vpop.f32.mrb[0].mxu0
        %v2314 = vadd.f32 %v2261, %v2313
        %v2315 = vpop.f32.mrb[0].mxu0
        %v2316 = vadd.f32 %v2263, %v2315
        %2317 = vmatprep.mubr.bf16.mxu0 %v744
        %2318 = vmatmul.mubr.bf16.gmra.mrb[0].mxu0 %v743
        %v2319 = vpop.f32.mrb[0].mxu0
        %v2320 = vadd.f32 %v2267, %v2319
        %v2321 = vpop.f32.mrb[0].mxu0
        %v2322 = vadd.f32 %v2269, %v2321
        %v2323 = vpop.f32.mrb[0].mxu0
        %v2324 = vadd.f32 %v2271, %v2323
        %v2325 = vpop.f32.mrb[0].mxu0
        %v2326 = vadd.f32 %v2273, %v2325
        %2327 = vdwg.mxu0
        %2328 = vmatprep.subr.bf16.mxu0 %v1712
        %2329 = vmatpush1.bf16.msra.mxu0 %v1711
        %2330 = vmatprep.subr.bf16.mxu0 %v1714
        %2331 = vmatpush1.bf16.msra.mxu0 %v1713
        %2332 = vmatprep.subr.bf16.mxu0 %v1716
        %2333 = vmatpush1.bf16.msra.mxu0 %v1715
        %2334 = vmatprep.subr.bf16.mxu0 %v1718
        %2335 = vmatpush1.bf16.msra.mxu0 %v1717
        %2336 = vmatprep.subr.bf16.mxu0 %v1720
        %2337 = vmatpush1.bf16.msra.mxu0 %v1719
        %2338 = vmatprep.subr.bf16.mxu0 %v1722
        %2339 = vmatpush1.bf16.msra.mxu0 %v1721
        %2340 = vmatprep.subr.bf16.mxu0 %v1724
        %2341 = vmatpush1.bf16.msra.mxu0 %v1723
        %2342 = vmatprep.subr.bf16.mxu0 %v1726
        %2343 = vmatpush1.bf16.msra.mxu0 %v1725
        %2344 = vmatprep.subr.bf16.mxu0 %v1728
        %2345 = vmatpush1.bf16.msra.mxu0 %v1727
        %2346 = vmatprep.subr.bf16.mxu0 %v1730
        %2347 = vmatpush1.bf16.msra.mxu0 %v1729
        %2348 = vmatprep.subr.bf16.mxu0 %v1732
        %2349 = vmatpush1.bf16.msra.mxu0 %v1731
        %2350 = vmatprep.subr.bf16.mxu0 %v1734
        %2351 = vmatpush1.bf16.msra.mxu0 %v1733
        %2352 = vmatprep.subr.bf16.mxu0 %v1736
        %2353 = vmatpush1.bf16.msra.mxu0 %v1735
        %2354 = vmatprep.subr.bf16.mxu0 %v1738
        %2355 = vmatpush1.bf16.msra.mxu0 %v1737
        %2356 = vmatprep.subr.bf16.mxu0 %v1740
        %2357 = vmatpush1.bf16.msra.mxu0 %v1739
        %2358 = vmatprep.subr.bf16.mxu0 %v1742
        %2359 = vmatpush1.bf16.msra.mxu0 %v1741
        %2360 = vmatprep.mubr.bf16.mxu0 %v730
        %2361 = vmatmul.mubr.bf16.gmra.mrb[0].mxu0 %v729
        %v2362 = vpop.f32.mrb[0].mxu0
        %v2363 = vadd.f32 %v2310, %v2362
        %v2364 = vpop.f32.mrb[0].mxu0
        %v2365 = vadd.f32 %v2312, %v2364
        %v2366 = vpop.f32.mrb[0].mxu0
        %v2367 = vadd.f32 %v2314, %v2366
        %v2368 = vpop.f32.mrb[0].mxu0
        %v2369 = vadd.f32 %v2316, %v2368
        %2370 = vmatprep.mubr.bf16.mxu0 %v746
        %2371 = vmatmul.mubr.bf16.gmra.mrb[0].mxu0 %v745
        %v2372 = vpop.f32.mrb[0].mxu0
        %v2373 = vadd.f32 %v2320, %v2372
        %v2374 = vpop.f32.mrb[0].mxu0
        %v2375 = vadd.f32 %v2322, %v2374
        %v2376 = vpop.f32.mrb[0].mxu0
        %v2377 = vadd.f32 %v2324, %v2376
        %v2378 = vpop.f32.mrb[0].mxu0
        %v2379 = vadd.f32 %v2326, %v2378
        %2380 = vdwg.mxu0
        %2381 = vmatprep.subr.bf16.mxu0 %v1744
        %2382 = vmatpush1.bf16.msra.mxu0 %v1743
        %2383 = vmatprep.subr.bf16.mxu0 %v1746
        %2384 = vmatpush1.bf16.msra.mxu0 %v1745
        %2385 = vmatprep.subr.bf16.mxu0 %v1748
        %2386 = vmatpush1.bf16.msra.mxu0 %v1747
        %2387 = vmatprep.subr.bf16.mxu0 %v1750
        %2388 = vmatpush1.bf16.msra.mxu0 %v1749
        %2389 = vmatprep.subr.bf16.mxu0 %v1752
        %2390 = vmatpush1.bf16.msra.mxu0 %v1751
        %2391 = vmatprep.subr.bf16.mxu0 %v1754
        %2392 = vmatpush1.bf16.msra.mxu0 %v1753
        %2393 = vmatprep.subr.bf16.mxu0 %v1756
        %2394 = vmatpush1.bf16.msra.mxu0 %v1755
        %2395 = vmatprep.subr.bf16.mxu0 %v1758
        %2396 = vmatpush1.bf16.msra.mxu0 %v1757
        %2397 = vmatprep.subr.bf16.mxu0 %v1760
        %2398 = vmatpush1.bf16.msra.mxu0 %v1759
        %2399 = vmatprep.subr.bf16.mxu0 %v1762
        %2400 = vmatpush1.bf16.msra.mxu0 %v1761
        %2401 = vmatprep.subr.bf16.mxu0 %v1764
        %2402 = vmatpush1.bf16.msra.mxu0 %v1763
        %2403 = vmatprep.subr.bf16.mxu0 %v1766
        %2404 = vmatpush1.bf16.msra.mxu0 %v1765
        %2405 = vmatprep.subr.bf16.mxu0 %v1768
        %2406 = vmatpush1.bf16.msra.mxu0 %v1767
        %2407 = vmatprep.subr.bf16.mxu0 %v1770
        %2408 = vmatpush1.bf16.msra.mxu0 %v1769
        %2409 = vmatprep.subr.bf16.mxu0 %v1772
        %2410 = vmatpush1.bf16.msra.mxu0 %v1771
        %2411 = vmatprep.subr.bf16.mxu0 %v1774
        %2412 = vmatpush1.bf16.msra.mxu0 %v1773
        %2413 = vmatprep.mubr.bf16.mxu0 %v732
        %2414 = vmatmul.mubr.bf16.gmra.mrb[0].mxu0 %v731
        %v2415 = vpop.f32.mrb[0].mxu0
        %v2416 = vadd.f32 %v2363, %v2415
        %v2417 = vpop.f32.mrb[0].mxu0
        %v2418 = vadd.f32 %v2365, %v2417
        %v2419 = vpop.f32.mrb[0].mxu0
        %v2420 = vadd.f32 %v2367, %v2419
        %v2421 = vpop.f32.mrb[0].mxu0
        %v2422 = vadd.f32 %v2369, %v2421
        %2423 = vmatprep.mubr.bf16.mxu0 %v748
        %2424 = vmatmul.mubr.bf16.gmra.mrb[0].mxu0 %v747
        %v2425 = vpop.f32.mrb[0].mxu0
        %v2426 = vadd.f32 %v2373, %v2425
        %v2427 = vpop.f32.mrb[0].mxu0
        %v2428 = vadd.f32 %v2375, %v2427
        %v2429 = vpop.f32.mrb[0].mxu0
        %v2430 = vadd.f32 %v2377, %v2429
        %v2431 = vpop.f32.mrb[0].mxu0
        %v2432 = vadd.f32 %v2379, %v2431
        %2433 = vdwg.mxu0
        %2434 = vmatprep.subr.bf16.mxu0 %v1776
        %2435 = vmatpush1.bf16.msra.mxu0 %v1775
        %2436 = vmatprep.subr.bf16.mxu0 %v1778
        %2437 = vmatpush1.bf16.msra.mxu0 %v1777
        %2438 = vmatprep.subr.bf16.mxu0 %v1780
        %2439 = vmatpush1.bf16.msra.mxu0 %v1779
        %2440 = vmatprep.subr.bf16.mxu0 %v1782
        %2441 = vmatpush1.bf16.msra.mxu0 %v1781
        %2442 = vmatprep.subr.bf16.mxu0 %v1784
        %2443 = vmatpush1.bf16.msra.mxu0 %v1783
        %2444 = vmatprep.subr.bf16.mxu0 %v1786
        %2445 = vmatpush1.bf16.msra.mxu0 %v1785
        %2446 = vmatprep.subr.bf16.mxu0 %v1788
        %2447 = vmatpush1.bf16.msra.mxu0 %v1787
        %2448 = vmatprep.subr.bf16.mxu0 %v1790
        %2449 = vmatpush1.bf16.msra.mxu0 %v1789
        %2450 = vmatprep.subr.bf16.mxu0 %v1792
        %2451 = vmatpush1.bf16.msra.mxu0 %v1791
        %2452 = vmatprep.subr.bf16.mxu0 %v1794
        %2453 = vmatpush1.bf16.msra.mxu0 %v1793
        %2454 = vmatprep.subr.bf16.mxu0 %v1796
        %2455 = vmatpush1.bf16.msra.mxu0 %v1795
        %2456 = vmatprep.subr.bf16.mxu0 %v1798
        %2457 = vmatpush1.bf16.msra.mxu0 %v1797
        %2458 = vmatprep.subr.bf16.mxu0 %v1800
        %2459 = vmatpush1.bf16.msra.mxu0 %v1799
        %2460 = vmatprep.subr.bf16.mxu0 %v1802
        %2461 = vmatpush1.bf16.msra.mxu0 %v1801
        %2462 = vmatprep.subr.bf16.mxu0 %v1804
        %2463 = vmatpush1.bf16.msra.mxu0 %v1803
        %2464 = vmatprep.subr.bf16.mxu0 %v1806
        %2465 = vmatpush1.bf16.msra.mxu0 %v1805
        %2466 = vmatprep.mubr.bf16.mxu0 %v734
        %2467 = vmatmul.mubr.bf16.gmra.mrb[0].mxu0 %v733
        %v2468 = vpop.f32.mrb[0].mxu0
        %v2469 = vadd.f32 %v2416, %v2468
        %v2470 = vpop.f32.mrb[0].mxu0
        %v2471 = vadd.f32 %v2418, %v2470
        %v2472 = vpop.f32.mrb[0].mxu0
        %v2473 = vadd.f32 %v2420, %v2472
        %v2474 = vpop.f32.mrb[0].mxu0
        %v2475 = vadd.f32 %v2422, %v2474
        %2476 = vmatprep.mubr.bf16.mxu0 %v750
        %2477 = vmatmul.mubr.bf16.gmra.mrb[0].mxu0 %v749
        %v2478 = vpop.f32.mrb[0].mxu0
        %v2479 = vadd.f32 %v2426, %v2478
        %v2480 = vpop.f32.mrb[0].mxu0
        %v2481 = vadd.f32 %v2428, %v2480
        %v2482 = vpop.f32.mrb[0].mxu0
        %v2483 = vadd.f32 %v2430, %v2482
        %v2484 = vpop.f32.mrb[0].mxu0
        %v2485 = vadd.f32 %v2432, %v2484
        %2486 = vdwg.mxu0
        %v2487 = vld [vmem:[%s283] sm:$0xff]
        %v2488 = vld [vmem:[%s283 + $0x8] sm:$0xff]
        %v2489 = vld [vmem:[%s283 + $0x10] sm:$0xff]
        %v2490 = vld [vmem:[%s283 + $0x18] sm:$0xff]
        %v2491 = vld [vmem:[%s283 + $0x20] sm:$0xff]
        %v2492 = vld [vmem:[%s283 + $0x28] sm:$0xff]
        %v2493 = vld [vmem:[%s283 + $0x30] sm:$0xff]
        %v2494 = vld [vmem:[%s283 + $0x38] sm:$0xff]
        %v2495 = vld [vmem:[%s283 + $0x40] sm:$0xff]
        %v2496 = vld [vmem:[%s283 + $0x48] sm:$0xff]
        %v2497 = vld [vmem:[%s283 + $0x50] sm:$0xff]
        %v2498 = vld [vmem:[%s283 + $0x58] sm:$0xff]
        %v2499 = vld [vmem:[%s283 + $0x60] sm:$0xff]
        %v2500 = vld [vmem:[%s283 + $0x68] sm:$0xff]
        %v2501 = vld [vmem:[%s283 + $0x70] sm:$0xff]
        %v2502 = vld [vmem:[%s283 + $0x78] sm:$0xff]
        %v2503 = vld [vmem:[%s283 + $0x80] sm:$0xff]
        %v2504 = vld [vmem:[%s283 + $0x88] sm:$0xff]
        %v2505 = vld [vmem:[%s283 + $0x90] sm:$0xff]
        %v2506 = vld [vmem:[%s283 + $0x98] sm:$0xff]
        %v2507 = vld [vmem:[%s283 + $0xa0] sm:$0xff]
        %v2508 = vld [vmem:[%s283 + $0xa8] sm:$0xff]
        %v2509 = vld [vmem:[%s283 + $0xb0] sm:$0xff]
        %v2510 = vld [vmem:[%s283 + $0xb8] sm:$0xff]
        %v2511 = vld [vmem:[%s283 + $0xc0] sm:$0xff]
        %v2512 = vld [vmem:[%s283 + $0xc8] sm:$0xff]
        %v2513 = vld [vmem:[%s283 + $0xd0] sm:$0xff]
        %v2514 = vld [vmem:[%s283 + $0xd8] sm:$0xff]
        %v2515 = vld [vmem:[%s283 + $0xe0] sm:$0xff]
        %v2516 = vld [vmem:[%s283 + $0xe8] sm:$0xff]
        %v2517 = vld [vmem:[%s283 + $0xf0] sm:$0xff]
        %v2518 = vld [vmem:[%s283 + $0xf8] sm:$0xff]
        %v2519 = vld [vmem:[%s283 + $0x100] sm:$0xff]
        %v2520 = vld [vmem:[%s283 + $0x108] sm:$0xff]
        %v2521 = vld [vmem:[%s283 + $0x110] sm:$0xff]
        %v2522 = vld [vmem:[%s283 + $0x118] sm:$0xff]
        %v2523 = vld [vmem:[%s283 + $0x120] sm:$0xff]
        %v2524 = vld [vmem:[%s283 + $0x128] sm:$0xff]
        %v2525 = vld [vmem:[%s283 + $0x130] sm:$0xff]
        %v2526 = vld [vmem:[%s283 + $0x138] sm:$0xff]
        %v2527 = vld [vmem:[%s283 + $0x140] sm:$0xff]
        %v2528 = vld [vmem:[%s283 + $0x148] sm:$0xff]
        %v2529 = vld [vmem:[%s283 + $0x150] sm:$0xff]
        %v2530 = vld [vmem:[%s283 + $0x158] sm:$0xff]
        %v2531 = vld [vmem:[%s283 + $0x160] sm:$0xff]
        %v2532 = vld [vmem:[%s283 + $0x168] sm:$0xff]
        %v2533 = vld [vmem:[%s283 + $0x170] sm:$0xff]
        %v2534 = vld [vmem:[%s283 + $0x178] sm:$0xff]
        %v2535 = vld [vmem:[%s283 + $0x180] sm:$0xff]
        %v2536 = vld [vmem:[%s283 + $0x188] sm:$0xff]
        %v2537 = vld [vmem:[%s283 + $0x190] sm:$0xff]
        %v2538 = vld [vmem:[%s283 + $0x198] sm:$0xff]
        %v2539 = vld [vmem:[%s283 + $0x1a0] sm:$0xff]
        %v2540 = vld [vmem:[%s283 + $0x1a8] sm:$0xff]
        %v2541 = vld [vmem:[%s283 + $0x1b0] sm:$0xff]
        %v2542 = vld [vmem:[%s283 + $0x1b8] sm:$0xff]
        %v2543 = vld [vmem:[%s283 + $0x1c0] sm:$0xff]
        %v2544 = vld [vmem:[%s283 + $0x1c8] sm:$0xff]
        %v2545 = vld [vmem:[%s283 + $0x1d0] sm:$0xff]
        %v2546 = vld [vmem:[%s283 + $0x1d8] sm:$0xff]
        %v2547 = vld [vmem:[%s283 + $0x1e0] sm:$0xff]
        %v2548 = vld [vmem:[%s283 + $0x1e8] sm:$0xff]
        %v2549 = vld [vmem:[%s283 + $0x1f0] sm:$0xff]
        %v2550 = vld [vmem:[%s283 + $0x1f8] sm:$0xff]
        %v2551 = vld [vmem:[%s283 + $0x200] sm:$0xff]
        %v2552 = vld [vmem:[%s283 + $0x208] sm:$0xff]
        %v2553 = vld [vmem:[%s283 + $0x210] sm:$0xff]
        %v2554 = vld [vmem:[%s283 + $0x218] sm:$0xff]
        %v2555 = vld [vmem:[%s283 + $0x220] sm:$0xff]
        %v2556 = vld [vmem:[%s283 + $0x228] sm:$0xff]
        %v2557 = vld [vmem:[%s283 + $0x230] sm:$0xff]
        %v2558 = vld [vmem:[%s283 + $0x238] sm:$0xff]
        %v2559 = vld [vmem:[%s283 + $0x240] sm:$0xff]
        %v2560 = vld [vmem:[%s283 + $0x248] sm:$0xff]
        %v2561 = vld [vmem:[%s283 + $0x250] sm:$0xff]
        %v2562 = vld [vmem:[%s283 + $0x258] sm:$0xff]
        %v2563 = vld [vmem:[%s283 + $0x260] sm:$0xff]
        %v2564 = vld [vmem:[%s283 + $0x268] sm:$0xff]
        %v2565 = vld [vmem:[%s283 + $0x270] sm:$0xff]
        %v2566 = vld [vmem:[%s283 + $0x278] sm:$0xff]
        %v2567 = vld [vmem:[%s283 + $0x280] sm:$0xff]
        %v2568 = vld [vmem:[%s283 + $0x288] sm:$0xff]
        %v2569 = vld [vmem:[%s283 + $0x290] sm:$0xff]
        %v2570 = vld [vmem:[%s283 + $0x298] sm:$0xff]
        %v2571 = vld [vmem:[%s283 + $0x2a0] sm:$0xff]
        %v2572 = vld [vmem:[%s283 + $0x2a8] sm:$0xff]
        %v2573 = vld [vmem:[%s283 + $0x2b0] sm:$0xff]
        %v2574 = vld [vmem:[%s283 + $0x2b8] sm:$0xff]
        %v2575 = vld [vmem:[%s283 + $0x2c0] sm:$0xff]
        %v2576 = vld [vmem:[%s283 + $0x2c8] sm:$0xff]
        %v2577 = vld [vmem:[%s283 + $0x2d0] sm:$0xff]
        %v2578 = vld [vmem:[%s283 + $0x2d8] sm:$0xff]
        %v2579 = vld [vmem:[%s283 + $0x2e0] sm:$0xff]
        %v2580 = vld [vmem:[%s283 + $0x2e8] sm:$0xff]
        %v2581 = vld [vmem:[%s283 + $0x2f0] sm:$0xff]
        %v2582 = vld [vmem:[%s283 + $0x2f8] sm:$0xff]
        %v2583 = vld [vmem:[%s283 + $0x300] sm:$0xff]
        %v2584 = vld [vmem:[%s283 + $0x308] sm:$0xff]
        %v2585 = vld [vmem:[%s283 + $0x310] sm:$0xff]
        %v2586 = vld [vmem:[%s283 + $0x318] sm:$0xff]
        %v2587 = vld [vmem:[%s283 + $0x320] sm:$0xff]
        %v2588 = vld [vmem:[%s283 + $0x328] sm:$0xff]
        %v2589 = vld [vmem:[%s283 + $0x330] sm:$0xff]
        %v2590 = vld [vmem:[%s283 + $0x338] sm:$0xff]
        %v2591 = vld [vmem:[%s283 + $0x340] sm:$0xff]
        %v2592 = vld [vmem:[%s283 + $0x348] sm:$0xff]
        %v2593 = vld [vmem:[%s283 + $0x350] sm:$0xff]
        %v2594 = vld [vmem:[%s283 + $0x358] sm:$0xff]
        %v2595 = vld [vmem:[%s283 + $0x360] sm:$0xff]
        %v2596 = vld [vmem:[%s283 + $0x368] sm:$0xff]
        %v2597 = vld [vmem:[%s283 + $0x370] sm:$0xff]
        %v2598 = vld [vmem:[%s283 + $0x378] sm:$0xff]
        %v2599 = vld [vmem:[%s283 + $0x380] sm:$0xff]
        %v2600 = vld [vmem:[%s283 + $0x388] sm:$0xff]
        %v2601 = vld [vmem:[%s283 + $0x390] sm:$0xff]
        %v2602 = vld [vmem:[%s283 + $0x398] sm:$0xff]
        %v2603 = vld [vmem:[%s283 + $0x3a0] sm:$0xff]
        %v2604 = vld [vmem:[%s283 + $0x3a8] sm:$0xff]
        %v2605 = vld [vmem:[%s283 + $0x3b0] sm:$0xff]
        %v2606 = vld [vmem:[%s283 + $0x3b8] sm:$0xff]
        %v2607 = vld [vmem:[%s283 + $0x3c0] sm:$0xff]
        %v2608 = vld [vmem:[%s283 + $0x3c8] sm:$0xff]
        %v2609 = vld [vmem:[%s283 + $0x3d0] sm:$0xff]
        %v2610 = vld [vmem:[%s283 + $0x3d8] sm:$0xff]
        %v2611 = vld [vmem:[%s283 + $0x3e0] sm:$0xff]
        %v2612 = vld [vmem:[%s283 + $0x3e8] sm:$0xff]
        %v2613 = vld [vmem:[%s283 + $0x3f0] sm:$0xff]
        %v2614 = vld [vmem:[%s283 + $0x3f8] sm:$0xff]
        %v2615 = vld [vmem:[%s283 + $0x400] sm:$0xff]
        %v2616 = vld [vmem:[%s283 + $0x408] sm:$0xff]
        %v2617 = vld [vmem:[%s283 + $0x410] sm:$0xff]
        %v2618 = vld [vmem:[%s283 + $0x418] sm:$0xff]
        %v2619 = vld [vmem:[%s283 + $0x420] sm:$0xff]
        %v2620 = vld [vmem:[%s283 + $0x428] sm:$0xff]
        %v2621 = vld [vmem:[%s283 + $0x430] sm:$0xff]
        %v2622 = vld [vmem:[%s283 + $0x438] sm:$0xff]
        %v2623 = vld [vmem:[%s283 + $0x440] sm:$0xff]
        %v2624 = vld [vmem:[%s283 + $0x448] sm:$0xff]
        %v2625 = vld [vmem:[%s283 + $0x450] sm:$0xff]
        %v2626 = vld [vmem:[%s283 + $0x458] sm:$0xff]
        %v2627 = vld [vmem:[%s283 + $0x460] sm:$0xff]
        %v2628 = vld [vmem:[%s283 + $0x468] sm:$0xff]
        %v2629 = vld [vmem:[%s283 + $0x470] sm:$0xff]
        %v2630 = vld [vmem:[%s283 + $0x478] sm:$0xff]
        %v2631 = vld [vmem:[%s283 + $0x480] sm:$0xff]
        %v2632 = vld [vmem:[%s283 + $0x488] sm:$0xff]
        %v2633 = vld [vmem:[%s283 + $0x490] sm:$0xff]
        %v2634 = vld [vmem:[%s283 + $0x498] sm:$0xff]
        %v2635 = vld [vmem:[%s283 + $0x4a0] sm:$0xff]
        %v2636 = vld [vmem:[%s283 + $0x4a8] sm:$0xff]
        %v2637 = vld [vmem:[%s283 + $0x4b0] sm:$0xff]
        %v2638 = vld [vmem:[%s283 + $0x4b8] sm:$0xff]
        %v2639 = vld [vmem:[%s283 + $0x4c0] sm:$0xff]
        %v2640 = vld [vmem:[%s283 + $0x4c8] sm:$0xff]
        %v2641 = vld [vmem:[%s283 + $0x4d0] sm:$0xff]
        %v2642 = vld [vmem:[%s283 + $0x4d8] sm:$0xff]
        %v2643 = vld [vmem:[%s283 + $0x4e0] sm:$0xff]
        %v2644 = vld [vmem:[%s283 + $0x4e8] sm:$0xff]
        %v2645 = vld [vmem:[%s283 + $0x4f0] sm:$0xff]
        %v2646 = vld [vmem:[%s283 + $0x4f8] sm:$0xff]
        %v2647 = vld [vmem:[%s283 + $0x500] sm:$0xff]
        %v2648 = vld [vmem:[%s283 + $0x508] sm:$0xff]
        %v2649 = vld [vmem:[%s283 + $0x510] sm:$0xff]
        %v2650 = vld [vmem:[%s283 + $0x518] sm:$0xff]
        %v2651 = vld [vmem:[%s283 + $0x520] sm:$0xff]
        %v2652 = vld [vmem:[%s283 + $0x528] sm:$0xff]
        %v2653 = vld [vmem:[%s283 + $0x530] sm:$0xff]
        %v2654 = vld [vmem:[%s283 + $0x538] sm:$0xff]
        %v2655 = vld [vmem:[%s283 + $0x540] sm:$0xff]
        %v2656 = vld [vmem:[%s283 + $0x548] sm:$0xff]
        %v2657 = vld [vmem:[%s283 + $0x550] sm:$0xff]
        %v2658 = vld [vmem:[%s283 + $0x558] sm:$0xff]
        %v2659 = vld [vmem:[%s283 + $0x560] sm:$0xff]
        %v2660 = vld [vmem:[%s283 + $0x568] sm:$0xff]
        %v2661 = vld [vmem:[%s283 + $0x570] sm:$0xff]
        %v2662 = vld [vmem:[%s283 + $0x578] sm:$0xff]
        %v2663 = vld [vmem:[%s283 + $0x580] sm:$0xff]
        %v2664 = vld [vmem:[%s283 + $0x588] sm:$0xff]
        %v2665 = vld [vmem:[%s283 + $0x590] sm:$0xff]
        %v2666 = vld [vmem:[%s283 + $0x598] sm:$0xff]
        %v2667 = vld [vmem:[%s283 + $0x5a0] sm:$0xff]
        %v2668 = vld [vmem:[%s283 + $0x5a8] sm:$0xff]
        %v2669 = vld [vmem:[%s283 + $0x5b0] sm:$0xff]
        %v2670 = vld [vmem:[%s283 + $0x5b8] sm:$0xff]
        %v2671 = vld [vmem:[%s283 + $0x5c0] sm:$0xff]
        %v2672 = vld [vmem:[%s283 + $0x5c8] sm:$0xff]
        %v2673 = vld [vmem:[%s283 + $0x5d0] sm:$0xff]
        %v2674 = vld [vmem:[%s283 + $0x5d8] sm:$0xff]
        %v2675 = vld [vmem:[%s283 + $0x5e0] sm:$0xff]
        %v2676 = vld [vmem:[%s283 + $0x5e8] sm:$0xff]
        %v2677 = vld [vmem:[%s283 + $0x5f0] sm:$0xff]
        %v2678 = vld [vmem:[%s283 + $0x5f8] sm:$0xff]
        %v2679 = vld [vmem:[%s283 + $0x600] sm:$0xff]
        %v2680 = vld [vmem:[%s283 + $0x608] sm:$0xff]
        %v2681 = vld [vmem:[%s283 + $0x610] sm:$0xff]
        %v2682 = vld [vmem:[%s283 + $0x618] sm:$0xff]
        %v2683 = vld [vmem:[%s283 + $0x620] sm:$0xff]
        %v2684 = vld [vmem:[%s283 + $0x628] sm:$0xff]
        %v2685 = vld [vmem:[%s283 + $0x630] sm:$0xff]
        %v2686 = vld [vmem:[%s283 + $0x638] sm:$0xff]
        %v2687 = vld [vmem:[%s283 + $0x640] sm:$0xff]
        %v2688 = vld [vmem:[%s283 + $0x648] sm:$0xff]
        %v2689 = vld [vmem:[%s283 + $0x650] sm:$0xff]
        %v2690 = vld [vmem:[%s283 + $0x658] sm:$0xff]
        %v2691 = vld [vmem:[%s283 + $0x660] sm:$0xff]
        %v2692 = vld [vmem:[%s283 + $0x668] sm:$0xff]
        %v2693 = vld [vmem:[%s283 + $0x670] sm:$0xff]
        %v2694 = vld [vmem:[%s283 + $0x678] sm:$0xff]
        %v2695 = vld [vmem:[%s283 + $0x680] sm:$0xff]
        %v2696 = vld [vmem:[%s283 + $0x688] sm:$0xff]
        %v2697 = vld [vmem:[%s283 + $0x690] sm:$0xff]
        %v2698 = vld [vmem:[%s283 + $0x698] sm:$0xff]
        %v2699 = vld [vmem:[%s283 + $0x6a0] sm:$0xff]
        %v2700 = vld [vmem:[%s283 + $0x6a8] sm:$0xff]
        %v2701 = vld [vmem:[%s283 + $0x6b0] sm:$0xff]
        %v2702 = vld [vmem:[%s283 + $0x6b8] sm:$0xff]
        %v2703 = vld [vmem:[%s283 + $0x6c0] sm:$0xff]
        %v2704 = vld [vmem:[%s283 + $0x6c8] sm:$0xff]
        %v2705 = vld [vmem:[%s283 + $0x6d0] sm:$0xff]
        %v2706 = vld [vmem:[%s283 + $0x6d8] sm:$0xff]
        %v2707 = vld [vmem:[%s283 + $0x6e0] sm:$0xff]
        %v2708 = vld [vmem:[%s283 + $0x6e8] sm:$0xff]
        %v2709 = vld [vmem:[%s283 + $0x6f0] sm:$0xff]
        %v2710 = vld [vmem:[%s283 + $0x6f8] sm:$0xff]
        %v2711 = vld [vmem:[%s283 + $0x700] sm:$0xff]
        %v2712 = vld [vmem:[%s283 + $0x708] sm:$0xff]
        %v2713 = vld [vmem:[%s283 + $0x710] sm:$0xff]
        %v2714 = vld [vmem:[%s283 + $0x718] sm:$0xff]
        %v2715 = vld [vmem:[%s283 + $0x720] sm:$0xff]
        %v2716 = vld [vmem:[%s283 + $0x728] sm:$0xff]
        %v2717 = vld [vmem:[%s283 + $0x730] sm:$0xff]
        %v2718 = vld [vmem:[%s283 + $0x738] sm:$0xff]
        %v2719 = vld [vmem:[%s283 + $0x740] sm:$0xff]
        %v2720 = vld [vmem:[%s283 + $0x748] sm:$0xff]
        %v2721 = vld [vmem:[%s283 + $0x750] sm:$0xff]
        %v2722 = vld [vmem:[%s283 + $0x758] sm:$0xff]
        %v2723 = vld [vmem:[%s283 + $0x760] sm:$0xff]
        %v2724 = vld [vmem:[%s283 + $0x768] sm:$0xff]
        %v2725 = vld [vmem:[%s283 + $0x770] sm:$0xff]
        %v2726 = vld [vmem:[%s283 + $0x778] sm:$0xff]
        %v2727 = vld [vmem:[%s283 + $0x780] sm:$0xff]
        %v2728 = vld [vmem:[%s283 + $0x788] sm:$0xff]
        %v2729 = vld [vmem:[%s283 + $0x790] sm:$0xff]
        %v2730 = vld [vmem:[%s283 + $0x798] sm:$0xff]
        %v2731 = vld [vmem:[%s283 + $0x7a0] sm:$0xff]
        %v2732 = vld [vmem:[%s283 + $0x7a8] sm:$0xff]
        %v2733 = vld [vmem:[%s283 + $0x7b0] sm:$0xff]
        %v2734 = vld [vmem:[%s283 + $0x7b8] sm:$0xff]
        %v2735 = vld [vmem:[%s283 + $0x7c0] sm:$0xff]
        %v2736 = vld [vmem:[%s283 + $0x7c8] sm:$0xff]
        %v2737 = vld [vmem:[%s283 + $0x7d0] sm:$0xff]
        %v2738 = vld [vmem:[%s283 + $0x7d8] sm:$0xff]
        %v2739 = vld [vmem:[%s283 + $0x7e0] sm:$0xff]
        %v2740 = vld [vmem:[%s283 + $0x7e8] sm:$0xff]
        %v2741 = vld [vmem:[%s283 + $0x7f0] sm:$0xff]
        %v2742 = vld [vmem:[%s283 + $0x7f8] sm:$0xff]
        %v2999 = vunpack.c.l.b16 %v2487
        %v3000 = vunpack.c.h.b16 %v2487
        %v3001 = vunpack.c.l.b16 %v2488
        %v3002 = vunpack.c.h.b16 %v2488
        %v3003 = vunpack.c.l.b16 %v2489
        %v3004 = vunpack.c.h.b16 %v2489
        %v3005 = vunpack.c.l.b16 %v2490
        %v3006 = vunpack.c.h.b16 %v2490
        %v3007 = vunpack.c.l.b16 %v2491
        %v3008 = vunpack.c.h.b16 %v2491
        %v3009 = vunpack.c.l.b16 %v2492
        %v3010 = vunpack.c.h.b16 %v2492
        %v3011 = vunpack.c.l.b16 %v2493
        %v3012 = vunpack.c.h.b16 %v2493
        %v3013 = vunpack.c.l.b16 %v2494
        %v3014 = vunpack.c.h.b16 %v2494
        %v3015 = vunpack.c.l.b16 %v2495
        %v3016 = vunpack.c.h.b16 %v2495
        %v3017 = vunpack.c.l.b16 %v2496
        %v3018 = vunpack.c.h.b16 %v2496
        %v3019 = vunpack.c.l.b16 %v2497
        %v3020 = vunpack.c.h.b16 %v2497
        %v3021 = vunpack.c.l.b16 %v2498
        %v3022 = vunpack.c.h.b16 %v2498
        %v3023 = vunpack.c.l.b16 %v2499
        %v3024 = vunpack.c.h.b16 %v2499
        %v3025 = vunpack.c.l.b16 %v2500
        %v3026 = vunpack.c.h.b16 %v2500
        %v3027 = vunpack.c.l.b16 %v2501
        %v3028 = vunpack.c.h.b16 %v2501
        %v3029 = vunpack.c.l.b16 %v2502
        %v3030 = vunpack.c.h.b16 %v2502
        %v3031 = vunpack.c.l.b16 %v2503
        %v3032 = vunpack.c.h.b16 %v2503
        %v3033 = vunpack.c.l.b16 %v2504
        %v3034 = vunpack.c.h.b16 %v2504
        %v3035 = vunpack.c.l.b16 %v2505
        %v3036 = vunpack.c.h.b16 %v2505
        %v3037 = vunpack.c.l.b16 %v2506
        %v3038 = vunpack.c.h.b16 %v2506
        %v3039 = vunpack.c.l.b16 %v2507
        %v3040 = vunpack.c.h.b16 %v2507
        %v3041 = vunpack.c.l.b16 %v2508
        %v3042 = vunpack.c.h.b16 %v2508
        %v3043 = vunpack.c.l.b16 %v2509
        %v3044 = vunpack.c.h.b16 %v2509
        %v3045 = vunpack.c.l.b16 %v2510
        %v3046 = vunpack.c.h.b16 %v2510
        %v3047 = vunpack.c.l.b16 %v2511
        %v3048 = vunpack.c.h.b16 %v2511
        %v3049 = vunpack.c.l.b16 %v2512
        %v3050 = vunpack.c.h.b16 %v2512
        %v3051 = vunpack.c.l.b16 %v2513
        %v3052 = vunpack.c.h.b16 %v2513
        %v3053 = vunpack.c.l.b16 %v2514
        %v3054 = vunpack.c.h.b16 %v2514
        %v3055 = vunpack.c.l.b16 %v2515
        %v3056 = vunpack.c.h.b16 %v2515
        %v3057 = vunpack.c.l.b16 %v2516
        %v3058 = vunpack.c.h.b16 %v2516
        %v3059 = vunpack.c.l.b16 %v2517
        %v3060 = vunpack.c.h.b16 %v2517
        %v3061 = vunpack.c.l.b16 %v2518
        %v3062 = vunpack.c.h.b16 %v2518
        %v3063 = vunpack.c.l.b16 %v2519
        %v3064 = vunpack.c.h.b16 %v2519
        %v3065 = vunpack.c.l.b16 %v2520
        %v3066 = vunpack.c.h.b16 %v2520
        %v3067 = vunpack.c.l.b16 %v2521
        %v3068 = vunpack.c.h.b16 %v2521
        %v3069 = vunpack.c.l.b16 %v2522
        %v3070 = vunpack.c.h.b16 %v2522
        %v3071 = vunpack.c.l.b16 %v2523
        %v3072 = vunpack.c.h.b16 %v2523
        %v3073 = vunpack.c.l.b16 %v2524
        %v3074 = vunpack.c.h.b16 %v2524
        %v3075 = vunpack.c.l.b16 %v2525
        %v3076 = vunpack.c.h.b16 %v2525
        %v3077 = vunpack.c.l.b16 %v2526
        %v3078 = vunpack.c.h.b16 %v2526
        %v3079 = vunpack.c.l.b16 %v2527
        %v3080 = vunpack.c.h.b16 %v2527
        %v3081 = vunpack.c.l.b16 %v2528
        %v3082 = vunpack.c.h.b16 %v2528
        %v3083 = vunpack.c.l.b16 %v2529
        %v3084 = vunpack.c.h.b16 %v2529
        %v3085 = vunpack.c.l.b16 %v2530
        %v3086 = vunpack.c.h.b16 %v2530
        %v3087 = vunpack.c.l.b16 %v2531
        %v3088 = vunpack.c.h.b16 %v2531
        %v3089 = vunpack.c.l.b16 %v2532
        %v3090 = vunpack.c.h.b16 %v2532
        %v3091 = vunpack.c.l.b16 %v2533
        %v3092 = vunpack.c.h.b16 %v2533
        %v3093 = vunpack.c.l.b16 %v2534
        %v3094 = vunpack.c.h.b16 %v2534
        %v3095 = vunpack.c.l.b16 %v2535
        %v3096 = vunpack.c.h.b16 %v2535
        %v3097 = vunpack.c.l.b16 %v2536
        %v3098 = vunpack.c.h.b16 %v2536
        %v3099 = vunpack.c.l.b16 %v2537
        %v3100 = vunpack.c.h.b16 %v2537
        %v3101 = vunpack.c.l.b16 %v2538
        %v3102 = vunpack.c.h.b16 %v2538
        %v3103 = vunpack.c.l.b16 %v2539
        %v3104 = vunpack.c.h.b16 %v2539
        %v3105 = vunpack.c.l.b16 %v2540
        %v3106 = vunpack.c.h.b16 %v2540
        %v3107 = vunpack.c.l.b16 %v2541
        %v3108 = vunpack.c.h.b16 %v2541
        %v3109 = vunpack.c.l.b16 %v2542
        %v3110 = vunpack.c.h.b16 %v2542
        %v3111 = vunpack.c.l.b16 %v2543
        %v3112 = vunpack.c.h.b16 %v2543
        %v3113 = vunpack.c.l.b16 %v2544
        %v3114 = vunpack.c.h.b16 %v2544
        %v3115 = vunpack.c.l.b16 %v2545
        %v3116 = vunpack.c.h.b16 %v2545
        %v3117 = vunpack.c.l.b16 %v2546
        %v3118 = vunpack.c.h.b16 %v2546
        %v3119 = vunpack.c.l.b16 %v2547
        %v3120 = vunpack.c.h.b16 %v2547
        %v3121 = vunpack.c.l.b16 %v2548
        %v3122 = vunpack.c.h.b16 %v2548
        %v3123 = vunpack.c.l.b16 %v2549
        %v3124 = vunpack.c.h.b16 %v2549
        %v3125 = vunpack.c.l.b16 %v2550
        %v3126 = vunpack.c.h.b16 %v2550
        %v3127 = vunpack.c.l.b16 %v2551
        %v3128 = vunpack.c.h.b16 %v2551
        %v3129 = vunpack.c.l.b16 %v2552
        %v3130 = vunpack.c.h.b16 %v2552
        %v3131 = vunpack.c.l.b16 %v2553
        %v3132 = vunpack.c.h.b16 %v2553
        %v3133 = vunpack.c.l.b16 %v2554
        %v3134 = vunpack.c.h.b16 %v2554
        %v3135 = vunpack.c.l.b16 %v2555
        %v3136 = vunpack.c.h.b16 %v2555
        %v3137 = vunpack.c.l.b16 %v2556
        %v3138 = vunpack.c.h.b16 %v2556
        %v3139 = vunpack.c.l.b16 %v2557
        %v3140 = vunpack.c.h.b16 %v2557
        %v3141 = vunpack.c.l.b16 %v2558
        %v3142 = vunpack.c.h.b16 %v2558
        %v3143 = vunpack.c.l.b16 %v2559
        %v3144 = vunpack.c.h.b16 %v2559
        %v3145 = vunpack.c.l.b16 %v2560
        %v3146 = vunpack.c.h.b16 %v2560
        %v3147 = vunpack.c.l.b16 %v2561
        %v3148 = vunpack.c.h.b16 %v2561
        %v3149 = vunpack.c.l.b16 %v2562
        %v3150 = vunpack.c.h.b16 %v2562
        %v3151 = vunpack.c.l.b16 %v2563
        %v3152 = vunpack.c.h.b16 %v2563
        %v3153 = vunpack.c.l.b16 %v2564
        %v3154 = vunpack.c.h.b16 %v2564
        %v3155 = vunpack.c.l.b16 %v2565
        %v3156 = vunpack.c.h.b16 %v2565
        %v3157 = vunpack.c.l.b16 %v2566
        %v3158 = vunpack.c.h.b16 %v2566
        %v3159 = vunpack.c.l.b16 %v2567
        %v3160 = vunpack.c.h.b16 %v2567
        %v3161 = vunpack.c.l.b16 %v2568
        %v3162 = vunpack.c.h.b16 %v2568
        %v3163 = vunpack.c.l.b16 %v2569
        %v3164 = vunpack.c.h.b16 %v2569
        %v3165 = vunpack.c.l.b16 %v2570
        %v3166 = vunpack.c.h.b16 %v2570
        %v3167 = vunpack.c.l.b16 %v2571
        %v3168 = vunpack.c.h.b16 %v2571
        %v3169 = vunpack.c.l.b16 %v2572
        %v3170 = vunpack.c.h.b16 %v2572
        %v3171 = vunpack.c.l.b16 %v2573
        %v3172 = vunpack.c.h.b16 %v2573
        %v3173 = vunpack.c.l.b16 %v2574
        %v3174 = vunpack.c.h.b16 %v2574
        %v3175 = vunpack.c.l.b16 %v2575
        %v3176 = vunpack.c.h.b16 %v2575
        %v3177 = vunpack.c.l.b16 %v2576
        %v3178 = vunpack.c.h.b16 %v2576
        %v3179 = vunpack.c.l.b16 %v2577
        %v3180 = vunpack.c.h.b16 %v2577
        %v3181 = vunpack.c.l.b16 %v2578
        %v3182 = vunpack.c.h.b16 %v2578
        %v3183 = vunpack.c.l.b16 %v2579
        %v3184 = vunpack.c.h.b16 %v2579
        %v3185 = vunpack.c.l.b16 %v2580
        %v3186 = vunpack.c.h.b16 %v2580
        %v3187 = vunpack.c.l.b16 %v2581
        %v3188 = vunpack.c.h.b16 %v2581
        %v3189 = vunpack.c.l.b16 %v2582
        %v3190 = vunpack.c.h.b16 %v2582
        %v3191 = vunpack.c.l.b16 %v2583
        %v3192 = vunpack.c.h.b16 %v2583
        %v3193 = vunpack.c.l.b16 %v2584
        %v3194 = vunpack.c.h.b16 %v2584
        %v3195 = vunpack.c.l.b16 %v2585
        %v3196 = vunpack.c.h.b16 %v2585
        %v3197 = vunpack.c.l.b16 %v2586
        %v3198 = vunpack.c.h.b16 %v2586
        %v3199 = vunpack.c.l.b16 %v2587
        %v3200 = vunpack.c.h.b16 %v2587
        %v3201 = vunpack.c.l.b16 %v2588
        %v3202 = vunpack.c.h.b16 %v2588
        %v3203 = vunpack.c.l.b16 %v2589
        %v3204 = vunpack.c.h.b16 %v2589
        %v3205 = vunpack.c.l.b16 %v2590
        %v3206 = vunpack.c.h.b16 %v2590
        %v3207 = vunpack.c.l.b16 %v2591
        %v3208 = vunpack.c.h.b16 %v2591
        %v3209 = vunpack.c.l.b16 %v2592
        %v3210 = vunpack.c.h.b16 %v2592
        %v3211 = vunpack.c.l.b16 %v2593
        %v3212 = vunpack.c.h.b16 %v2593
        %v3213 = vunpack.c.l.b16 %v2594
        %v3214 = vunpack.c.h.b16 %v2594
        %v3215 = vunpack.c.l.b16 %v2595
        %v3216 = vunpack.c.h.b16 %v2595
        %v3217 = vunpack.c.l.b16 %v2596
        %v3218 = vunpack.c.h.b16 %v2596
        %v3219 = vunpack.c.l.b16 %v2597
        %v3220 = vunpack.c.h.b16 %v2597
        %v3221 = vunpack.c.l.b16 %v2598
        %v3222 = vunpack.c.h.b16 %v2598
        %v3223 = vunpack.c.l.b16 %v2599
        %v3224 = vunpack.c.h.b16 %v2599
        %v3225 = vunpack.c.l.b16 %v2600
        %v3226 = vunpack.c.h.b16 %v2600
        %v3227 = vunpack.c.l.b16 %v2601
        %v3228 = vunpack.c.h.b16 %v2601
        %v3229 = vunpack.c.l.b16 %v2602
        %v3230 = vunpack.c.h.b16 %v2602
        %v3231 = vunpack.c.l.b16 %v2603
        %v3232 = vunpack.c.h.b16 %v2603
        %v3233 = vunpack.c.l.b16 %v2604
        %v3234 = vunpack.c.h.b16 %v2604
        %v3235 = vunpack.c.l.b16 %v2605
        %v3236 = vunpack.c.h.b16 %v2605
        %v3237 = vunpack.c.l.b16 %v2606
        %v3238 = vunpack.c.h.b16 %v2606
        %v3239 = vunpack.c.l.b16 %v2607
        %v3240 = vunpack.c.h.b16 %v2607
        %v3241 = vunpack.c.l.b16 %v2608
        %v3242 = vunpack.c.h.b16 %v2608
        %v3243 = vunpack.c.l.b16 %v2609
        %v3244 = vunpack.c.h.b16 %v2609
        %v3245 = vunpack.c.l.b16 %v2610
        %v3246 = vunpack.c.h.b16 %v2610
        %v3247 = vunpack.c.l.b16 %v2611
        %v3248 = vunpack.c.h.b16 %v2611
        %v3249 = vunpack.c.l.b16 %v2612
        %v3250 = vunpack.c.h.b16 %v2612
        %v3251 = vunpack.c.l.b16 %v2613
        %v3252 = vunpack.c.h.b16 %v2613
        %v3253 = vunpack.c.l.b16 %v2614
        %v3254 = vunpack.c.h.b16 %v2614
        %v3255 = vunpack.c.l.b16 %v2615
        %v3256 = vunpack.c.h.b16 %v2615
        %v3257 = vunpack.c.l.b16 %v2616
        %v3258 = vunpack.c.h.b16 %v2616
        %v3259 = vunpack.c.l.b16 %v2617
        %v3260 = vunpack.c.h.b16 %v2617
        %v3261 = vunpack.c.l.b16 %v2618
        %v3262 = vunpack.c.h.b16 %v2618
        %v3263 = vunpack.c.l.b16 %v2619
        %v3264 = vunpack.c.h.b16 %v2619
        %v3265 = vunpack.c.l.b16 %v2620
        %v3266 = vunpack.c.h.b16 %v2620
        %v3267 = vunpack.c.l.b16 %v2621
        %v3268 = vunpack.c.h.b16 %v2621
        %v3269 = vunpack.c.l.b16 %v2622
        %v3270 = vunpack.c.h.b16 %v2622
        %v3271 = vunpack.c.l.b16 %v2623
        %v3272 = vunpack.c.h.b16 %v2623
        %v3273 = vunpack.c.l.b16 %v2624
        %v3274 = vunpack.c.h.b16 %v2624
        %v3275 = vunpack.c.l.b16 %v2625
        %v3276 = vunpack.c.h.b16 %v2625
        %v3277 = vunpack.c.l.b16 %v2626
        %v3278 = vunpack.c.h.b16 %v2626
        %v3279 = vunpack.c.l.b16 %v2627
        %v3280 = vunpack.c.h.b16 %v2627
        %v3281 = vunpack.c.l.b16 %v2628
        %v3282 = vunpack.c.h.b16 %v2628
        %v3283 = vunpack.c.l.b16 %v2629
        %v3284 = vunpack.c.h.b16 %v2629
        %v3285 = vunpack.c.l.b16 %v2630
        %v3286 = vunpack.c.h.b16 %v2630
        %v3287 = vunpack.c.l.b16 %v2631
        %v3288 = vunpack.c.h.b16 %v2631
        %v3289 = vunpack.c.l.b16 %v2632
        %v3290 = vunpack.c.h.b16 %v2632
        %v3291 = vunpack.c.l.b16 %v2633
        %v3292 = vunpack.c.h.b16 %v2633
        %v3293 = vunpack.c.l.b16 %v2634
        %v3294 = vunpack.c.h.b16 %v2634
        %v3295 = vunpack.c.l.b16 %v2635
        %v3296 = vunpack.c.h.b16 %v2635
        %v3297 = vunpack.c.l.b16 %v2636
        %v3298 = vunpack.c.h.b16 %v2636
        %v3299 = vunpack.c.l.b16 %v2637
        %v3300 = vunpack.c.h.b16 %v2637
        %v3301 = vunpack.c.l.b16 %v2638
        %v3302 = vunpack.c.h.b16 %v2638
        %v3303 = vunpack.c.l.b16 %v2639
        %v3304 = vunpack.c.h.b16 %v2639
        %v3305 = vunpack.c.l.b16 %v2640
        %v3306 = vunpack.c.h.b16 %v2640
        %v3307 = vunpack.c.l.b16 %v2641
        %v3308 = vunpack.c.h.b16 %v2641
        %v3309 = vunpack.c.l.b16 %v2642
        %v3310 = vunpack.c.h.b16 %v2642
        %v3311 = vunpack.c.l.b16 %v2643
        %v3312 = vunpack.c.h.b16 %v2643
        %v3313 = vunpack.c.l.b16 %v2644
        %v3314 = vunpack.c.h.b16 %v2644
        %v3315 = vunpack.c.l.b16 %v2645
        %v3316 = vunpack.c.h.b16 %v2645
        %v3317 = vunpack.c.l.b16 %v2646
        %v3318 = vunpack.c.h.b16 %v2646
        %v3319 = vunpack.c.l.b16 %v2647
        %v3320 = vunpack.c.h.b16 %v2647
        %v3321 = vunpack.c.l.b16 %v2648
        %v3322 = vunpack.c.h.b16 %v2648
        %v3323 = vunpack.c.l.b16 %v2649
        %v3324 = vunpack.c.h.b16 %v2649
        %v3325 = vunpack.c.l.b16 %v2650
        %v3326 = vunpack.c.h.b16 %v2650
        %v3327 = vunpack.c.l.b16 %v2651
        %v3328 = vunpack.c.h.b16 %v2651
        %v3329 = vunpack.c.l.b16 %v2652
        %v3330 = vunpack.c.h.b16 %v2652
        %v3331 = vunpack.c.l.b16 %v2653
        %v3332 = vunpack.c.h.b16 %v2653
        %v3333 = vunpack.c.l.b16 %v2654
        %v3334 = vunpack.c.h.b16 %v2654
        %v3335 = vunpack.c.l.b16 %v2655
        %v3336 = vunpack.c.h.b16 %v2655
        %v3337 = vunpack.c.l.b16 %v2656
        %v3338 = vunpack.c.h.b16 %v2656
        %v3339 = vunpack.c.l.b16 %v2657
        %v3340 = vunpack.c.h.b16 %v2657
        %v3341 = vunpack.c.l.b16 %v2658
        %v3342 = vunpack.c.h.b16 %v2658
        %v3343 = vunpack.c.l.b16 %v2659
        %v3344 = vunpack.c.h.b16 %v2659
        %v3345 = vunpack.c.l.b16 %v2660
        %v3346 = vunpack.c.h.b16 %v2660
        %v3347 = vunpack.c.l.b16 %v2661
        %v3348 = vunpack.c.h.b16 %v2661
        %v3349 = vunpack.c.l.b16 %v2662
        %v3350 = vunpack.c.h.b16 %v2662
        %v3351 = vunpack.c.l.b16 %v2663
        %v3352 = vunpack.c.h.b16 %v2663
        %v3353 = vunpack.c.l.b16 %v2664
        %v3354 = vunpack.c.h.b16 %v2664
        %v3355 = vunpack.c.l.b16 %v2665
        %v3356 = vunpack.c.h.b16 %v2665
        %v3357 = vunpack.c.l.b16 %v2666
        %v3358 = vunpack.c.h.b16 %v2666
        %v3359 = vunpack.c.l.b16 %v2667
        %v3360 = vunpack.c.h.b16 %v2667
        %v3361 = vunpack.c.l.b16 %v2668
        %v3362 = vunpack.c.h.b16 %v2668
        %v3363 = vunpack.c.l.b16 %v2669
        %v3364 = vunpack.c.h.b16 %v2669
        %v3365 = vunpack.c.l.b16 %v2670
        %v3366 = vunpack.c.h.b16 %v2670
        %v3367 = vunpack.c.l.b16 %v2671
        %v3368 = vunpack.c.h.b16 %v2671
        %v3369 = vunpack.c.l.b16 %v2672
        %v3370 = vunpack.c.h.b16 %v2672
        %v3371 = vunpack.c.l.b16 %v2673
        %v3372 = vunpack.c.h.b16 %v2673
        %v3373 = vunpack.c.l.b16 %v2674
        %v3374 = vunpack.c.h.b16 %v2674
        %v3375 = vunpack.c.l.b16 %v2675
        %v3376 = vunpack.c.h.b16 %v2675
        %v3377 = vunpack.c.l.b16 %v2676
        %v3378 = vunpack.c.h.b16 %v2676
        %v3379 = vunpack.c.l.b16 %v2677
        %v3380 = vunpack.c.h.b16 %v2677
        %v3381 = vunpack.c.l.b16 %v2678
        %v3382 = vunpack.c.h.b16 %v2678
        %v3383 = vunpack.c.l.b16 %v2679
        %v3384 = vunpack.c.h.b16 %v2679
        %v3385 = vunpack.c.l.b16 %v2680
        %v3386 = vunpack.c.h.b16 %v2680
        %v3387 = vunpack.c.l.b16 %v2681
        %v3388 = vunpack.c.h.b16 %v2681
        %v3389 = vunpack.c.l.b16 %v2682
        %v3390 = vunpack.c.h.b16 %v2682
        %v3391 = vunpack.c.l.b16 %v2683
        %v3392 = vunpack.c.h.b16 %v2683
        %v3393 = vunpack.c.l.b16 %v2684
        %v3394 = vunpack.c.h.b16 %v2684
        %v3395 = vunpack.c.l.b16 %v2685
        %v3396 = vunpack.c.h.b16 %v2685
        %v3397 = vunpack.c.l.b16 %v2686
        %v3398 = vunpack.c.h.b16 %v2686
        %v3399 = vunpack.c.l.b16 %v2687
        %v3400 = vunpack.c.h.b16 %v2687
        %v3401 = vunpack.c.l.b16 %v2688
        %v3402 = vunpack.c.h.b16 %v2688
        %v3403 = vunpack.c.l.b16 %v2689
        %v3404 = vunpack.c.h.b16 %v2689
        %v3405 = vunpack.c.l.b16 %v2690
        %v3406 = vunpack.c.h.b16 %v2690
        %v3407 = vunpack.c.l.b16 %v2691
        %v3408 = vunpack.c.h.b16 %v2691
        %v3409 = vunpack.c.l.b16 %v2692
        %v3410 = vunpack.c.h.b16 %v2692
        %v3411 = vunpack.c.l.b16 %v2693
        %v3412 = vunpack.c.h.b16 %v2693
        %v3413 = vunpack.c.l.b16 %v2694
        %v3414 = vunpack.c.h.b16 %v2694
        %v3415 = vunpack.c.l.b16 %v2695
        %v3416 = vunpack.c.h.b16 %v2695
        %v3417 = vunpack.c.l.b16 %v2696
        %v3418 = vunpack.c.h.b16 %v2696
        %v3419 = vunpack.c.l.b16 %v2697
        %v3420 = vunpack.c.h.b16 %v2697
        %v3421 = vunpack.c.l.b16 %v2698
        %v3422 = vunpack.c.h.b16 %v2698
        %v3423 = vunpack.c.l.b16 %v2699
        %v3424 = vunpack.c.h.b16 %v2699
        %v3425 = vunpack.c.l.b16 %v2700
        %v3426 = vunpack.c.h.b16 %v2700
        %v3427 = vunpack.c.l.b16 %v2701
        %v3428 = vunpack.c.h.b16 %v2701
        %v3429 = vunpack.c.l.b16 %v2702
        %v3430 = vunpack.c.h.b16 %v2702
        %v3431 = vunpack.c.l.b16 %v2703
        %v3432 = vunpack.c.h.b16 %v2703
        %v3433 = vunpack.c.l.b16 %v2704
        %v3434 = vunpack.c.h.b16 %v2704
        %v3435 = vunpack.c.l.b16 %v2705
        %v3436 = vunpack.c.h.b16 %v2705
        %v3437 = vunpack.c.l.b16 %v2706
        %v3438 = vunpack.c.h.b16 %v2706
        %v3439 = vunpack.c.l.b16 %v2707
        %v3440 = vunpack.c.h.b16 %v2707
        %v3441 = vunpack.c.l.b16 %v2708
        %v3442 = vunpack.c.h.b16 %v2708
        %v3443 = vunpack.c.l.b16 %v2709
        %v3444 = vunpack.c.h.b16 %v2709
        %v3445 = vunpack.c.l.b16 %v2710
        %v3446 = vunpack.c.h.b16 %v2710
        %v3447 = vunpack.c.l.b16 %v2711
        %v3448 = vunpack.c.h.b16 %v2711
        %v3449 = vunpack.c.l.b16 %v2712
        %v3450 = vunpack.c.h.b16 %v2712
        %v3451 = vunpack.c.l.b16 %v2713
        %v3452 = vunpack.c.h.b16 %v2713
        %v3453 = vunpack.c.l.b16 %v2714
        %v3454 = vunpack.c.h.b16 %v2714
        %v3455 = vunpack.c.l.b16 %v2715
        %v3456 = vunpack.c.h.b16 %v2715
        %v3457 = vunpack.c.l.b16 %v2716
        %v3458 = vunpack.c.h.b16 %v2716
        %v3459 = vunpack.c.l.b16 %v2717
        %v3460 = vunpack.c.h.b16 %v2717
        %v3461 = vunpack.c.l.b16 %v2718
        %v3462 = vunpack.c.h.b16 %v2718
        %v3463 = vunpack.c.l.b16 %v2719
        %v3464 = vunpack.c.h.b16 %v2719
        %v3465 = vunpack.c.l.b16 %v2720
        %v3466 = vunpack.c.h.b16 %v2720
        %v3467 = vunpack.c.l.b16 %v2721
        %v3468 = vunpack.c.h.b16 %v2721
        %v3469 = vunpack.c.l.b16 %v2722
        %v3470 = vunpack.c.h.b16 %v2722
        %v3471 = vunpack.c.l.b16 %v2723
        %v3472 = vunpack.c.h.b16 %v2723
        %v3473 = vunpack.c.l.b16 %v2724
        %v3474 = vunpack.c.h.b16 %v2724
        %v3475 = vunpack.c.l.b16 %v2725
        %v3476 = vunpack.c.h.b16 %v2725
        %v3477 = vunpack.c.l.b16 %v2726
        %v3478 = vunpack.c.h.b16 %v2726
        %v3479 = vunpack.c.l.b16 %v2727
        %v3480 = vunpack.c.h.b16 %v2727
        %v3481 = vunpack.c.l.b16 %v2728
        %v3482 = vunpack.c.h.b16 %v2728
        %v3483 = vunpack.c.l.b16 %v2729
        %v3484 = vunpack.c.h.b16 %v2729
        %v3485 = vunpack.c.l.b16 %v2730
        %v3486 = vunpack.c.h.b16 %v2730
        %v3487 = vunpack.c.l.b16 %v2731
        %v3488 = vunpack.c.h.b16 %v2731
        %v3489 = vunpack.c.l.b16 %v2732
        %v3490 = vunpack.c.h.b16 %v2732
        %v3491 = vunpack.c.l.b16 %v2733
        %v3492 = vunpack.c.h.b16 %v2733
        %v3493 = vunpack.c.l.b16 %v2734
        %v3494 = vunpack.c.h.b16 %v2734
        %v3495 = vunpack.c.l.b16 %v2735
        %v3496 = vunpack.c.h.b16 %v2735
        %v3497 = vunpack.c.l.b16 %v2736
        %v3498 = vunpack.c.h.b16 %v2736
        %v3499 = vunpack.c.l.b16 %v2737
        %v3500 = vunpack.c.h.b16 %v2737
        %v3501 = vunpack.c.l.b16 %v2738
        %v3502 = vunpack.c.h.b16 %v2738
        %v3503 = vunpack.c.l.b16 %v2739
        %v3504 = vunpack.c.h.b16 %v2739
        %v3505 = vunpack.c.l.b16 %v2740
        %v3506 = vunpack.c.h.b16 %v2740
        %v3507 = vunpack.c.l.b16 %v2741
        %v3508 = vunpack.c.h.b16 %v2741
        %v3509 = vunpack.c.l.b16 %v2742
        %v3510 = vunpack.c.h.b16 %v2742
        %v3511 = vpack.c.b16 %v3001, %v2999
        %v3512 = vpack.c.b16 %v3002, %v3000
        %v3513 = vpack.c.b16 %v3005, %v3003
        %v3514 = vpack.c.b16 %v3006, %v3004
        %v3515 = vpack.c.b16 %v3009, %v3007
        %v3516 = vpack.c.b16 %v3010, %v3008
        %v3517 = vpack.c.b16 %v3013, %v3011
        %v3518 = vpack.c.b16 %v3014, %v3012
        %v3519 = vpack.c.b16 %v3017, %v3015
        %v3520 = vpack.c.b16 %v3018, %v3016
        %v3521 = vpack.c.b16 %v3021, %v3019
        %v3522 = vpack.c.b16 %v3022, %v3020
        %v3523 = vpack.c.b16 %v3025, %v3023
        %v3524 = vpack.c.b16 %v3026, %v3024
        %v3525 = vpack.c.b16 %v3029, %v3027
        %v3526 = vpack.c.b16 %v3030, %v3028
        %v3527 = vpack.c.b16 %v3033, %v3031
        %v3528 = vpack.c.b16 %v3034, %v3032
        %v3529 = vpack.c.b16 %v3037, %v3035
        %v3530 = vpack.c.b16 %v3038, %v3036
        %v3531 = vpack.c.b16 %v3041, %v3039
        %v3532 = vpack.c.b16 %v3042, %v3040
        %v3533 = vpack.c.b16 %v3045, %v3043
        %v3534 = vpack.c.b16 %v3046, %v3044
        %v3535 = vpack.c.b16 %v3049, %v3047
        %v3536 = vpack.c.b16 %v3050, %v3048
        %v3537 = vpack.c.b16 %v3053, %v3051
        %v3538 = vpack.c.b16 %v3054, %v3052
        %v3539 = vpack.c.b16 %v3057, %v3055
        %v3540 = vpack.c.b16 %v3058, %v3056
        %v3541 = vpack.c.b16 %v3061, %v3059
        %v3542 = vpack.c.b16 %v3062, %v3060
        %v3543 = vpack.c.b16 %v3065, %v3063
        %v3544 = vpack.c.b16 %v3066, %v3064
        %v3545 = vpack.c.b16 %v3069, %v3067
        %v3546 = vpack.c.b16 %v3070, %v3068
        %v3547 = vpack.c.b16 %v3073, %v3071
        %v3548 = vpack.c.b16 %v3074, %v3072
        %v3549 = vpack.c.b16 %v3077, %v3075
        %v3550 = vpack.c.b16 %v3078, %v3076
        %v3551 = vpack.c.b16 %v3081, %v3079
        %v3552 = vpack.c.b16 %v3082, %v3080
        %v3553 = vpack.c.b16 %v3085, %v3083
        %v3554 = vpack.c.b16 %v3086, %v3084
        %v3555 = vpack.c.b16 %v3089, %v3087
        %v3556 = vpack.c.b16 %v3090, %v3088
        %v3557 = vpack.c.b16 %v3093, %v3091
        %v3558 = vpack.c.b16 %v3094, %v3092
        %v3559 = vpack.c.b16 %v3097, %v3095
        %v3560 = vpack.c.b16 %v3098, %v3096
        %v3561 = vpack.c.b16 %v3101, %v3099
        %v3562 = vpack.c.b16 %v3102, %v3100
        %v3563 = vpack.c.b16 %v3105, %v3103
        %v3564 = vpack.c.b16 %v3106, %v3104
        %v3565 = vpack.c.b16 %v3109, %v3107
        %v3566 = vpack.c.b16 %v3110, %v3108
        %v3567 = vpack.c.b16 %v3113, %v3111
        %v3568 = vpack.c.b16 %v3114, %v3112
        %v3569 = vpack.c.b16 %v3117, %v3115
        %v3570 = vpack.c.b16 %v3118, %v3116
        %v3571 = vpack.c.b16 %v3121, %v3119
        %v3572 = vpack.c.b16 %v3122, %v3120
        %v3573 = vpack.c.b16 %v3125, %v3123
        %v3574 = vpack.c.b16 %v3126, %v3124
        %v3575 = vpack.c.b16 %v3129, %v3127
        %v3576 = vpack.c.b16 %v3130, %v3128
        %v3577 = vpack.c.b16 %v3133, %v3131
        %v3578 = vpack.c.b16 %v3134, %v3132
        %v3579 = vpack.c.b16 %v3137, %v3135
        %v3580 = vpack.c.b16 %v3138, %v3136
        %v3581 = vpack.c.b16 %v3141, %v3139
        %v3582 = vpack.c.b16 %v3142, %v3140
        %v3583 = vpack.c.b16 %v3145, %v3143
        %v3584 = vpack.c.b16 %v3146, %v3144
        %v3585 = vpack.c.b16 %v3149, %v3147
        %v3586 = vpack.c.b16 %v3150, %v3148
        %v3587 = vpack.c.b16 %v3153, %v3151
        %v3588 = vpack.c.b16 %v3154, %v3152
        %v3589 = vpack.c.b16 %v3157, %v3155
        %v3590 = vpack.c.b16 %v3158, %v3156
        %v3591 = vpack.c.b16 %v3161, %v3159
        %v3592 = vpack.c.b16 %v3162, %v3160
        %v3593 = vpack.c.b16 %v3165, %v3163
        %v3594 = vpack.c.b16 %v3166, %v3164
        %v3595 = vpack.c.b16 %v3169, %v3167
        %v3596 = vpack.c.b16 %v3170, %v3168
        %v3597 = vpack.c.b16 %v3173, %v3171
        %v3598 = vpack.c.b16 %v3174, %v3172
        %v3599 = vpack.c.b16 %v3177, %v3175
        %v3600 = vpack.c.b16 %v3178, %v3176
        %v3601 = vpack.c.b16 %v3181, %v3179
        %v3602 = vpack.c.b16 %v3182, %v3180
        %v3603 = vpack.c.b16 %v3185, %v3183
        %v3604 = vpack.c.b16 %v3186, %v3184
        %v3605 = vpack.c.b16 %v3189, %v3187
        %v3606 = vpack.c.b16 %v3190, %v3188
        %v3607 = vpack.c.b16 %v3193, %v3191
        %v3608 = vpack.c.b16 %v3194, %v3192
        %v3609 = vpack.c.b16 %v3197, %v3195
        %v3610 = vpack.c.b16 %v3198, %v3196
        %v3611 = vpack.c.b16 %v3201, %v3199
        %v3612 = vpack.c.b16 %v3202, %v3200
        %v3613 = vpack.c.b16 %v3205, %v3203
        %v3614 = vpack.c.b16 %v3206, %v3204
        %v3615 = vpack.c.b16 %v3209, %v3207
        %v3616 = vpack.c.b16 %v3210, %v3208
        %v3617 = vpack.c.b16 %v3213, %v3211
        %v3618 = vpack.c.b16 %v3214, %v3212
        %v3619 = vpack.c.b16 %v3217, %v3215
        %v3620 = vpack.c.b16 %v3218, %v3216
        %v3621 = vpack.c.b16 %v3221, %v3219
        %v3622 = vpack.c.b16 %v3222, %v3220
        %v3623 = vpack.c.b16 %v3225, %v3223
        %v3624 = vpack.c.b16 %v3226, %v3224
        %v3625 = vpack.c.b16 %v3229, %v3227
        %v3626 = vpack.c.b16 %v3230, %v3228
        %v3627 = vpack.c.b16 %v3233, %v3231
        %v3628 = vpack.c.b16 %v3234, %v3232
        %v3629 = vpack.c.b16 %v3237, %v3235
        %v3630 = vpack.c.b16 %v3238, %v3236
        %v3631 = vpack.c.b16 %v3241, %v3239
        %v3632 = vpack.c.b16 %v3242, %v3240
        %v3633 = vpack.c.b16 %v3245, %v3243
        %v3634 = vpack.c.b16 %v3246, %v3244
        %v3635 = vpack.c.b16 %v3249, %v3247
        %v3636 = vpack.c.b16 %v3250, %v3248
        %v3637 = vpack.c.b16 %v3253, %v3251
        %v3638 = vpack.c.b16 %v3254, %v3252
        %v3639 = vpack.c.b16 %v3257, %v3255
        %v3640 = vpack.c.b16 %v3258, %v3256
        %v3641 = vpack.c.b16 %v3261, %v3259
        %v3642 = vpack.c.b16 %v3262, %v3260
        %v3643 = vpack.c.b16 %v3265, %v3263
        %v3644 = vpack.c.b16 %v3266, %v3264
        %v3645 = vpack.c.b16 %v3269, %v3267
        %v3646 = vpack.c.b16 %v3270, %v3268
        %v3647 = vpack.c.b16 %v3273, %v3271
        %v3648 = vpack.c.b16 %v3274, %v3272
        %v3649 = vpack.c.b16 %v3277, %v3275
        %v3650 = vpack.c.b16 %v3278, %v3276
        %v3651 = vpack.c.b16 %v3281, %v3279
        %v3652 = vpack.c.b16 %v3282, %v3280
        %v3653 = vpack.c.b16 %v3285, %v3283
        %v3654 = vpack.c.b16 %v3286, %v3284
        %v3655 = vpack.c.b16 %v3289, %v3287
        %v3656 = vpack.c.b16 %v3290, %v3288
        %v3657 = vpack.c.b16 %v3293, %v3291
        %v3658 = vpack.c.b16 %v3294, %v3292
        %v3659 = vpack.c.b16 %v3297, %v3295
        %v3660 = vpack.c.b16 %v3298, %v3296
        %v3661 = vpack.c.b16 %v3301, %v3299
        %v3662 = vpack.c.b16 %v3302, %v3300
        %v3663 = vpack.c.b16 %v3305, %v3303
        %v3664 = vpack.c.b16 %v3306, %v3304
        %v3665 = vpack.c.b16 %v3309, %v3307
        %v3666 = vpack.c.b16 %v3310, %v3308
        %v3667 = vpack.c.b16 %v3313, %v3311
        %v3668 = vpack.c.b16 %v3314, %v3312
        %v3669 = vpack.c.b16 %v3317, %v3315
        %v3670 = vpack.c.b16 %v3318, %v3316
        %v3671 = vpack.c.b16 %v3321, %v3319
        %v3672 = vpack.c.b16 %v3322, %v3320
        %v3673 = vpack.c.b16 %v3325, %v3323
        %v3674 = vpack.c.b16 %v3326, %v3324
        %v3675 = vpack.c.b16 %v3329, %v3327
        %v3676 = vpack.c.b16 %v3330, %v3328
        %v3677 = vpack.c.b16 %v3333, %v3331
        %v3678 = vpack.c.b16 %v3334, %v3332
        %v3679 = vpack.c.b16 %v3337, %v3335
        %v3680 = vpack.c.b16 %v3338, %v3336
        %v3681 = vpack.c.b16 %v3341, %v3339
        %v3682 = vpack.c.b16 %v3342, %v3340
        %v3683 = vpack.c.b16 %v3345, %v3343
        %v3684 = vpack.c.b16 %v3346, %v3344
        %v3685 = vpack.c.b16 %v3349, %v3347
        %v3686 = vpack.c.b16 %v3350, %v3348
        %v3687 = vpack.c.b16 %v3353, %v3351
        %v3688 = vpack.c.b16 %v3354, %v3352
        %v3689 = vpack.c.b16 %v3357, %v3355
        %v3690 = vpack.c.b16 %v3358, %v3356
        %v3691 = vpack.c.b16 %v3361, %v3359
        %v3692 = vpack.c.b16 %v3362, %v3360
        %v3693 = vpack.c.b16 %v3365, %v3363
        %v3694 = vpack.c.b16 %v3366, %v3364
        %v3695 = vpack.c.b16 %v3369, %v3367
        %v3696 = vpack.c.b16 %v3370, %v3368
        %v3697 = vpack.c.b16 %v3373, %v3371
        %v3698 = vpack.c.b16 %v3374, %v3372
        %v3699 = vpack.c.b16 %v3377, %v3375
        %v3700 = vpack.c.b16 %v3378, %v3376
        %v3701 = vpack.c.b16 %v3381, %v3379
        %v3702 = vpack.c.b16 %v3382, %v3380
        %v3703 = vpack.c.b16 %v3385, %v3383
        %v3704 = vpack.c.b16 %v3386, %v3384
        %v3705 = vpack.c.b16 %v3389, %v3387
        %v3706 = vpack.c.b16 %v3390, %v3388
        %v3707 = vpack.c.b16 %v3393, %v3391
        %v3708 = vpack.c.b16 %v3394, %v3392
        %v3709 = vpack.c.b16 %v3397, %v3395
        %v3710 = vpack.c.b16 %v3398, %v3396
        %v3711 = vpack.c.b16 %v3401, %v3399
        %v3712 = vpack.c.b16 %v3402, %v3400
        %v3713 = vpack.c.b16 %v3405, %v3403
        %v3714 = vpack.c.b16 %v3406, %v3404
        %v3715 = vpack.c.b16 %v3409, %v3407
        %v3716 = vpack.c.b16 %v3410, %v3408
        %v3717 = vpack.c.b16 %v3413, %v3411
        %v3718 = vpack.c.b16 %v3414, %v3412
        %v3719 = vpack.c.b16 %v3417, %v3415
        %v3720 = vpack.c.b16 %v3418, %v3416
        %v3721 = vpack.c.b16 %v3421, %v3419
        %v3722 = vpack.c.b16 %v3422, %v3420
        %v3723 = vpack.c.b16 %v3425, %v3423
        %v3724 = vpack.c.b16 %v3426, %v3424
        %v3725 = vpack.c.b16 %v3429, %v3427
        %v3726 = vpack.c.b16 %v3430, %v3428
        %v3727 = vpack.c.b16 %v3433, %v3431
        %v3728 = vpack.c.b16 %v3434, %v3432
        %v3729 = vpack.c.b16 %v3437, %v3435
        %v3730 = vpack.c.b16 %v3438, %v3436
        %v3731 = vpack.c.b16 %v3441, %v3439
        %v3732 = vpack.c.b16 %v3442, %v3440
        %v3733 = vpack.c.b16 %v3445, %v3443
        %v3734 = vpack.c.b16 %v3446, %v3444
        %v3735 = vpack.c.b16 %v3449, %v3447
        %v3736 = vpack.c.b16 %v3450, %v3448
        %v3737 = vpack.c.b16 %v3453, %v3451
        %v3738 = vpack.c.b16 %v3454, %v3452
        %v3739 = vpack.c.b16 %v3457, %v3455
        %v3740 = vpack.c.b16 %v3458, %v3456
        %v3741 = vpack.c.b16 %v3461, %v3459
        %v3742 = vpack.c.b16 %v3462, %v3460
        %v3743 = vpack.c.b16 %v3465, %v3463
        %v3744 = vpack.c.b16 %v3466, %v3464
        %v3745 = vpack.c.b16 %v3469, %v3467
        %v3746 = vpack.c.b16 %v3470, %v3468
        %v3747 = vpack.c.b16 %v3473, %v3471
        %v3748 = vpack.c.b16 %v3474, %v3472
        %v3749 = vpack.c.b16 %v3477, %v3475
        %v3750 = vpack.c.b16 %v3478, %v3476
        %v3751 = vpack.c.b16 %v3481, %v3479
        %v3752 = vpack.c.b16 %v3482, %v3480
        %v3753 = vpack.c.b16 %v3485, %v3483
        %v3754 = vpack.c.b16 %v3486, %v3484
        %v3755 = vpack.c.b16 %v3489, %v3487
        %v3756 = vpack.c.b16 %v3490, %v3488
        %v3757 = vpack.c.b16 %v3493, %v3491
        %v3758 = vpack.c.b16 %v3494, %v3492
        %v3759 = vpack.c.b16 %v3497, %v3495
        %v3760 = vpack.c.b16 %v3498, %v3496
        %v3761 = vpack.c.b16 %v3501, %v3499
        %v3762 = vpack.c.b16 %v3502, %v3500
        %v3763 = vpack.c.b16 %v3505, %v3503
        %v3764 = vpack.c.b16 %v3506, %v3504
        %v3765 = vpack.c.b16 %v3509, %v3507
        %v3766 = vpack.c.b16 %v3510, %v3508
        %4023 = vmatprep.subr.bf16.mxu0 %v3512
        %4024 = vmatpush1.bf16.msra.mxu0 %v3511
        %4025 = vmatprep.subr.bf16.mxu0 %v3514
        %4026 = vmatpush1.bf16.msra.mxu0 %v3513
        %4027 = vmatprep.subr.bf16.mxu0 %v3516
        %4028 = vmatpush1.bf16.msra.mxu0 %v3515
        %4029 = vmatprep.subr.bf16.mxu0 %v3518
        %4030 = vmatpush1.bf16.msra.mxu0 %v3517
        %4031 = vmatprep.subr.bf16.mxu0 %v3520
        %4032 = vmatpush1.bf16.msra.mxu0 %v3519
        %4033 = vmatprep.subr.bf16.mxu0 %v3522
        %4034 = vmatpush1.bf16.msra.mxu0 %v3521
        %4035 = vmatprep.subr.bf16.mxu0 %v3524
        %4036 = vmatpush1.bf16.msra.mxu0 %v3523
        %4037 = vmatprep.subr.bf16.mxu0 %v3526
        %4038 = vmatpush1.bf16.msra.mxu0 %v3525
        %4039 = vmatprep.subr.bf16.mxu0 %v3528
        %4040 = vmatpush1.bf16.msra.mxu0 %v3527
        %4041 = vmatprep.subr.bf16.mxu0 %v3530
        %4042 = vmatpush1.bf16.msra.mxu0 %v3529
        %4043 = vmatprep.subr.bf16.mxu0 %v3532
        %4044 = vmatpush1.bf16.msra.mxu0 %v3531
        %4045 = vmatprep.subr.bf16.mxu0 %v3534
        %4046 = vmatpush1.bf16.msra.mxu0 %v3533
        %4047 = vmatprep.subr.bf16.mxu0 %v3536
        %4048 = vmatpush1.bf16.msra.mxu0 %v3535
        %4049 = vmatprep.subr.bf16.mxu0 %v3538
        %4050 = vmatpush1.bf16.msra.mxu0 %v3537
        %4051 = vmatprep.subr.bf16.mxu0 %v3540
        %4052 = vmatpush1.bf16.msra.mxu0 %v3539
        %4053 = vmatprep.subr.bf16.mxu0 %v3542
        %4054 = vmatpush1.bf16.msra.mxu0 %v3541
        %4055 = vmatprep.mubr.bf16.mxu0 %v720
        %4056 = vmatmul.mubr.bf16.gmra.mrb[0].mxu0 %v719
        %v4057 = vpop.f32.mrb[0].mxu0
        %v4058 = vadd.f32 0.0, %v4057
        %v4059 = vpop.f32.mrb[0].mxu0
        %v4060 = vadd.f32 0.0, %v4059
        %v4061 = vpop.f32.mrb[0].mxu0
        %v4062 = vadd.f32 0.0, %v4061
        %v4063 = vpop.f32.mrb[0].mxu0
        %v4064 = vadd.f32 0.0, %v4063
        %4065 = vmatprep.mubr.bf16.mxu0 %v736
        %4066 = vmatmul.mubr.bf16.gmra.mrb[0].mxu0 %v735
        %v4067 = vpop.f32.mrb[0].mxu0
        %v4068 = vadd.f32 0.0, %v4067
        %v4069 = vpop.f32.mrb[0].mxu0
        %v4070 = vadd.f32 0.0, %v4069
        %v4071 = vpop.f32.mrb[0].mxu0
        %v4072 = vadd.f32 0.0, %v4071
        %v4073 = vpop.f32.mrb[0].mxu0
        %v4074 = vadd.f32 0.0, %v4073
        %4075 = vdwg.mxu0
        %4076 = vmatprep.subr.bf16.mxu0 %v3544
        %4077 = vmatpush1.bf16.msra.mxu0 %v3543
        %4078 = vmatprep.subr.bf16.mxu0 %v3546
        %4079 = vmatpush1.bf16.msra.mxu0 %v3545
        %4080 = vmatprep.subr.bf16.mxu0 %v3548
        %4081 = vmatpush1.bf16.msra.mxu0 %v3547
        %4082 = vmatprep.subr.bf16.mxu0 %v3550
        %4083 = vmatpush1.bf16.msra.mxu0 %v3549
        %4084 = vmatprep.subr.bf16.mxu0 %v3552
        %4085 = vmatpush1.bf16.msra.mxu0 %v3551
        %4086 = vmatprep.subr.bf16.mxu0 %v3554
        %4087 = vmatpush1.bf16.msra.mxu0 %v3553
        %4088 = vmatprep.subr.bf16.mxu0 %v3556
        %4089 = vmatpush1.bf16.msra.mxu0 %v3555
        %4090 = vmatprep.subr.bf16.mxu0 %v3558
        %4091 = vmatpush1.bf16.msra.mxu0 %v3557
        %4092 = vmatprep.subr.bf16.mxu0 %v3560
        %4093 = vmatpush1.bf16.msra.mxu0 %v3559
        %4094 = vmatprep.subr.bf16.mxu0 %v3562
        %4095 = vmatpush1.bf16.msra.mxu0 %v3561
        %4096 = vmatprep.subr.bf16.mxu0 %v3564
        %4097 = vmatpush1.bf16.msra.mxu0 %v3563
        %4098 = vmatprep.subr.bf16.mxu0 %v3566
        %4099 = vmatpush1.bf16.msra.mxu0 %v3565
        %4100 = vmatprep.subr.bf16.mxu0 %v3568
        %4101 = vmatpush1.bf16.msra.mxu0 %v3567
        %4102 = vmatprep.subr.bf16.mxu0 %v3570
        %4103 = vmatpush1.bf16.msra.mxu0 %v3569
        %4104 = vmatprep.subr.bf16.mxu0 %v3572
        %4105 = vmatpush1.bf16.msra.mxu0 %v3571
        %4106 = vmatprep.subr.bf16.mxu0 %v3574
        %4107 = vmatpush1.bf16.msra.mxu0 %v3573
        %4108 = vmatprep.mubr.bf16.mxu0 %v722
        %4109 = vmatmul.mubr.bf16.gmra.mrb[0].mxu0 %v721
        %v4110 = vpop.f32.mrb[0].mxu0
        %v4111 = vadd.f32 %v4058, %v4110
        %v4112 = vpop.f32.mrb[0].mxu0
        %v4113 = vadd.f32 %v4060, %v4112
        %v4114 = vpop.f32.mrb[0].mxu0
        %v4115 = vadd.f32 %v4062, %v4114
        %v4116 = vpop.f32.mrb[0].mxu0
        %v4117 = vadd.f32 %v4064, %v4116
        %4118 = vmatprep.mubr.bf16.mxu0 %v738
        %4119 = vmatmul.mubr.bf16.gmra.mrb[0].mxu0 %v737
        %v4120 = vpop.f32.mrb[0].mxu0
        %v4121 = vadd.f32 %v4068, %v4120
        %v4122 = vpop.f32.mrb[0].mxu0
        %v4123 = vadd.f32 %v4070, %v4122
        %v4124 = vpop.f32.mrb[0].mxu0
        %v4125 = vadd.f32 %v4072, %v4124
        %v4126 = vpop.f32.mrb[0].mxu0
        %v4127 = vadd.f32 %v4074, %v4126
        %4128 = vdwg.mxu0
        %4129 = vmatprep.subr.bf16.mxu0 %v3576
        %4130 = vmatpush1.bf16.msra.mxu0 %v3575
        %4131 = vmatprep.subr.bf16.mxu0 %v3578
        %4132 = vmatpush1.bf16.msra.mxu0 %v3577
        %4133 = vmatprep.subr.bf16.mxu0 %v3580
        %4134 = vmatpush1.bf16.msra.mxu0 %v3579
        %4135 = vmatprep.subr.bf16.mxu0 %v3582
        %4136 = vmatpush1.bf16.msra.mxu0 %v3581
        %4137 = vmatprep.subr.bf16.mxu0 %v3584
        %4138 = vmatpush1.bf16.msra.mxu0 %v3583
        %4139 = vmatprep.subr.bf16.mxu0 %v3586
        %4140 = vmatpush1.bf16.msra.mxu0 %v3585
        %4141 = vmatprep.subr.bf16.mxu0 %v3588
        %4142 = vmatpush1.bf16.msra.mxu0 %v3587
        %4143 = vmatprep.subr.bf16.mxu0 %v3590
        %4144 = vmatpush1.bf16.msra.mxu0 %v3589
        %4145 = vmatprep.subr.bf16.mxu0 %v3592
        %4146 = vmatpush1.bf16.msra.mxu0 %v3591
        %4147 = vmatprep.subr.bf16.mxu0 %v3594
        %4148 = vmatpush1.bf16.msra.mxu0 %v3593
        %4149 = vmatprep.subr.bf16.mxu0 %v3596
        %4150 = vmatpush1.bf16.msra.mxu0 %v3595
        %4151 = vmatprep.subr.bf16.mxu0 %v3598
        %4152 = vmatpush1.bf16.msra.mxu0 %v3597
        %4153 = vmatprep.subr.bf16.mxu0 %v3600
        %4154 = vmatpush1.bf16.msra.mxu0 %v3599
        %4155 = vmatprep.subr.bf16.mxu0 %v3602
        %4156 = vmatpush1.bf16.msra.mxu0 %v3601
        %4157 = vmatprep.subr.bf16.mxu0 %v3604
        %4158 = vmatpush1.bf16.msra.mxu0 %v3603
        %4159 = vmatprep.subr.bf16.mxu0 %v3606
        %4160 = vmatpush1.bf16.msra.mxu0 %v3605
        %4161 = vmatprep.mubr.bf16.mxu0 %v724
        %4162 = vmatmul.mubr.bf16.gmra.mrb[0].mxu0 %v723
        %v4163 = vpop.f32.mrb[0].mxu0
        %v4164 = vadd.f32 %v4111, %v4163
        %v4165 = vpop.f32.mrb[0].mxu0
        %v4166 = vadd.f32 %v4113, %v4165
        %v4167 = vpop.f32.mrb[0].mxu0
        %v4168 = vadd.f32 %v4115, %v4167
        %v4169 = vpop.f32.mrb[0].mxu0
        %v4170 = vadd.f32 %v4117, %v4169
        %4171 = vmatprep.mubr.bf16.mxu0 %v740
        %4172 = vmatmul.mubr.bf16.gmra.mrb[0].mxu0 %v739
        %v4173 = vpop.f32.mrb[0].mxu0
        %v4174 = vadd.f32 %v4121, %v4173
        %v4175 = vpop.f32.mrb[0].mxu0
        %v4176 = vadd.f32 %v4123, %v4175
        %v4177 = vpop.f32.mrb[0].mxu0
        %v4178 = vadd.f32 %v4125, %v4177
        %v4179 = vpop.f32.mrb[0].mxu0
        %v4180 = vadd.f32 %v4127, %v4179
        %4181 = vdwg.mxu0
        %4182 = vmatprep.subr.bf16.mxu0 %v3608
        %4183 = vmatpush1.bf16.msra.mxu0 %v3607
        %4184 = vmatprep.subr.bf16.mxu0 %v3610
        %4185 = vmatpush1.bf16.msra.mxu0 %v3609
        %4186 = vmatprep.subr.bf16.mxu0 %v3612
        %4187 = vmatpush1.bf16.msra.mxu0 %v3611
        %4188 = vmatprep.subr.bf16.mxu0 %v3614
        %4189 = vmatpush1.bf16.msra.mxu0 %v3613
        %4190 = vmatprep.subr.bf16.mxu0 %v3616
        %4191 = vmatpush1.bf16.msra.mxu0 %v3615
        %4192 = vmatprep.subr.bf16.mxu0 %v3618
        %4193 = vmatpush1.bf16.msra.mxu0 %v3617
        %4194 = vmatprep.subr.bf16.mxu0 %v3620
        %4195 = vmatpush1.bf16.msra.mxu0 %v3619
        %4196 = vmatprep.subr.bf16.mxu0 %v3622
        %4197 = vmatpush1.bf16.msra.mxu0 %v3621
        %4198 = vmatprep.subr.bf16.mxu0 %v3624
        %4199 = vmatpush1.bf16.msra.mxu0 %v3623
        %4200 = vmatprep.subr.bf16.mxu0 %v3626
        %4201 = vmatpush1.bf16.msra.mxu0 %v3625
        %4202 = vmatprep.subr.bf16.mxu0 %v3628
        %4203 = vmatpush1.bf16.msra.mxu0 %v3627
        %4204 = vmatprep.subr.bf16.mxu0 %v3630
        %4205 = vmatpush1.bf16.msra.mxu0 %v3629
        %4206 = vmatprep.subr.bf16.mxu0 %v3632
        %4207 = vmatpush1.bf16.msra.mxu0 %v3631
        %4208 = vmatprep.subr.bf16.mxu0 %v3634
        %4209 = vmatpush1.bf16.msra.mxu0 %v3633
        %4210 = vmatprep.subr.bf16.mxu0 %v3636
        %4211 = vmatpush1.bf16.msra.mxu0 %v3635
        %4212 = vmatprep.subr.bf16.mxu0 %v3638
        %4213 = vmatpush1.bf16.msra.mxu0 %v3637
        %4214 = vmatprep.mubr.bf16.mxu0 %v726
        %4215 = vmatmul.mubr.bf16.gmra.mrb[0].mxu0 %v725
        %v4216 = vpop.f32.mrb[0].mxu0
        %v4217 = vadd.f32 %v4164, %v4216
        %v4218 = vpop.f32.mrb[0].mxu0
        %v4219 = vadd.f32 %v4166, %v4218
        %v4220 = vpop.f32.mrb[0].mxu0
        %v4221 = vadd.f32 %v4168, %v4220
        %v4222 = vpop.f32.mrb[0].mxu0
        %v4223 = vadd.f32 %v4170, %v4222
        %4224 = vmatprep.mubr.bf16.mxu0 %v742
        %4225 = vmatmul.mubr.bf16.gmra.mrb[0].mxu0 %v741
        %v4226 = vpop.f32.mrb[0].mxu0
        %v4227 = vadd.f32 %v4174, %v4226
        %v4228 = vpop.f32.mrb[0].mxu0
        %v4229 = vadd.f32 %v4176, %v4228
        %v4230 = vpop.f32.mrb[0].mxu0
        %v4231 = vadd.f32 %v4178, %v4230
        %v4232 = vpop.f32.mrb[0].mxu0
        %v4233 = vadd.f32 %v4180, %v4232
        %4234 = vdwg.mxu0
        %4235 = vmatprep.subr.bf16.mxu0 %v3640
        %4236 = vmatpush1.bf16.msra.mxu0 %v3639
        %4237 = vmatprep.subr.bf16.mxu0 %v3642
        %4238 = vmatpush1.bf16.msra.mxu0 %v3641
        %4239 = vmatprep.subr.bf16.mxu0 %v3644
        %4240 = vmatpush1.bf16.msra.mxu0 %v3643
        %4241 = vmatprep.subr.bf16.mxu0 %v3646
        %4242 = vmatpush1.bf16.msra.mxu0 %v3645
        %4243 = vmatprep.subr.bf16.mxu0 %v3648
        %4244 = vmatpush1.bf16.msra.mxu0 %v3647
        %4245 = vmatprep.subr.bf16.mxu0 %v3650
        %4246 = vmatpush1.bf16.msra.mxu0 %v3649
        %4247 = vmatprep.subr.bf16.mxu0 %v3652
        %4248 = vmatpush1.bf16.msra.mxu0 %v3651
        %4249 = vmatprep.subr.bf16.mxu0 %v3654
        %4250 = vmatpush1.bf16.msra.mxu0 %v3653
        %4251 = vmatprep.subr.bf16.mxu0 %v3656
        %4252 = vmatpush1.bf16.msra.mxu0 %v3655
        %4253 = vmatprep.subr.bf16.mxu0 %v3658
        %4254 = vmatpush1.bf16.msra.mxu0 %v3657
        %4255 = vmatprep.subr.bf16.mxu0 %v3660
        %4256 = vmatpush1.bf16.msra.mxu0 %v3659
        %4257 = vmatprep.subr.bf16.mxu0 %v3662
        %4258 = vmatpush1.bf16.msra.mxu0 %v3661
        %4259 = vmatprep.subr.bf16.mxu0 %v3664
        %4260 = vmatpush1.bf16.msra.mxu0 %v3663
        %4261 = vmatprep.subr.bf16.mxu0 %v3666
        %4262 = vmatpush1.bf16.msra.mxu0 %v3665
        %4263 = vmatprep.subr.bf16.mxu0 %v3668
        %4264 = vmatpush1.bf16.msra.mxu0 %v3667
        %4265 = vmatprep.subr.bf16.mxu0 %v3670
        %4266 = vmatpush1.bf16.msra.mxu0 %v3669
        %4267 = vmatprep.mubr.bf16.mxu0 %v728
        %4268 = vmatmul.mubr.bf16.gmra.mrb[0].mxu0 %v727
        %v4269 = vpop.f32.mrb[0].mxu0
        %v4270 = vadd.f32 %v4217, %v4269
        %v4271 = vpop.f32.mrb[0].mxu0
        %v4272 = vadd.f32 %v4219, %v4271
        %v4273 = vpop.f32.mrb[0].mxu0
        %v4274 = vadd.f32 %v4221, %v4273
        %v4275 = vpop.f32.mrb[0].mxu0
        %v4276 = vadd.f32 %v4223, %v4275
        %4277 = vmatprep.mubr.bf16.mxu0 %v744
        %4278 = vmatmul.mubr.bf16.gmra.mrb[0].mxu0 %v743
        %v4279 = vpop.f32.mrb[0].mxu0
        %v4280 = vadd.f32 %v4227, %v4279
        %v4281 = vpop.f32.mrb[0].mxu0
        %v4282 = vadd.f32 %v4229, %v4281
        %v4283 = vpop.f32.mrb[0].mxu0
        %v4284 = vadd.f32 %v4231, %v4283
        %v4285 = vpop.f32.mrb[0].mxu0
        %v4286 = vadd.f32 %v4233, %v4285
        %4287 = vdwg.mxu0
        %4288 = vmatprep.subr.bf16.mxu0 %v3672
        %4289 = vmatpush1.bf16.msra.mxu0 %v3671
        %4290 = vmatprep.subr.bf16.mxu0 %v3674
        %4291 = vmatpush1.bf16.msra.mxu0 %v3673
        %4292 = vmatprep.subr.bf16.mxu0 %v3676
        %4293 = vmatpush1.bf16.msra.mxu0 %v3675
        %4294 = vmatprep.subr.bf16.mxu0 %v3678
        %4295 = vmatpush1.bf16.msra.mxu0 %v3677
        %4296 = vmatprep.subr.bf16.mxu0 %v3680
        %4297 = vmatpush1.bf16.msra.mxu0 %v3679
        %4298 = vmatprep.subr.bf16.mxu0 %v3682
        %4299 = vmatpush1.bf16.msra.mxu0 %v3681
        %4300 = vmatprep.subr.bf16.mxu0 %v3684
        %4301 = vmatpush1.bf16.msra.mxu0 %v3683
        %4302 = vmatprep.subr.bf16.mxu0 %v3686
        %4303 = vmatpush1.bf16.msra.mxu0 %v3685
        %4304 = vmatprep.subr.bf16.mxu0 %v3688
        %4305 = vmatpush1.bf16.msra.mxu0 %v3687
        %4306 = vmatprep.subr.bf16.mxu0 %v3690
        %4307 = vmatpush1.bf16.msra.mxu0 %v3689
        %4308 = vmatprep.subr.bf16.mxu0 %v3692
        %4309 = vmatpush1.bf16.msra.mxu0 %v3691
        %4310 = vmatprep.subr.bf16.mxu0 %v3694
        %4311 = vmatpush1.bf16.msra.mxu0 %v3693
        %4312 = vmatprep.subr.bf16.mxu0 %v3696
        %4313 = vmatpush1.bf16.msra.mxu0 %v3695
        %4314 = vmatprep.subr.bf16.mxu0 %v3698
        %4315 = vmatpush1.bf16.msra.mxu0 %v3697
        %4316 = vmatprep.subr.bf16.mxu0 %v3700
        %4317 = vmatpush1.bf16.msra.mxu0 %v3699
        %4318 = vmatprep.subr.bf16.mxu0 %v3702
        %4319 = vmatpush1.bf16.msra.mxu0 %v3701
        %4320 = vmatprep.mubr.bf16.mxu0 %v730
        %4321 = vmatmul.mubr.bf16.gmra.mrb[0].mxu0 %v729
        %v4322 = vpop.f32.mrb[0].mxu0
        %v4323 = vadd.f32 %v4270, %v4322
        %v4324 = vpop.f32.mrb[0].mxu0
        %v4325 = vadd.f32 %v4272, %v4324
        %v4326 = vpop.f32.mrb[0].mxu0
        %v4327 = vadd.f32 %v4274, %v4326
        %v4328 = vpop.f32.mrb[0].mxu0
        %v4329 = vadd.f32 %v4276, %v4328
        %4330 = vmatprep.mubr.bf16.mxu0 %v746
        %4331 = vmatmul.mubr.bf16.gmra.mrb[0].mxu0 %v745
        %v4332 = vpop.f32.mrb[0].mxu0
        %v4333 = vadd.f32 %v4280, %v4332
        %v4334 = vpop.f32.mrb[0].mxu0
        %v4335 = vadd.f32 %v4282, %v4334
        %v4336 = vpop.f32.mrb[0].mxu0
        %v4337 = vadd.f32 %v4284, %v4336
        %v4338 = vpop.f32.mrb[0].mxu0
        %v4339 = vadd.f32 %v4286, %v4338
        %4340 = vdwg.mxu0
        %4341 = vmatprep.subr.bf16.mxu0 %v3704
        %4342 = vmatpush1.bf16.msra.mxu0 %v3703
        %4343 = vmatprep.subr.bf16.mxu0 %v3706
        %4344 = vmatpush1.bf16.msra.mxu0 %v3705
        %4345 = vmatprep.subr.bf16.mxu0 %v3708
        %4346 = vmatpush1.bf16.msra.mxu0 %v3707
        %4347 = vmatprep.subr.bf16.mxu0 %v3710
        %4348 = vmatpush1.bf16.msra.mxu0 %v3709
        %4349 = vmatprep.subr.bf16.mxu0 %v3712
        %4350 = vmatpush1.bf16.msra.mxu0 %v3711
        %4351 = vmatprep.subr.bf16.mxu0 %v3714
        %4352 = vmatpush1.bf16.msra.mxu0 %v3713
        %4353 = vmatprep.subr.bf16.mxu0 %v3716
        %4354 = vmatpush1.bf16.msra.mxu0 %v3715
        %4355 = vmatprep.subr.bf16.mxu0 %v3718
        %4356 = vmatpush1.bf16.msra.mxu0 %v3717
        %4357 = vmatprep.subr.bf16.mxu0 %v3720
        %4358 = vmatpush1.bf16.msra.mxu0 %v3719
        %4359 = vmatprep.subr.bf16.mxu0 %v3722
        %4360 = vmatpush1.bf16.msra.mxu0 %v3721
        %4361 = vmatprep.subr.bf16.mxu0 %v3724
        %4362 = vmatpush1.bf16.msra.mxu0 %v3723
        %4363 = vmatprep.subr.bf16.mxu0 %v3726
        %4364 = vmatpush1.bf16.msra.mxu0 %v3725
        %4365 = vmatprep.subr.bf16.mxu0 %v3728
        %4366 = vmatpush1.bf16.msra.mxu0 %v3727
        %4367 = vmatprep.subr.bf16.mxu0 %v3730
        %4368 = vmatpush1.bf16.msra.mxu0 %v3729
        %4369 = vmatprep.subr.bf16.mxu0 %v3732
        %4370 = vmatpush1.bf16.msra.mxu0 %v3731
        %4371 = vmatprep.subr.bf16.mxu0 %v3734
        %4372 = vmatpush1.bf16.msra.mxu0 %v3733
        %4373 = vmatprep.mubr.bf16.mxu0 %v732
        %4374 = vmatmul.mubr.bf16.gmra.mrb[0].mxu0 %v731
        %v4375 = vpop.f32.mrb[0].mxu0
        %v4376 = vadd.f32 %v4323, %v4375
        %v4377 = vpop.f32.mrb[0].mxu0
        %v4378 = vadd.f32 %v4325, %v4377
        %v4379 = vpop.f32.mrb[0].mxu0
        %v4380 = vadd.f32 %v4327, %v4379
        %v4381 = vpop.f32.mrb[0].mxu0
        %v4382 = vadd.f32 %v4329, %v4381
        %4383 = vmatprep.mubr.bf16.mxu0 %v748
        %4384 = vmatmul.mubr.bf16.gmra.mrb[0].mxu0 %v747
        %v4385 = vpop.f32.mrb[0].mxu0
        %v4386 = vadd.f32 %v4333, %v4385
        %v4387 = vpop.f32.mrb[0].mxu0
        %v4388 = vadd.f32 %v4335, %v4387
        %v4389 = vpop.f32.mrb[0].mxu0
        %v4390 = vadd.f32 %v4337, %v4389
        %v4391 = vpop.f32.mrb[0].mxu0
        %v4392 = vadd.f32 %v4339, %v4391
        %4393 = vdwg.mxu0
        %4394 = vmatprep.subr.bf16.mxu0 %v3736
        %4395 = vmatpush1.bf16.msra.mxu0 %v3735
        %4396 = vmatprep.subr.bf16.mxu0 %v3738
        %4397 = vmatpush1.bf16.msra.mxu0 %v3737
        %4398 = vmatprep.subr.bf16.mxu0 %v3740
        %4399 = vmatpush1.bf16.msra.mxu0 %v3739
        %4400 = vmatprep.subr.bf16.mxu0 %v3742
        %4401 = vmatpush1.bf16.msra.mxu0 %v3741
        %4402 = vmatprep.subr.bf16.mxu0 %v3744
        %4403 = vmatpush1.bf16.msra.mxu0 %v3743
        %4404 = vmatprep.subr.bf16.mxu0 %v3746
        %4405 = vmatpush1.bf16.msra.mxu0 %v3745
        %4406 = vmatprep.subr.bf16.mxu0 %v3748
        %4407 = vmatpush1.bf16.msra.mxu0 %v3747
        %4408 = vmatprep.subr.bf16.mxu0 %v3750
        %4409 = vmatpush1.bf16.msra.mxu0 %v3749
        %4410 = vmatprep.subr.bf16.mxu0 %v3752
        %4411 = vmatpush1.bf16.msra.mxu0 %v3751
        %4412 = vmatprep.subr.bf16.mxu0 %v3754
        %4413 = vmatpush1.bf16.msra.mxu0 %v3753
        %4414 = vmatprep.subr.bf16.mxu0 %v3756
        %4415 = vmatpush1.bf16.msra.mxu0 %v3755
        %4416 = vmatprep.subr.bf16.mxu0 %v3758
        %4417 = vmatpush1.bf16.msra.mxu0 %v3757
        %4418 = vmatprep.subr.bf16.mxu0 %v3760
        %4419 = vmatpush1.bf16.msra.mxu0 %v3759
        %4420 = vmatprep.subr.bf16.mxu0 %v3762
        %4421 = vmatpush1.bf16.msra.mxu0 %v3761
        %4422 = vmatprep.subr.bf16.mxu0 %v3764
        %4423 = vmatpush1.bf16.msra.mxu0 %v3763
        %4424 = vmatprep.subr.bf16.mxu0 %v3766
        %4425 = vmatpush1.bf16.msra.mxu0 %v3765
        %4426 = vmatprep.mubr.bf16.mxu0 %v734
        %4427 = vmatmul.mubr.bf16.gmra.mrb[0].mxu0 %v733
        %v4428 = vpop.f32.mrb[0].mxu0
        %v4429 = vadd.f32 %v4376, %v4428
        %v4430 = vpop.f32.mrb[0].mxu0
        %v4431 = vadd.f32 %v4378, %v4430
        %v4432 = vpop.f32.mrb[0].mxu0
        %v4433 = vadd.f32 %v4380, %v4432
        %v4434 = vpop.f32.mrb[0].mxu0
        %v4435 = vadd.f32 %v4382, %v4434
        %4436 = vmatprep.mubr.bf16.mxu0 %v750
        %4437 = vmatmul.mubr.bf16.gmra.mrb[0].mxu0 %v749
        %v4438 = vpop.f32.mrb[0].mxu0
        %v4439 = vadd.f32 %v4386, %v4438
        %v4440 = vpop.f32.mrb[0].mxu0
        %v4441 = vadd.f32 %v4388, %v4440
        %v4442 = vpop.f32.mrb[0].mxu0
        %v4443 = vadd.f32 %v4390, %v4442
        %v4444 = vpop.f32.mrb[0].mxu0
        %v4445 = vadd.f32 %v4392, %v4444
        %4446 = vdwg.mxu0
        %v4447 = vmul.f32 %v2469, %v2469
        %v4448 = vmul.f32 %v2471, %v2471
        %v4449 = vmul.f32 %v2473, %v2473
        %v4450 = vmul.f32 %v2475, %v2475
        %v4451 = vmul.f32 %v2479, %v2479
        %v4452 = vmul.f32 %v2481, %v2481
        %v4453 = vmul.f32 %v2483, %v2483
        %v4454 = vmul.f32 %v2485, %v2485
        %v4455 = vmul.f32 %v4429, %v4429
        %v4456 = vmul.f32 %v4431, %v4431
        %v4457 = vmul.f32 %v4433, %v4433
        %v4458 = vmul.f32 %v4435, %v4435
        %v4459 = vmul.f32 %v4439, %v4439
        %v4460 = vmul.f32 %v4441, %v4441
        %v4461 = vmul.f32 %v4443, %v4443
        %v4462 = vmul.f32 %v4445, %v4445
        %v4463 = vadd.f32 %v4447, %v4455
        %v4464 = vadd.f32 %v4448, %v4456
        %v4465 = vadd.f32 %v4449, %v4457
        %v4466 = vadd.f32 %v4450, %v4458
        %v4467 = vadd.f32 %v4451, %v4459
        %v4468 = vadd.f32 %v4452, %v4460
        %v4469 = vadd.f32 %v4453, %v4461
        %v4470 = vadd.f32 %v4454, %v4462
        %v4471 = vld [vmem:[#allocation2] sm:$0xff]
        %v4472 = vld [vmem:[#allocation2 + $0x8] sm:$0xff]
        %v4473 = vld [vmem:[#allocation2 + $0x10] sm:$0xff]
        %v4474 = vld [vmem:[#allocation2 + $0x18] sm:$0xff]
        %v4475 = vld [vmem:[%s292] sm:$0xff]
        %v4476 = vld [vmem:[%s292 + $0x8] sm:$0xff]
        %v4477 = vld [vmem:[%s292 + $0x10] sm:$0xff]
        %v4478 = vld [vmem:[%s292 + $0x18] sm:$0xff]
        %v4479 = vld [vmem:[%s292 + $0x20] sm:$0xff]
        %v4480 = vld [vmem:[%s292 + $0x28] sm:$0xff]
        %v4481 = vld [vmem:[%s292 + $0x30] sm:$0xff]
        %v4482 = vld [vmem:[%s292 + $0x38] sm:$0xff]
        %v4483 = vld [vmem:[%s292 + $0x40] sm:$0xff]
        %v4484 = vld [vmem:[%s292 + $0x48] sm:$0xff]
        %v4485 = vld [vmem:[%s292 + $0x50] sm:$0xff]
        %v4486 = vld [vmem:[%s292 + $0x58] sm:$0xff]
        %v4487 = vld [vmem:[%s292 + $0x60] sm:$0xff]
        %v4488 = vld [vmem:[%s292 + $0x68] sm:$0xff]
        %v4489 = vld [vmem:[%s292 + $0x70] sm:$0xff]
        %v4490 = vld [vmem:[%s292 + $0x78] sm:$0xff]
        %v4491 = vld [vmem:[%s292 + $0x80] sm:$0xff]
        %v4492 = vld [vmem:[%s292 + $0x88] sm:$0xff]
        %v4493 = vld [vmem:[%s292 + $0x90] sm:$0xff]
        %v4494 = vld [vmem:[%s292 + $0x98] sm:$0xff]
        %v4495 = vld [vmem:[%s292 + $0xa0] sm:$0xff]
        %v4496 = vld [vmem:[%s292 + $0xa8] sm:$0xff]
        %v4497 = vld [vmem:[%s292 + $0xb0] sm:$0xff]
        %v4498 = vld [vmem:[%s292 + $0xb8] sm:$0xff]
        %v4499 = vld [vmem:[%s292 + $0xc0] sm:$0xff]
        %v4500 = vld [vmem:[%s292 + $0xc8] sm:$0xff]
        %v4501 = vld [vmem:[%s292 + $0xd0] sm:$0xff]
        %v4502 = vld [vmem:[%s292 + $0xd8] sm:$0xff]
        %v4503 = vld [vmem:[%s292 + $0xe0] sm:$0xff]
        %v4504 = vld [vmem:[%s292 + $0xe8] sm:$0xff]
        %v4505 = vld [vmem:[%s292 + $0xf0] sm:$0xff]
        %v4506 = vld [vmem:[%s292 + $0xf8] sm:$0xff]
        %4507 = vmatprep.subr.mxu0 0.0
        %4508 = vmatpush1.msra.mxu0 %v4475
        %4509 = vmatprep.subr.mxu0 0.0
        %4510 = vmatpush1.msra.mxu0 %v4476
        %4511 = vmatprep.subr.mxu0 0.0
        %4512 = vmatpush1.msra.mxu0 %v4477
        %4513 = vmatprep.subr.mxu0 0.0
        %4514 = vmatpush1.msra.mxu0 %v4478
        %4515 = vmatprep.subr.mxu0 0.0
        %4516 = vmatpush1.msra.mxu0 %v4479
        %4517 = vmatprep.subr.mxu0 0.0
        %4518 = vmatpush1.msra.mxu0 %v4480
        %4519 = vmatprep.subr.mxu0 0.0
        %4520 = vmatpush1.msra.mxu0 %v4481
        %4521 = vmatprep.subr.mxu0 0.0
        %4522 = vmatpush1.msra.mxu0 %v4482
        %4523 = vmatprep.subr.mxu0 0.0
        %4524 = vmatpush1.msra.mxu0 %v4483
        %4525 = vmatprep.subr.mxu0 0.0
        %4526 = vmatpush1.msra.mxu0 %v4484
        %4527 = vmatprep.subr.mxu0 0.0
        %4528 = vmatpush1.msra.mxu0 %v4485
        %4529 = vmatprep.subr.mxu0 0.0
        %4530 = vmatpush1.msra.mxu0 %v4486
        %4531 = vmatprep.subr.mxu0 0.0
        %4532 = vmatpush1.msra.mxu0 %v4487
        %4533 = vmatprep.subr.mxu0 0.0
        %4534 = vmatpush1.msra.mxu0 %v4488
        %4535 = vmatprep.subr.mxu0 0.0
        %4536 = vmatpush1.msra.mxu0 %v4489
        %4537 = vmatprep.subr.mxu0 0.0
        %4538 = vmatpush1.msra.mxu0 %v4490
        %4539 = vmatprep.subr.mxu0 0.0
        %4540 = vmatpush1.msra.mxu0 %v4491
        %4541 = vmatprep.subr.mxu0 0.0
        %4542 = vmatpush1.msra.mxu0 %v4492
        %4543 = vmatprep.subr.mxu0 0.0
        %4544 = vmatpush1.msra.mxu0 %v4493
        %4545 = vmatprep.subr.mxu0 0.0
        %4546 = vmatpush1.msra.mxu0 %v4494
        %4547 = vmatprep.subr.mxu0 0.0
        %4548 = vmatpush1.msra.mxu0 %v4495
        %4549 = vmatprep.subr.mxu0 0.0
        %4550 = vmatpush1.msra.mxu0 %v4496
        %4551 = vmatprep.subr.mxu0 0.0
        %4552 = vmatpush1.msra.mxu0 %v4497
        %4553 = vmatprep.subr.mxu0 0.0
        %4554 = vmatpush1.msra.mxu0 %v4498
        %4555 = vmatprep.subr.mxu0 0.0
        %4556 = vmatpush1.msra.mxu0 %v4499
        %4557 = vmatprep.subr.mxu0 0.0
        %4558 = vmatpush1.msra.mxu0 %v4500
        %4559 = vmatprep.subr.mxu0 0.0
        %4560 = vmatpush1.msra.mxu0 %v4501
        %4561 = vmatprep.subr.mxu0 0.0
        %4562 = vmatpush1.msra.mxu0 %v4502
        %4563 = vmatprep.subr.mxu0 0.0
        %4564 = vmatpush1.msra.mxu0 %v4503
        %4565 = vmatprep.subr.mxu0 0.0
        %4566 = vmatpush1.msra.mxu0 %v4504
        %4567 = vmatprep.subr.mxu0 0.0
        %4568 = vmatpush1.msra.mxu0 %v4505
        %4569 = vmatprep.subr.mxu0 0.0
        %4570 = vmatpush1.msra.mxu0 %v4506
        %4571 = vmatprep.mubr.f32.mxu0 %v4464
        %4572 = vmatmul.mubr.f32.gmra.mrb[0].mxu0 %v4463
        %v4573 = vpop.f32.mrb[0].mxu0
        %v4574 = vadd.f32 0.0, %v4573
        %v4575 = vpop.f32.mrb[0].mxu0
        %4576 = vmatprep.mubr.f32.mxu0 %v4466
        %4577 = vmatmul.mubr.f32.gmra.mrb[0].mxu0 %v4465
        %v4578 = vpop.f32.mrb[0].mxu0
        %v4579 = vadd.f32 0.0, %v4578
        %v4580 = vpop.f32.mrb[0].mxu0
        %4581 = vmatprep.mubr.f32.mxu0 %v4468
        %4582 = vmatmul.mubr.f32.gmra.mrb[0].mxu0 %v4467
        %v4583 = vpop.f32.mrb[0].mxu0
        %v4584 = vadd.f32 0.0, %v4583
        %v4585 = vpop.f32.mrb[0].mxu0
        %4586 = vmatprep.mubr.f32.mxu0 %v4470
        %4587 = vmatmul.mubr.f32.gmra.mrb[0].mxu0 %v4469
        %v4588 = vpop.f32.mrb[0].mxu0
        %v4589 = vadd.f32 0.0, %v4588
        %v4590 = vpop.f32.mrb[0].mxu0
        %4591 = vdwg.mxu0
        %v4592 = vadd.f32 %v4471, %v4574
        %v4593 = vadd.f32 %v4472, %v4579
        %v4594 = vadd.f32 %v4473, %v4584
        %v4595 = vadd.f32 %v4474, %v4589
        %4596 = vst [vmem:[#allocation2] sm:$0xff] %v4592
        %4597 = vst [vmem:[#allocation2 + $0x8] sm:$0xff] %v4593
        %4598 = vst [vmem:[#allocation2 + $0x10] sm:$0xff] %v4594
        %4599 = vst [vmem:[#allocation2 + $0x18] sm:$0xff] %v4595
        %p4600 = scmp.eq.s32.totalorder %s28, 4
        // Predicated region
        $region57: #{tpu_custom_call.1} parent=35 // pred_check
          %p4601 = pneg %p4600
        $region58: #{tpu_custom_call.1} parent=35 // pred_check_branch
          %4603 = sbr.rel (%p4601) target = $region60
        $region59: #{tpu_custom_call.1} parent=35 // pred_region
          %v4604 = vld [vmem:[#allocation2] sm:$0xff]
          %v4605 = vld [vmem:[#allocation2 + $0x8] sm:$0xff]
          %v4606 = vld [vmem:[#allocation2 + $0x10] sm:$0xff]
          %v4607 = vld [vmem:[#allocation2 + $0x18] sm:$0xff]
          %4608 = vst [vmem:[#allocation11] sm:$0xff] %v4604
          %4609 = vst [vmem:[#allocation11 + $0x8] sm:$0xff] %v4605
          %4610 = vst [vmem:[#allocation11 + $0x10] sm:$0xff] %v4606
          %4611 = vst [vmem:[#allocation11 + $0x18] sm:$0xff] %v4607
        $region60: #{tpu_custom_call.1} parent=35 // pred_fallthru
          _
        // Predicated region
        $region61: #{tpu_custom_call.1} parent=35 // pred_check
          %p4612 = pneg %p157
        $region62: #{tpu_custom_call.1} parent=35 // pred_check_branch
          %4614 = sbr.rel (%p4612) target = $region64
        $region63: #{tpu_custom_call.1} parent=35 // pred_region
          %s4615 = smul.u32 4, %s27
          %s4617 = ssub.s32 512, 512
          %4618 = vsyncadd [#allocation5], %s4617
          %s4619 = smul.addr %s4615, 128
          %s4620 = scalar_lea.hbm %s4, %s4619
          %s4621 = sshll.u32 [#allocation11], 4
          %s4622 = int_to_ptr.vmem [resolvable:$true] %s4621
          %4627 = dma.vmem_to_hbm [thread:$0]  %s4622, 512, %s4620, [#allocation5], 128, 128, 8
        $region64: #{tpu_custom_call.1} parent=35 // pred_fallthru
          _
        // Predicated region
        $region65: #{tpu_custom_call.1} parent=35 // pred_check
          %p4628 = pneg %p157
        $region66: #{tpu_custom_call.1} parent=35 // pred_check_branch
          %4630 = sbr.rel (%p4628) target = $region68
        $region67: #{tpu_custom_call.1} parent=35 // pred_region
          %4631 = dma.done [#allocation5], 512
        $region68: #{tpu_custom_call.1} parent=35 // pred_fallthru
          _
      $region36: #{tpu_custom_call.1} parent=5 // pred_fallthru
        _
      %p4632 = scmp.le.s32.totalorder 2, %s18
      // Predicated region
      $region69: #{tpu_custom_call.1} parent=5 // pred_check
        %p4633 = pneg %p4632
      $region70: #{tpu_custom_call.1} parent=5 // pred_check_branch
        %4635 = sbr.rel (%p4633) target = $region72
      $region71: #{tpu_custom_call.1} parent=5 // pred_region
        %s4636 = ssub.s32 %s18, 2
      $region72: #{tpu_custom_call.1} parent=5 // pred_fallthru
        _
    $region6: #{tpu_custom_call.1} parent=1 // loop_footer
      %s22 = sadd.s32 1, %s18
    $region7: #{tpu_custom_call.1} parent=1 // loop_footer_branch
      %17 = sbr.rel target = $region3
    $region8: #{tpu_custom_call.1} parent=1 // loop_exit
      _
    %4637 = vsyncpa [#allocation4], 1
    %s4638 = scalar_lea.sflag [#allocation4], 1
    %4639 = vsyncpa %s4638, 1
    %4640 = vsyncpa [#allocation7], 1
    %s4641 = scalar_lea.sflag [#allocation7], 1
    %4642 = vsyncpa %s4641, 1
    %4643 = vsyncpa [#allocation10], 1
    %s4644 = scalar_lea.sflag [#allocation10], 1
    %4645 = vsyncpa %s4644, 1
    %4646 = vsyncpa [#allocation5], 1
    %s4647 = scalar_lea.sflag [#allocation5], 1
    %4648 = vsyncpa %s4647, 1

</llo_original>
